<compile_context>
chip_gen: v7x
topology: tpu7x:2x2x1
jax: 0.10.0
libtpu: 0.0.40
codegen_flags: <defaults>
</compile_context>

<pallas_src>
import math
import functools

import jax
import jax.numpy as jnp
import numpy as np
from jax.experimental import pallas as pl
from jax.experimental.pallas import tpu as pltpu


# ----------------------------------------------------------------------------
# Pallas kernels
# ----------------------------------------------------------------------------
def make_qkv_kernel(eps: float, th: int, hd: int):
    """RMSNorm(x) -> fused Q/K/V projection + RoPE (+scale on q), per-head stores."""
    hd2 = hd // 2
    scale = 1.0 / math.sqrt(hd)

    def kernel(x_ref, nw_ref, cos_ref, sin_ref, wq_ref, wk_ref, wv_ref,
               q_ref, k_ref, v_ref):
        x = x_ref[...]                                           # (ts, D) f32
        ms = jnp.mean(x * x, axis=-1, keepdims=True)
        xn = (x * jax.lax.rsqrt(ms + eps) * nw_ref[...]).astype(jnp.bfloat16)
        q = jnp.dot(xn, wq_ref[...], preferred_element_type=jnp.float32)
        k = jnp.dot(xn, wk_ref[...], preferred_element_type=jnp.float32)
        v = jnp.dot(xn, wv_ref[...], preferred_element_type=jnp.float32)
        cos = cos_ref[...]                                       # (ts, hd/2) f32
        sin = sin_ref[...]
        for j in range(th):                                      # static loop: rope + stores
            b0 = j * hd
            qr, qi = q[:, b0:b0 + hd2], q[:, b0 + hd2:b0 + hd]
            kr, ki = k[:, b0:b0 + hd2], k[:, b0 + hd2:b0 + hd]
            q_ref[j] = (scale * jnp.concatenate(
                [qr * cos - qi * sin, qr * sin + qi * cos], axis=-1)).astype(q_ref.dtype)
            k_ref[j] = jnp.concatenate(
                [kr * cos - ki * sin, kr * sin + ki * cos], axis=-1).astype(k_ref.dtype)
            v_ref[j] = v[:, b0:b0 + hd].astype(v_ref.dtype)
    return kernel


def make_attn_kernel(start_pos: int):
    """Per-(batch, head) causal softmax attention (q already roped + scaled)."""
    def kernel(q_ref, k_ref, v_ref, o_ref):
        s = jnp.einsum("qd,kd->qk", q_ref[...], k_ref[...],
                       preferred_element_type=jnp.float32)       # (S, S) f32
        # causal mask built in-kernel (no (S, S) array shipped from HBM)
        row = jax.lax.broadcasted_iota(jnp.int32, s.shape, 0)
        col = jax.lax.broadcasted_iota(jnp.int32, s.shape, 1)
        s = jnp.where(col <= row + start_pos, s, -1e30)
        s = s - jnp.max(s, axis=-1, keepdims=True)
        p = jnp.exp(s)
        p = p * pl.reciprocal(jnp.sum(p, axis=-1, keepdims=True), approx=True)
        o = jnp.dot(p.astype(jnp.bfloat16), v_ref[...],
                    preferred_element_type=jnp.float32)          # (S, hd)
        o_ref[...] = o.astype(o_ref.dtype)
    return kernel


def wo_kernel(a_ref, wo_ref, x_ref, o_ref, acc_ref):
    """Attention output projection accumulated over the head axis, + residual."""
    j = pl.program_id(2)

    @pl.when(j == 0)
    def _():
        acc_ref[...] = jnp.zeros_like(acc_ref)

    acc_ref[...] += jnp.dot(a_ref[...], wo_ref[...],
                            preferred_element_type=jnp.float32)

    @pl.when(j == pl.num_programs(2) - 1)
    def _():
        o_ref[...] = x_ref[...] + acc_ref[...]


def make_ffn_in_kernel(eps: float):
    """RMSNorm(h) -> silu(h @ w1) * (h @ w3) for one Fh tile."""
    def kernel(h_ref, nw_ref, w1_ref, w3_ref, g_ref):
        h = h_ref[...]
        ms = jnp.mean(h * h, axis=-1, keepdims=True)
        hn = (h * jax.lax.rsqrt(ms + eps) * nw_ref[...]).astype(jnp.bfloat16)
        a1 = jnp.dot(hn, w1_ref[...], preferred_element_type=jnp.float32)
        a3 = jnp.dot(hn, w3_ref[...], preferred_element_type=jnp.float32)
        g_ref[...] = (a1 * jax.nn.sigmoid(a1) * a3).astype(g_ref.dtype)
    return kernel


def ffn_out_kernel(g_ref, w2_ref, h_ref, o_ref, acc_ref):
    """g @ w2, K-accumulated over Fh tiles (P1+P3 pattern), plus residual add."""
    @pl.when(pl.program_id(3) == 0)
    def _():
        acc_ref[...] = jnp.zeros_like(acc_ref)

    acc_ref[...] += jnp.dot(g_ref[...], w2_ref[...],
                            preferred_element_type=jnp.float32)

    @pl.when(pl.program_id(3) == pl.num_programs(3) - 1)
    def _():
        o_ref[...] = h_ref[...] + acc_ref[...]


def make_head_kernel(eps: float):
    """Final RMSNorm + vocab projection (last token only), one V tile per step."""
    def kernel(h_ref, nw_ref, w_ref, o_ref):
        h = h_ref[...]
        ms = jnp.mean(h * h, axis=-1, keepdims=True)
        hn = (h * jax.lax.rsqrt(ms + eps) * nw_ref[...]).astype(jnp.bfloat16)
        o_ref[...] = jnp.dot(hn, w_ref[...], preferred_element_type=jnp.float32)
    return kernel


# ----------------------------------------------------------------------------
# Wrapper: glue (embedding gather, RoPE tables, weight column permutation) +
# gridded pallas_calls.
# ----------------------------------------------------------------------------
def transformer_forward(tokens, params, cfg, start_pos: int = 0):
    B, S = tokens.shape
    D, H = cfg["dim"], cfg["n_heads"]
    hd = D // H
    hd2 = hd // 2
    eps = cfg["norm_eps"]
    Fh = params["layers"][0]["w1"].shape[1]
    V = params["output"].shape[1]
    assert hd % 2 == 0

    # ---- tile sizes (full dims at demo scale; 128/256-multiples at real scale;
    #      on v7x halve them to keep the double-buffered working set ~32 MiB) ----
    ts = S if S <= 256 else 256
    assert S % ts == 0
    th = H if H * hd <= 2048 else max(1, 2048 // hd)
    assert H % th == 0
    tf = Fh if Fh <= 512 else 512
    assert Fh % tf == 0
    td = D if D <= 512 else 512
    assert D % td == 0
    tv = V if V <= 2048 else 2048
    assert V % tv == 0

    par = lambda n: pltpu.CompilerParams(dimension_semantics=("parallel",) * n)
    par_acc = lambda n: pltpu.CompilerParams(
        dimension_semantics=("parallel",) * (n - 1) + ("arbitrary",))

    # -------- glue: embedding gather, RoPE tables, per-head column permutation ----
    h = params["tok_embeddings"][tokens].astype(jnp.float32)          # (B, S, D)

    freqs = 1.0 / (10000.0 ** (jnp.arange(0, hd, 2, dtype=jnp.float32) / hd))
    t = jnp.arange(start_pos, start_pos + S, dtype=jnp.float32)
    ang = jnp.outer(t, freqs)                                         # (S, hd/2)
    cos, sin = jnp.cos(ang), jnp.sin(ang)

    # Interleaved (even, odd) RoPE pairs -> half-split pairs, realized by permuting
    # the columns of wq / wk once per layer (free preprocessing; q.k^T invariant).
    perm = jnp.asarray(np.concatenate(
        [j * hd + np.concatenate([np.arange(0, hd, 2), np.arange(1, hd, 2)])
         for j in range(H)]), jnp.int32)

    # -------- pallas_call builders --------
    def qkv_call(x, nw, wq, wk, wv):
        qspec = pl.BlockSpec((None, th, ts, hd), lambda b, s, j: (b, j, s, 0))
        wspec = pl.BlockSpec((D, th * hd), lambda b, s, j: (0, j))
        tspec = pl.BlockSpec((ts, hd2), lambda b, s, j: (s, 0))
        return pl.pallas_call(
            make_qkv_kernel(eps, th, hd),
            out_shape=(jax.ShapeDtypeStruct((B, H, S, hd), jnp.bfloat16),) * 3,
            grid=(B, S // ts, H // th),
            in_specs=[
                pl.BlockSpec((None, ts, D), lambda b, s, j: (b, s, 0)),
                pl.BlockSpec((1, D), lambda b, s, j: (0, 0)),
                tspec, tspec,
                wspec, wspec, wspec,
            ],
            out_specs=(qspec, qspec, qspec),
            compiler_params=par(3),
        )(x, nw, cos, sin, wq, wk, wv)

    def attn_call(q, k, v):
        io_spec = pl.BlockSpec((None, None, S, hd), lambda b, hh: (b, hh, 0, 0))
        return pl.pallas_call(
            make_attn_kernel(start_pos),
            out_shape=jax.ShapeDtypeStruct((B, H, S, hd), jnp.bfloat16),
            grid=(B, H),
            in_specs=[io_spec, io_spec, io_spec],
            out_specs=io_spec,
            compiler_params=par(2),
        )(q, k, v)

    def wo_call(attn, wo, x):
        wo_r = wo.reshape(H, hd, D)                       # free reshape (contiguous)
        return pl.pallas_call(
            wo_kernel,
            out_shape=jax.ShapeDtypeStruct((B, S, D), jnp.float32),
            grid=(B, S // ts, H),
            in_specs=[
                pl.BlockSpec((None, None, ts, hd), lambda b, s, j: (b, j, s, 0)),
                pl.BlockSpec((None, hd, D), lambda b, s, j: (j, 0, 0)),
                pl.BlockSpec((None, ts, D), lambda b, s, j: (b, s, 0)),
            ],
            out_specs=pl.BlockSpec((None, ts, D), lambda b, s, j: (b, s, 0)),
            scratch_shapes=[pltpu.VMEM((ts, D), jnp.float32)],
            input_output_aliases={2: 0},           # reuse residual-stream buffer
            compiler_params=par_acc(3),
        )(attn, wo_r, x)

    def ffn_in_call(x, nw, w1, w3):
        return pl.pallas_call(
            make_ffn_in_kernel(eps),
            out_shape=jax.ShapeDtypeStruct((B, S, Fh), jnp.bfloat16),
            grid=(B, S // ts, Fh // tf),
            in_specs=[
                pl.BlockSpec((None, ts, D), lambda b, s, n: (b, s, 0)),
                pl.BlockSpec((1, D), lambda b, s, n: (0, 0)),
                pl.BlockSpec((D, tf), lambda b, s, n: (0, n)),
                pl.BlockSpec((D, tf), lambda b, s, n: (0, n)),
            ],
            out_specs=pl.BlockSpec((None, ts, tf), lambda b, s, n: (b, s, n)),
            compiler_params=par(3),
        )(x, nw, w1, w3)

    def ffn_out_call(g, w2, x):
        return pl.pallas_call(
            ffn_out_kernel,
            out_shape=jax.ShapeDtypeStruct((B, S, D), jnp.float32),
            grid=(B, S // ts, D // td, Fh // tf),
            in_specs=[
                pl.BlockSpec((None, ts, tf), lambda b, s, n, kk: (b, s, kk)),
                pl.BlockSpec((tf, td), lambda b, s, n, kk: (kk, n)),
                pl.BlockSpec((None, ts, td), lambda b, s, n, kk: (b, s, n)),
            ],
            out_specs=pl.BlockSpec((None, ts, td), lambda b, s, n, kk: (b, s, n)),
            scratch_shapes=[pltpu.VMEM((ts, td), jnp.float32)],
            input_output_aliases={2: 0},           # reuse residual-stream buffer
            compiler_params=par_acc(4),
        )(g, w2, x)

    def head_call(x_last, nw, w_out):
        return pl.pallas_call(
            make_head_kernel(eps),
            out_shape=jax.ShapeDtypeStruct((B, V), jnp.float32),
            grid=(V // tv,),
            in_specs=[
                pl.BlockSpec((B, D), lambda n: (0, 0)),
                pl.BlockSpec((1, D), lambda n: (0, 0)),
                pl.BlockSpec((D, tv), lambda n: (0, n)),
            ],
            out_specs=pl.BlockSpec((B, tv), lambda n: (0, n)),
            compiler_params=par(1),
        )(x_last, nw, w_out)

    # -------- layer loop (prefill path; see TODO about KV cache / decode) --------
    for layer in params["layers"]:
        wq = jnp.take(layer["wq"], perm, axis=1)   # one-time column permutation
        wk = jnp.take(layer["wk"], perm, axis=1)
        q, k, v = qkv_call(h, layer["attention_norm"].reshape(1, D),
                           wq, wk, layer["wv"])
        attn = attn_call(q, k, v)
        h = wo_call(attn, layer["wo"], h)
        g = ffn_in_call(h, layer["ffn_norm"].reshape(1, D), layer["w1"], layer["w3"])
        h = ffn_out_call(g, layer["w2"], h)

    h_last = h[:, S - 1, :]                        # slice the last token in the wrapper
    return head_call(h_last, params["norm"].reshape(1, D), params["output"])


# ----------------------------------------------------------------------------
# Deterministic parameter init (synthetic weights; linear weights in bf16)
# ----------------------------------------------------------------------------
def init_params(key, cfg):
    D, V = cfg["dim"], cfg["vocab_size"]
    hidden = int(2 * (4 * D) / 3)
    m = cfg["multiple_of"]
    Fh = m * ((hidden + m - 1) // m)
    scale = 1.0 / math.sqrt(D)
    keys = jax.random.split(key, 2 + cfg["n_layers"])

    def lin(k, i, o):
        return (scale * jax.random.normal(k, (i, o), jnp.float32)).astype(jnp.bfloat16)

    params = {"tok_embeddings": 0.1 * jax.random.normal(keys[0], (V, D), jnp.float32)}
    layers = []
    for l in range(cfg["n_layers"]):
        lk = jax.random.split(keys[2 + l], 9)
        layers.append(dict(
            wq=lin(lk[0], D, D), wk=lin(lk[1], D, D),
            wv=lin(lk[2], D, D), wo=lin(lk[3], D, D),
            w1=lin(lk[4], D, Fh), w3=lin(lk[5], D, Fh), w2=lin(lk[6], Fh, D),
            attention_norm=1.0 + 0.05 * jax.random.normal(lk[7], (D,), jnp.float32),
            ffn_norm=1.0 + 0.05 * jax.random.normal(lk[8], (D,), jnp.float32),
        ))
    params["layers"] = layers
    nk = jax.random.split(keys[1], 2)
    params["norm"] = 1.0 + 0.05 * jax.random.normal(nk[0], (D,), jnp.float32)
    params["output"] = lin(nk[1], D, V)
    return params, Fh


# ----------------------------------------------------------------------------
# Pure-JAX reference (mirrors the PyTorch forward, f32 math on bf16 weights)
# ----------------------------------------------------------------------------
def ref_forward(tokens, params, cfg, start_pos: int = 0):
    B, S = tokens.shape
    D, H = cfg["dim"], cfg["n_heads"]
    hd = D // H
    eps = cfg["norm_eps"]
    f32 = jnp.float32

    h = params["tok_embeddings"][tokens].astype(f32)
    freqs = 1.0 / (10000.0 ** (jnp.arange(0, hd, 2, dtype=f32) / hd))
    t = jnp.arange(start_pos, start_pos + S, dtype=f32)
    ang = jnp.outer(t, freqs)                                     # (S, hd/2)
    cosS, sinS = jnp.cos(ang), jnp.sin(ang)
    mask = (jnp.triu(jnp.full((S, S), -jnp.inf, f32), k=start_pos + 1)
            if S > 1 else None)

    def rms(x, w):
        return x * jax.lax.rsqrt(jnp.mean(x * x, -1, keepdims=True) + eps) * w

    def rope(x):                                                  # (B,S,H,hd), interleaved
        xp = x.reshape(B, S, H, hd // 2, 2)
        xr, xi = xp[..., 0], xp[..., 1]
        c = cosS[None, :, None, :]
        s = sinS[None, :, None, :]
        return jnp.stack([xr * c - xi * s, xr * s + xi * c], -1).reshape(B, S, H, hd)

    for layer in params["layers"]:
        wq = layer["wq"].astype(f32); wk = layer["wk"].astype(f32)
        wv = layer["wv"].astype(f32); wo = layer["wo"].astype(f32)
        w1 = layer["w1"].astype(f32); w3 = layer["w3"].astype(f32)
        w2 = layer["w2"].astype(f32)
        xn = rms(h, layer["attention_norm"])
        xq = (xn @ wq).reshape(B, S, H, hd)
        xk = (xn @ wk).reshape(B, S, H, hd)
        xv = (xn @ wv).reshape(B, S, H, hd)
        xq, xk = rope(xq), rope(xk)
        q = jnp.transpose(xq, (0, 2, 1, 3))
        k = jnp.transpose(xk, (0, 2, 1, 3))
        v = jnp.transpose(xv, (0, 2, 1, 3))
        sc = jnp.einsum("bhqd,bhkd->bhqk", q, k) / math.sqrt(hd)
        if mask is not None:
            sc = sc + mask[None, None]
        p = jax.nn.softmax(sc, axis=-1)
        o = jnp.einsum("bhqk,bhkd->bhqd", p, v)
        o = jnp.transpose(o, (0, 2, 1, 3)).reshape(B, S, D)
        h = h + o @ wo
        hn = rms(h, layer["ffn_norm"])
        h = h + (jax.nn.silu(hn @ w1) * (hn @ w3)) @ w2

    hn = rms(h, params["norm"])
    return hn[:, -1, :] @ params["output"].astype(f32)


# ----------------------------------------------------------------------------
if __name__ == "__main__":
    cfg = dict(dim=32, n_layers=2, n_heads=4, vocab_size=64,
               multiple_of=32, norm_eps=1e-5)
    key = jax.random.PRNGKey(0)
    pk, tk = jax.random.split(key)
    params, ffn_hidden = init_params(pk, cfg)

    B, S = 2, 8
    tokens = jax.random.randint(tk, (B, S), 0, cfg["vocab_size"], dtype=jnp.int32)

    fwd = jax.jit(functools.partial(transformer_forward, cfg=cfg, start_pos=0))
    out = jax.block_until_ready(fwd(tokens, params))

    ref = ref_forward(tokens, params, cfg, start_pos=0)
    # Tolerance reflects bf16 matmul operands (f32 accumulation) in the kernels vs.
    # the f32 reference; structural errors would be orders of magnitude larger.
    np.testing.assert_allclose(np.asarray(out), np.asarray(ref), atol=5e-2, rtol=5e-2)

    print("KERNEL_OK")
</pallas_src>

<mosaic_0001>
module attributes {stable_mosaic.version = 11 : i64} {
  func.func @kernel(%arg0: i32, %arg1: i32, %arg2: memref<1x1x8x8xbf16, #tpu.memory_space<vmem>>, %arg3: memref<1x1x8x8xbf16, #tpu.memory_space<vmem>>, %arg4: memref<1x1x8x8xbf16, #tpu.memory_space<vmem>>, %arg5: memref<1x1x8x8xbf16, #tpu.memory_space<vmem>>) attributes {dimension_semantics = [#tpu.dimension_semantics<parallel>, #tpu.dimension_semantics<parallel>], iteration_bounds = array<i64: 2, 4>, scalar_prefetch = 0 : i64, scratch_operands = 0 : i64, tpu.core_type = #tpu.core_type<tc>, window_params = [{transform_indices = @transform_0, window_bounds = array<i64: 1, 1, 8, 8>}, {transform_indices = @transform_1, window_bounds = array<i64: 1, 1, 8, 8>}, {transform_indices = @transform_2, window_bounds = array<i64: 1, 1, 8, 8>}, {transform_indices = @transform_3, window_bounds = array<i64: 1, 1, 8, 8>}]} {
    %c0 = arith.constant 0 : index
    %c0_0 = arith.constant 0 : index
    %c0_1 = arith.constant 0 : index
    %c0_2 = arith.constant 0 : index
    %0 = vector.load %arg2[%c0, %c0_0, %c0_1, %c0_2] : memref<1x1x8x8xbf16, #tpu.memory_space<vmem>>, vector<1x1x8x8xbf16>
    %1 = vector.shape_cast %0 : vector<1x1x8x8xbf16> to vector<8x8xbf16>
    %c0_3 = arith.constant 0 : index
    %c0_4 = arith.constant 0 : index
    %c0_5 = arith.constant 0 : index
    %c0_6 = arith.constant 0 : index
    %2 = vector.load %arg3[%c0_3, %c0_4, %c0_5, %c0_6] : memref<1x1x8x8xbf16, #tpu.memory_space<vmem>>, vector<1x1x8x8xbf16>
    %3 = vector.shape_cast %2 : vector<1x1x8x8xbf16> to vector<8x8xbf16>
    "tpu.trace_start"() <{level = 10 : i32, message = "qd,kd->qk"}> : () -> ()
    %cst = arith.constant dense<0.000000e+00> : vector<8x8xf32>
    %4 = tpu.matmul %1, %3, %cst {dimension_numbers = #tpu.dot_dimension_numbers<[1], [1], [0], [0], [0, 0, 1, 0], [], []>} : vector<8x8xbf16>, vector<8x8xbf16>, vector<8x8xf32> -> vector<8x8xf32>
    "tpu.trace_stop"() : () -> ()
    %5 = tpu.iota {dimensions = array<i32: 0>} : vector<8x8xi32>
    %6 = tpu.iota {dimensions = array<i32: 1>} : vector<8x8xi32>
    %c0_i32 = arith.constant 0 : i32
    %7 = vector.broadcast %c0_i32 : i32 to vector<8x8xi32>
    %8 = arith.addi %5, %7 : vector<8x8xi32>
    %9 = arith.cmpi sle, %6, %8 : vector<8x8xi32>
    %cst_7 = arith.constant -1.000000e+30 : f32
    %10 = vector.broadcast %cst_7 : f32 to vector<8x8xf32>
    %11 = arith.select %9, %4, %10 : vector<8x8xi1>, vector<8x8xf32>
    %cst_8 = arith.constant dense<0xFF800000> : vector<8xf32>
    %12 = vector.multi_reduction <maximumf>, %11, %cst_8 [1] : vector<8x8xf32> to vector<8xf32>
    %13 = vector.shape_cast %12 : vector<8xf32> to vector<8x1xf32>
    %14 = vector.broadcast %13 : vector<8x1xf32> to vector<8x8xf32>
    %15 = arith.subf %11, %14 : vector<8x8xf32>
    %16 = math.exp %15 : vector<8x8xf32>
    %cst_9 = arith.constant dense<0.000000e+00> : vector<8xf32>
    %17 = vector.multi_reduction <add>, %16, %cst_9 [1] : vector<8x8xf32> to vector<8xf32>
    %18 = vector.shape_cast %17 : vector<8xf32> to vector<8x1xf32>
    %19 = tpu.reciprocal %18 {approx = true} : vector<8x1xf32> -> vector<8x1xf32>
    %20 = vector.broadcast %19 : vector<8x1xf32> to vector<8x8xf32>
    %21 = arith.mulf %16, %20 : vector<8x8xf32>
    %22 = arith.truncf %21 : vector<8x8xf32> to vector<8x8xbf16>
    %c0_10 = arith.constant 0 : index
    %c0_11 = arith.constant 0 : index
    %c0_12 = arith.constant 0 : index
    %c0_13 = arith.constant 0 : index
    %23 = vector.load %arg4[%c0_10, %c0_11, %c0_12, %c0_13] : memref<1x1x8x8xbf16, #tpu.memory_space<vmem>>, vector<1x1x8x8xbf16>
    %24 = vector.shape_cast %23 : vector<1x1x8x8xbf16> to vector<8x8xbf16>
    %cst_14 = arith.constant dense<0.000000e+00> : vector<8x8xf32>
    %25 = tpu.matmul %22, %24, %cst_14 {dimension_numbers = #tpu.dot_dimension_numbers<[1], [0], [0], [1], [0, 0, 1, 1], [], []>} : vector<8x8xbf16>, vector<8x8xbf16>, vector<8x8xf32> -> vector<8x8xf32>
    %26 = arith.truncf %25 : vector<8x8xf32> to vector<8x8xbf16>
    %c0_15 = arith.constant 0 : index
    %c0_16 = arith.constant 0 : index
    %c0_17 = arith.constant 0 : index
    %c0_18 = arith.constant 0 : index
    %27 = vector.load %arg5[%c0_15, %c0_16, %c0_17, %c0_18] : memref<1x1x8x8xbf16, #tpu.memory_space<vmem>>, vector<1x1x8x8xbf16>
    %28 = vector.shape_cast %27 : vector<1x1x8x8xbf16> to vector<8x8xbf16>
    %29 = vector.shape_cast %26 : vector<8x8xbf16> to vector<1x1x8x8xbf16>
    tpu.vector_store %arg5[%c0_15, %c0_16, %c0_17, %c0_18], %29 {strides = array<i32>} : memref<1x1x8x8xbf16, #tpu.memory_space<vmem>>, vector<1x1x8x8xbf16>,
    return
  }
  func.func @transform_0(%arg0: i32, %arg1: i32) -> (i32, i32, i32, i32) {
    %c0_i32 = arith.constant 0 : i32
    %c0_i32_0 = arith.constant 0 : i32
    %c0_i32_1 = arith.constant 0 : i32
    return %arg0, %arg1, %c0_i32, %c0_i32_0 : i32, i32, i32, i32
  }
  func.func @transform_1(%arg0: i32, %arg1: i32) -> (i32, i32, i32, i32) {
    %c0_i32 = arith.constant 0 : i32
    %c0_i32_0 = arith.constant 0 : i32
    %c0_i32_1 = arith.constant 0 : i32
    return %arg0, %arg1, %c0_i32, %c0_i32_0 : i32, i32, i32, i32
  }
  func.func @transform_2(%arg0: i32, %arg1: i32) -> (i32, i32, i32, i32) {
    %c0_i32 = arith.constant 0 : i32
    %c0_i32_0 = arith.constant 0 : i32
    %c0_i32_1 = arith.constant 0 : i32
    return %arg0, %arg1, %c0_i32, %c0_i32_0 : i32, i32, i32, i32
  }
  func.func @transform_3(%arg0: i32, %arg1: i32) -> (i32, i32, i32, i32) {
    %c0_i32 = arith.constant 0 : i32
    %c0_i32_0 = arith.constant 0 : i32
    %c0_i32_1 = arith.constant 0 : i32
    return %arg0, %arg1, %c0_i32, %c0_i32_0 : i32, i32, i32, i32
  }
}

module attributes {stable_mosaic.version = 11 : i64} {
  func.func @wo_kernel(%arg0: i32, %arg1: i32, %arg2: i32, %arg3: memref<1x1x8x8xbf16, #tpu.memory_space<vmem>>, %arg4: memref<1x8x32xbf16, #tpu.memory_space<vmem>>, %arg5: memref<1x8x32xf32, #tpu.memory_space<vmem>>, %arg6: memref<1x8x32xf32, #tpu.memory_space<vmem>>, %arg7: memref<8x32xf32, #tpu.memory_space<vmem>>) attributes {dimension_semantics = [#tpu.dimension_semantics<parallel>, #tpu.dimension_semantics<parallel>, #tpu.dimension_semantics<arbitrary>], iteration_bounds = array<i64: 2, 1, 4>, scalar_prefetch = 0 : i64, scratch_operands = 1 : i64, tpu.core_type = #tpu.core_type<tc>, window_params = [{transform_indices = @transform_0, window_bounds = array<i64: 1, 1, 8, 8>}, {transform_indices = @transform_1, window_bounds = array<i64: 1, 8, 32>}, {transform_indices = @transform_2, window_bounds = array<i64: 1, 8, 32>}, {transform_indices = @transform_3, window_bounds = array<i64: 1, 8, 32>}]} {
    %c0_i32 = arith.constant 0 : i32
    %0 = arith.cmpi eq, %arg2, %c0_i32 : i32
    %1 = arith.extui %0 : i1 to i32
    %c0_i32_0 = arith.constant 0 : i32
    %2 = arith.cmpi ne, %1, %c0_i32_0 : i32
    scf.if %2 {
      %cst_12 = arith.constant 0.000000e+00 : f32
      %14 = vector.broadcast %cst_12 : f32 to vector<8x32xf32>
      %c0_13 = arith.constant 0 : index
      %c0_14 = arith.constant 0 : index
      %15 = vector.load %arg7[%c0_13, %c0_14] : memref<8x32xf32, #tpu.memory_space<vmem>>, vector<8x32xf32>
      tpu.vector_store %arg7[%c0_13, %c0_14], %14 {strides = array<i32>} : memref<8x32xf32, #tpu.memory_space<vmem>>, vector<8x32xf32>,
    } else {
    }
    %c0 = arith.constant 0 : index
    %c0_1 = arith.constant 0 : index
    %3 = vector.load %arg7[%c0, %c0_1] : memref<8x32xf32, #tpu.memory_space<vmem>>, vector<8x32xf32>
    %c0_2 = arith.constant 0 : index
    %c0_3 = arith.constant 0 : index
    %c0_4 = arith.constant 0 : index
    %c0_5 = arith.constant 0 : index
    %4 = vector.load %arg3[%c0_2, %c0_3, %c0_4, %c0_5] : memref<1x1x8x8xbf16, #tpu.memory_space<vmem>>, vector<1x1x8x8xbf16>
    %5 = vector.shape_cast %4 : vector<1x1x8x8xbf16> to vector<8x8xbf16>
    %c0_6 = arith.constant 0 : index
    %c0_7 = arith.constant 0 : index
    %c0_8 = arith.constant 0 : index
    %6 = vector.load %arg4[%c0_6, %c0_7, %c0_8] : memref<1x8x32xbf16, #tpu.memory_space<vmem>>, vector<1x8x32xbf16>
    %7 = vector.shape_cast %6 : vector<1x8x32xbf16> to vector<8x32xbf16>
    %cst = arith.constant dense<0.000000e+00> : vector<8x32xf32>
    %8 = tpu.matmul %5, %7, %cst {dimension_numbers = #tpu.dot_dimension_numbers<[1], [0], [0], [1], [0, 0, 1, 1], [], []>} : vector<8x8xbf16>, vector<8x32xbf16>, vector<8x32xf32> -> vector<8x32xf32>
    %9 = arith.addf %3, %8 : vector<8x32xf32>
    %c0_9 = arith.constant 0 : index
    %c0_10 = arith.constant 0 : index
    %10 = vector.load %arg7[%c0_9, %c0_10] : memref<8x32xf32, #tpu.memory_space<vmem>>, vector<8x32xf32>
    tpu.vector_store %arg7[%c0_9, %c0_10], %9 {strides = array<i32>} : memref<8x32xf32, #tpu.memory_space<vmem>>, vector<8x32xf32>,
    %c3_i32 = arith.constant 3 : i32
    %11 = arith.cmpi eq, %arg2, %c3_i32 : i32
    %12 = arith.extui %11 : i1 to i32
    %c0_i32_11 = arith.constant 0 : i32
    %13 = arith.cmpi ne, %12, %c0_i32_11 : i32
    scf.if %13 {
      %c0_12 = arith.constant 0 : index
      %c0_13 = arith.constant 0 : index
      %c0_14 = arith.constant 0 : index
      %14 = vector.load %arg5[%c0_12, %c0_13, %c0_14] : memref<1x8x32xf32, #tpu.memory_space<vmem>>, vector<1x8x32xf32>
      %15 = vector.shape_cast %14 : vector<1x8x32xf32> to vector<8x32xf32>
      %c0_15 = arith.constant 0 : index
      %c0_16 = arith.constant 0 : index
      %16 = vector.load %arg7[%c0_15, %c0_16] : memref<8x32xf32, #tpu.memory_space<vmem>>, vector<8x32xf32>
      %17 = arith.addf %15, %16 : vector<8x32xf32>
      %c0_17 = arith.constant 0 : index
      %c0_18 = arith.constant 0 : index
      %c0_19 = arith.constant 0 : index
      %18 = vector.load %arg6[%c0_17, %c0_18, %c0_19] : memref<1x8x32xf32, #tpu.memory_space<vmem>>, vector<1x8x32xf32>
      %19 = vector.shape_cast %18 : vector<1x8x32xf32> to vector<8x32xf32>
      %20 = vector.shape_cast %17 : vector<8x32xf32> to vector<1x8x32xf32>
      tpu.vector_store %arg6[%c0_17, %c0_18, %c0_19], %20 {strides = array<i32>} : memref<1x8x32xf32, #tpu.memory_space<vmem>>, vector<1x8x32xf32>,
    } else {
    }
    return
  }
  func.func @transform_0(%arg0: i32, %arg1: i32, %arg2: i32) -> (i32, i32, i32, i32) {
    %c0_i32 = arith.constant 0 : i32
    %c0_i32_0 = arith.constant 0 : i32
    return %arg0, %arg2, %arg1, %c0_i32 : i32, i32, i32, i32
  }
  func.func @transform_1(%arg0: i32, %arg1: i32, %arg2: i32) -> (i32, i32, i32) {
    %c0_i32 = arith.constant 0 : i32
    %c0_i32_0 = arith.constant 0 : i32
    %c0_i32_1 = arith.constant 0 : i32
    return %arg2, %c0_i32, %c0_i32_0 : i32, i32, i32
  }
  func.func @transform_2(%arg0: i32, %arg1: i32, %arg2: i32) -> (i32, i32, i32) {
    %c0_i32 = arith.constant 0 : i32
    %c0_i32_0 = arith.constant 0 : i32
    return %arg0, %arg1, %c0_i32 : i32, i32, i32
  }
  func.func @transform_3(%arg0: i32, %arg1: i32, %arg2: i32) -> (i32, i32, i32) {
    %c0_i32 = arith.constant 0 : i32
    %c0_i32_0 = arith.constant 0 : i32
    return %arg0, %arg1, %c0_i32 : i32, i32, i32
  }
}

module attributes {stable_mosaic.version = 11 : i64} {
  func.func @kernel(%arg0: i32, %arg1: i32, %arg2: i32, %arg3: memref<1x8x32xf32, #tpu.memory_space<vmem>>, %arg4: memref<1x32xf32, #tpu.memory_space<vmem>>, %arg5: memref<8x4xf32, #tpu.memory_space<vmem>>, %arg6: memref<8x4xf32, #tpu.memory_space<vmem>>, %arg7: memref<32x32xbf16, #tpu.memory_space<vmem>>, %arg8: memref<32x32xbf16, #tpu.memory_space<vmem>>, %arg9: memref<32x32xbf16, #tpu.memory_space<vmem>>, %arg10: memref<1x4x8x8xbf16, #tpu.memory_space<vmem>>, %arg11: memref<1x4x8x8xbf16, #tpu.memory_space<vmem>>, %arg12: memref<1x4x8x8xbf16, #tpu.memory_space<vmem>>) attributes {dimension_semantics = [#tpu.dimension_semantics<parallel>, #tpu.dimension_semantics<parallel>, #tpu.dimension_semantics<parallel>], iteration_bounds = array<i64: 2, 1, 1>, scalar_prefetch = 0 : i64, scratch_operands = 0 : i64, tpu.core_type = #tpu.core_type<tc>, window_params = [{transform_indices = @transform_0, window_bounds = array<i64: 1, 8, 32>}, {pipeline_mode = #tpu.pipeline_mode<synchronous>, transform_indices = @transform_1, window_bounds = array<i64: 1, 32>}, {transform_indices = @transform_2, window_bounds = array<i64: 8, 4>}, {transform_indices = @transform_3, window_bounds = array<i64: 8, 4>}, {transform_indices = @transform_4, window_bounds = array<i64: 32, 32>}, {transform_indices = @transform_5, window_bounds = array<i64: 32, 32>}, {transform_indices = @transform_6, window_bounds = array<i64: 32, 32>}, {transform_indices = @transform_7, window_bounds = array<i64: 1, 4, 8, 8>}, {transform_indices = @transform_8, window_bounds = array<i64: 1, 4, 8, 8>}, {transform_indices = @transform_9, window_bounds = array<i64: 1, 4, 8, 8>}]} {
    %c0 = arith.constant 0 : index
    %c0_0 = arith.constant 0 : index
    %c0_1 = arith.constant 0 : index
    %0 = vector.load %arg3[%c0, %c0_0, %c0_1] : memref<1x8x32xf32, #tpu.memory_space<vmem>>, vector<1x8x32xf32>
    %1 = vector.shape_cast %0 : vector<1x8x32xf32> to vector<8x32xf32>
    %2 = arith.mulf %1, %1 : vector<8x32xf32>
    %cst = arith.constant dense<0.000000e+00> : vector<8xf32>
    %3 = vector.multi_reduction <add>, %2, %cst [1] : vector<8x32xf32> to vector<8xf32>
    %4 = vector.shape_cast %3 : vector<8xf32> to vector<8x1xf32>
    %cst_2 = arith.constant 3.200000e+01 : f32
    %5 = vector.broadcast %cst_2 : f32 to vector<8x1xf32>
    %6 = arith.divf %4, %5 : vector<8x1xf32>
    %cst_3 = arith.constant 9.99999974E-6 : f32
    %7 = vector.broadcast %cst_3 : f32 to vector<8x1xf32>
    %8 = arith.addf %6, %7 : vector<8x1xf32>
    %9 = math.rsqrt %8 : vector<8x1xf32>
    %10 = vector.broadcast %9 : vector<8x1xf32> to vector<8x32xf32>
    %11 = arith.mulf %1, %10 : vector<8x32xf32>
    %c0_4 = arith.constant 0 : index
    %c0_5 = arith.constant 0 : index
    %12 = vector.load %arg4[%c0_4, %c0_5] : memref<1x32xf32, #tpu.memory_space<vmem>>, vector<1x32xf32>
    %13 = vector.broadcast %12 : vector<1x32xf32> to vector<8x32xf32>
    %14 = arith.mulf %11, %13 : vector<8x32xf32>
    %15 = arith.truncf %14 : vector<8x32xf32> to vector<8x32xbf16>
    %c0_6 = arith.constant 0 : index
    %c0_7 = arith.constant 0 : index
    %16 = vector.load %arg7[%c0_6, %c0_7] : memref<32x32xbf16, #tpu.memory_space<vmem>>, vector<32x32xbf16>
    %cst_8 = arith.constant dense<0.000000e+00> : vector<8x32xf32>
    %17 = tpu.matmul %15, %16, %cst_8 {dimension_numbers = #tpu.dot_dimension_numbers<[1], [0], [0], [1], [0, 0, 1, 1], [], []>} : vector<8x32xbf16>, vector<32x32xbf16>, vector<8x32xf32> -> vector<8x32xf32>
    %c0_9 = arith.constant 0 : index
    %c0_10 = arith.constant 0 : index
    %18 = vector.load %arg8[%c0_9, %c0_10] : memref<32x32xbf16, #tpu.memory_space<vmem>>, vector<32x32xbf16>
    %cst_11 = arith.constant dense<0.000000e+00> : vector<8x32xf32>
    %19 = tpu.matmul %15, %18, %cst_11 {dimension_numbers = #tpu.dot_dimension_numbers<[1], [0], [0], [1], [0, 0, 1, 1], [], []>} : vector<8x32xbf16>, vector<32x32xbf16>, vector<8x32xf32> -> vector<8x32xf32>
    %c0_12 = arith.constant 0 : index
    %c0_13 = arith.constant 0 : index
    %20 = vector.load %arg9[%c0_12, %c0_13] : memref<32x32xbf16, #tpu.memory_space<vmem>>, vector<32x32xbf16>
    %cst_14 = arith.constant dense<0.000000e+00> : vector<8x32xf32>
    %21 = tpu.matmul %15, %20, %cst_14 {dimension_numbers = #tpu.dot_dimension_numbers<[1], [0], [0], [1], [0, 0, 1, 1], [], []>} : vector<8x32xbf16>, vector<32x32xbf16>, vector<8x32xf32> -> vector<8x32xf32>
    %c0_15 = arith.constant 0 : index
    %c0_16 = arith.constant 0 : index
    %22 = vector.load %arg5[%c0_15, %c0_16] : memref<8x4xf32, #tpu.memory_space<vmem>>, vector<8x4xf32>
    %c0_17 = arith.constant 0 : index
    %c0_18 = arith.constant 0 : index
    %23 = vector.load %arg6[%c0_17, %c0_18] : memref<8x4xf32, #tpu.memory_space<vmem>>, vector<8x4xf32>
    %24 = vector.extract_strided_slice %17 {offsets = [0, 0], sizes = [8, 4], strides = [1, 1]} : vector<8x32xf32> to vector<8x4xf32>
    %25 = vector.extract_strided_slice %17 {offsets = [0, 4], sizes = [8, 4], strides = [1, 1]} : vector<8x32xf32> to vector<8x4xf32>
    %26 = vector.extract_strided_slice %19 {offsets = [0, 0], sizes = [8, 4], strides = [1, 1]} : vector<8x32xf32> to vector<8x4xf32>
    %27 = vector.extract_strided_slice %19 {offsets = [0, 4], sizes = [8, 4], strides = [1, 1]} : vector<8x32xf32> to vector<8x4xf32>
    %28 = arith.mulf %24, %22 : vector<8x4xf32>
    %29 = arith.mulf %25, %23 : vector<8x4xf32>
    %30 = arith.subf %28, %29 : vector<8x4xf32>
    %31 = arith.mulf %24, %23 : vector<8x4xf32>
    %32 = arith.mulf %25, %22 : vector<8x4xf32>
    %33 = arith.addf %31, %32 : vector<8x4xf32>
    %34 = tpu.concatenate %30, %33 in 1 : vector<8x4xf32>, vector<8x4xf32> -> vector<8x8xf32>
    %cst_19 = arith.constant 0.353553385 : f32
    %35 = vector.broadcast %cst_19 : f32 to vector<8x8xf32>
    %36 = arith.mulf %35, %34 : vector<8x8xf32>
    %37 = arith.truncf %36 : vector<8x8xf32> to vector<8x8xbf16>
    %c0_20 = arith.constant 0 : index
    %c0_21 = arith.constant 0 : index
    %c0_22 = arith.constant 0 : index
    %c0_23 = arith.constant 0 : index
    %38 = vector.load %arg10[%c0_20, %c0_21, %c0_22, %c0_23] : memref<1x4x8x8xbf16, #tpu.memory_space<vmem>>, vector<1x1x8x8xbf16>
    %39 = vector.shape_cast %38 : vector<1x1x8x8xbf16> to vector<8x8xbf16>
    %40 = vector.shape_cast %37 : vector<8x8xbf16> to vector<1x1x8x8xbf16>
    tpu.vector_store %arg10[%c0_20, %c0_21, %c0_22, %c0_23], %40 {strides = array<i32>} : memref<1x4x8x8xbf16, #tpu.memory_space<vmem>>, vector<1x1x8x8xbf16>,
    %41 = arith.mulf %26, %22 : vector<8x4xf32>
    %42 = arith.mulf %27, %23 : vector<8x4xf32>
    %43 = arith.subf %41, %42 : vector<8x4xf32>
    %44 = arith.mulf %26, %23 : vector<8x4xf32>
    %45 = arith.mulf %27, %22 : vector<8x4xf32>
    %46 = arith.addf %44, %45 : vector<8x4xf32>
    %47 = tpu.concatenate %43, %46 in 1 : vector<8x4xf32>, vector<8x4xf32> -> vector<8x8xf32>
    %48 = arith.truncf %47 : vector<8x8xf32> to vector<8x8xbf16>
    %c0_24 = arith.constant 0 : index
    %c0_25 = arith.constant 0 : index
    %c0_26 = arith.constant 0 : index
    %c0_27 = arith.constant 0 : index
    %49 = vector.load %arg11[%c0_24, %c0_25, %c0_26, %c0_27] : memref<1x4x8x8xbf16, #tpu.memory_space<vmem>>, vector<1x1x8x8xbf16>
    %50 = vector.shape_cast %49 : vector<1x1x8x8xbf16> to vector<8x8xbf16>
    %51 = vector.shape_cast %48 : vector<8x8xbf16> to vector<1x1x8x8xbf16>
    tpu.vector_store %arg11[%c0_24, %c0_25, %c0_26, %c0_27], %51 {strides = array<i32>} : memref<1x4x8x8xbf16, #tpu.memory_space<vmem>>, vector<1x1x8x8xbf16>,
    %52 = vector.extract_strided_slice %21 {offsets = [0, 0], sizes = [8, 8], strides = [1, 1]} : vector<8x32xf32> to vector<8x8xf32>
    %53 = arith.truncf %52 : vector<8x8xf32> to vector<8x8xbf16>
    %c0_28 = arith.constant 0 : index
    %c0_29 = arith.constant 0 : index
    %c0_30 = arith.constant 0 : index
    %c0_31 = arith.constant 0 : index
    %54 = vector.load %arg12[%c0_28, %c0_29, %c0_30, %c0_31] : memref<1x4x8x8xbf16, #tpu.memory_space<vmem>>, vector<1x1x8x8xbf16>
    %55 = vector.shape_cast %54 : vector<1x1x8x8xbf16> to vector<8x8xbf16>
    %56 = vector.shape_cast %53 : vector<8x8xbf16> to vector<1x1x8x8xbf16>
    tpu.vector_store %arg12[%c0_28, %c0_29, %c0_30, %c0_31], %56 {strides = array<i32>} : memref<1x4x8x8xbf16, #tpu.memory_space<vmem>>, vector<1x1x8x8xbf16>,
    %57 = vector.extract_strided_slice %17 {offsets = [0, 8], sizes = [8, 4], strides = [1, 1]} : vector<8x32xf32> to vector<8x4xf32>
    %58 = vector.extract_strided_slice %17 {offsets = [0, 12], sizes = [8, 4], strides = [1, 1]} : vector<8x32xf32> to vector<8x4xf32>
    %59 = vector.extract_strided_slice %19 {offsets = [0, 8], sizes = [8, 4], strides = [1, 1]} : vector<8x32xf32> to vector<8x4xf32>
    %60 = vector.extract_strided_slice %19 {offsets = [0, 12], sizes = [8, 4], strides = [1, 1]} : vector<8x32xf32> to vector<8x4xf32>
    %61 = arith.mulf %57, %22 : vector<8x4xf32>
    %62 = arith.mulf %58, %23 : vector<8x4xf32>
    %63 = arith.subf %61, %62 : vector<8x4xf32>
    %64 = arith.mulf %57, %23 : vector<8x4xf32>
    %65 = arith.mulf %58, %22 : vector<8x4xf32>
    %66 = arith.addf %64, %65 : vector<8x4xf32>
    %67 = tpu.concatenate %63, %66 in 1 : vector<8x4xf32>, vector<8x4xf32> -> vector<8x8xf32>
    %cst_32 = arith.constant 0.353553385 : f32
    %68 = vector.broadcast %cst_32 : f32 to vector<8x8xf32>
    %69 = arith.mulf %68, %67 : vector<8x8xf32>
    %70 = arith.truncf %69 : vector<8x8xf32> to vector<8x8xbf16>
    %c0_33 = arith.constant 0 : index
    %c1 = arith.constant 1 : index
    %c0_34 = arith.constant 0 : index
    %c0_35 = arith.constant 0 : index
    %71 = vector.load %arg10[%c0_33, %c1, %c0_34, %c0_35] : memref<1x4x8x8xbf16, #tpu.memory_space<vmem>>, vector<1x1x8x8xbf16>
    %72 = vector.shape_cast %71 : vector<1x1x8x8xbf16> to vector<8x8xbf16>
    %73 = vector.shape_cast %70 : vector<8x8xbf16> to vector<1x1x8x8xbf16>
    tpu.vector_store %arg10[%c0_33, %c1, %c0_34, %c0_35], %73 {strides = array<i32>} : memref<1x4x8x8xbf16, #tpu.memory_space<vmem>>, vector<1x1x8x8xbf16>,
    %74 = arith.mulf %59, %22 : vector<8x4xf32>
    %75 = arith.mulf %60, %23 : vector<8x4xf32>
    %76 = arith.subf %74, %75 : vector<8x4xf32>
    %77 = arith.mulf %59, %23 : vector<8x4xf32>
    %78 = arith.mulf %60, %22 : vector<8x4xf32>
    %79 = arith.addf %77, %78 : vector<8x4xf32>
    %80 = tpu.concatenate %76, %79 in 1 : vector<8x4xf32>, vector<8x4xf32> -> vector<8x8xf32>
    %81 = arith.truncf %80 : vector<8x8xf32> to vector<8x8xbf16>
    %c0_36 = arith.constant 0 : index
    %c1_37 = arith.constant 1 : index
    %c0_38 = arith.constant 0 : index
    %c0_39 = arith.constant 0 : index
    %82 = vector.load %arg11[%c0_36, %c1_37, %c0_38, %c0_39] : memref<1x4x8x8xbf16, #tpu.memory_space<vmem>>, vector<1x1x8x8xbf16>
    %83 = vector.shape_cast %82 : vector<1x1x8x8xbf16> to vector<8x8xbf16>
    %84 = vector.shape_cast %81 : vector<8x8xbf16> to vector<1x1x8x8xbf16>
    tpu.vector_store %arg11[%c0_36, %c1_37, %c0_38, %c0_39], %84 {strides = array<i32>} : memref<1x4x8x8xbf16, #tpu.memory_space<vmem>>, vector<1x1x8x8xbf16>,
    %85 = vector.extract_strided_slice %21 {offsets = [0, 8], sizes = [8, 8], strides = [1, 1]} : vector<8x32xf32> to vector<8x8xf32>
    %86 = arith.truncf %85 : vector<8x8xf32> to vector<8x8xbf16>
    %c0_40 = arith.constant 0 : index
    %c1_41 = arith.constant 1 : index
    %c0_42 = arith.constant 0 : index
    %c0_43 = arith.constant 0 : index
    %87 = vector.load %arg12[%c0_40, %c1_41, %c0_42, %c0_43] : memref<1x4x8x8xbf16, #tpu.memory_space<vmem>>, vector<1x1x8x8xbf16>
    %88 = vector.shape_cast %87 : vector<1x1x8x8xbf16> to vector<8x8xbf16>
    %89 = vector.shape_cast %86 : vector<8x8xbf16> to vector<1x1x8x8xbf16>
    tpu.vector_store %arg12[%c0_40, %c1_41, %c0_42, %c0_43], %89 {strides = array<i32>} : memref<1x4x8x8xbf16, #tpu.memory_space<vmem>>, vector<1x1x8x8xbf16>,
    %90 = vector.extract_strided_slice %17 {offsets = [0, 16], sizes = [8, 4], strides = [1, 1]} : vector<8x32xf32> to vector<8x4xf32>
    %91 = vector.extract_strided_slice %17 {offsets = [0, 20], sizes = [8, 4], strides = [1, 1]} : vector<8x32xf32> to vector<8x4xf32>
    %92 = vector.extract_strided_slice %19 {offsets = [0, 16], sizes = [8, 4], strides = [1, 1]} : vector<8x32xf32> to vector<8x4xf32>
    %93 = vector.extract_strided_slice %19 {offsets = [0, 20], sizes = [8, 4], strides = [1, 1]} : vector<8x32xf32> to vector<8x4xf32>
    %94 = arith.mulf %90, %22 : vector<8x4xf32>
    %95 = arith.mulf %91, %23 : vector<8x4xf32>
    %96 = arith.subf %94, %95 : vector<8x4xf32>
    %97 = arith.mulf %90, %23 : vector<8x4xf32>
    %98 = arith.mulf %91, %22 : vector<8x4xf32>
    %99 = arith.addf %97, %98 : vector<8x4xf32>
    %100 = tpu.concatenate %96, %99 in 1 : vector<8x4xf32>, vector<8x4xf32> -> vector<8x8xf32>
    %cst_44 = arith.constant 0.353553385 : f32
    %101 = vector.broadcast %cst_44 : f32 to vector<8x8xf32>
    %102 = arith.mulf %101, %100 : vector<8x8xf32>
    %103 = arith.truncf %102 : vector<8x8xf32> to vector<8x8xbf16>
    %c0_45 = arith.constant 0 : index
    %c2 = arith.constant 2 : index
    %c0_46 = arith.constant 0 : index
    %c0_47 = arith.constant 0 : index
    %104 = vector.load %arg10[%c0_45, %c2, %c0_46, %c0_47] : memref<1x4x8x8xbf16, #tpu.memory_space<vmem>>, vector<1x1x8x8xbf16>
    %105 = vector.shape_cast %104 : vector<1x1x8x8xbf16> to vector<8x8xbf16>
    %106 = vector.shape_cast %103 : vector<8x8xbf16> to vector<1x1x8x8xbf16>
    tpu.vector_store %arg10[%c0_45, %c2, %c0_46, %c0_47], %106 {strides = array<i32>} : memref<1x4x8x8xbf16, #tpu.memory_space<vmem>>, vector<1x1x8x8xbf16>,
    %107 = arith.mulf %92, %22 : vector<8x4xf32>
    %108 = arith.mulf %93, %23 : vector<8x4xf32>
    %109 = arith.subf %107, %108 : vector<8x4xf32>
    %110 = arith.mulf %92, %23 : vector<8x4xf32>
    %111 = arith.mulf %93, %22 : vector<8x4xf32>
    %112 = arith.addf %110, %111 : vector<8x4xf32>
    %113 = tpu.concatenate %109, %112 in 1 : vector<8x4xf32>, vector<8x4xf32> -> vector<8x8xf32>
    %114 = arith.truncf %113 : vector<8x8xf32> to vector<8x8xbf16>
    %c0_48 = arith.constant 0 : index
    %c2_49 = arith.constant 2 : index
    %c0_50 = arith.constant 0 : index
    %c0_51 = arith.constant 0 : index
    %115 = vector.load %arg11[%c0_48, %c2_49, %c0_50, %c0_51] : memref<1x4x8x8xbf16, #tpu.memory_space<vmem>>, vector<1x1x8x8xbf16>
    %116 = vector.shape_cast %115 : vector<1x1x8x8xbf16> to vector<8x8xbf16>
    %117 = vector.shape_cast %114 : vector<8x8xbf16> to vector<1x1x8x8xbf16>
    tpu.vector_store %arg11[%c0_48, %c2_49, %c0_50, %c0_51], %117 {strides = array<i32>} : memref<1x4x8x8xbf16, #tpu.memory_space<vmem>>, vector<1x1x8x8xbf16>,
    %118 = vector.extract_strided_slice %21 {offsets = [0, 16], sizes = [8, 8], strides = [1, 1]} : vector<8x32xf32> to vector<8x8xf32>
    %119 = arith.truncf %118 : vector<8x8xf32> to vector<8x8xbf16>
    %c0_52 = arith.constant 0 : index
    %c2_53 = arith.constant 2 : index
    %c0_54 = arith.constant 0 : index
    %c0_55 = arith.constant 0 : index
    %120 = vector.load %arg12[%c0_52, %c2_53, %c0_54, %c0_55] : memref<1x4x8x8xbf16, #tpu.memory_space<vmem>>, vector<1x1x8x8xbf16>
    %121 = vector.shape_cast %120 : vector<1x1x8x8xbf16> to vector<8x8xbf16>
    %122 = vector.shape_cast %119 : vector<8x8xbf16> to vector<1x1x8x8xbf16>
    tpu.vector_store %arg12[%c0_52, %c2_53, %c0_54, %c0_55], %122 {strides = array<i32>} : memref<1x4x8x8xbf16, #tpu.memory_space<vmem>>, vector<1x1x8x8xbf16>,
    %123 = vector.extract_strided_slice %17 {offsets = [0, 24], sizes = [8, 4], strides = [1, 1]} : vector<8x32xf32> to vector<8x4xf32>
    %124 = vector.extract_strided_slice %17 {offsets = [0, 28], sizes = [8, 4], strides = [1, 1]} : vector<8x32xf32> to vector<8x4xf32>
    %125 = vector.extract_strided_slice %19 {offsets = [0, 24], sizes = [8, 4], strides = [1, 1]} : vector<8x32xf32> to vector<8x4xf32>
    %126 = vector.extract_strided_slice %19 {offsets = [0, 28], sizes = [8, 4], strides = [1, 1]} : vector<8x32xf32> to vector<8x4xf32>
    %127 = arith.mulf %123, %22 : vector<8x4xf32>
    %128 = arith.mulf %124, %23 : vector<8x4xf32>
    %129 = arith.subf %127, %128 : vector<8x4xf32>
    %130 = arith.mulf %123, %23 : vector<8x4xf32>
    %131 = arith.mulf %124, %22 : vector<8x4xf32>
    %132 = arith.addf %130, %131 : vector<8x4xf32>
    %133 = tpu.concatenate %129, %132 in 1 : vector<8x4xf32>, vector<8x4xf32> -> vector<8x8xf32>
    %cst_56 = arith.constant 0.353553385 : f32
    %134 = vector.broadcast %cst_56 : f32 to vector<8x8xf32>
    %135 = arith.mulf %134, %133 : vector<8x8xf32>
    %136 = arith.truncf %135 : vector<8x8xf32> to vector<8x8xbf16>
    %c0_57 = arith.constant 0 : index
    %c3 = arith.constant 3 : index
    %c0_58 = arith.constant 0 : index
    %c0_59 = arith.constant 0 : index
    %137 = vector.load %arg10[%c0_57, %c3, %c0_58, %c0_59] : memref<1x4x8x8xbf16, #tpu.memory_space<vmem>>, vector<1x1x8x8xbf16>
    %138 = vector.shape_cast %137 : vector<1x1x8x8xbf16> to vector<8x8xbf16>
    %139 = vector.shape_cast %136 : vector<8x8xbf16> to vector<1x1x8x8xbf16>
    tpu.vector_store %arg10[%c0_57, %c3, %c0_58, %c0_59], %139 {strides = array<i32>} : memref<1x4x8x8xbf16, #tpu.memory_space<vmem>>, vector<1x1x8x8xbf16>,
    %140 = arith.mulf %125, %22 : vector<8x4xf32>
    %141 = arith.mulf %126, %23 : vector<8x4xf32>
    %142 = arith.subf %140, %141 : vector<8x4xf32>
    %143 = arith.mulf %125, %23 : vector<8x4xf32>
    %144 = arith.mulf %126, %22 : vector<8x4xf32>
    %145 = arith.addf %143, %144 : vector<8x4xf32>
    %146 = tpu.concatenate %142, %145 in 1 : vector<8x4xf32>, vector<8x4xf32> -> vector<8x8xf32>
    %147 = arith.truncf %146 : vector<8x8xf32> to vector<8x8xbf16>
    %c0_60 = arith.constant 0 : index
    %c3_61 = arith.constant 3 : index
    %c0_62 = arith.constant 0 : index
    %c0_63 = arith.constant 0 : index
    %148 = vector.load %arg11[%c0_60, %c3_61, %c0_62, %c0_63] : memref<1x4x8x8xbf16, #tpu.memory_space<vmem>>, vector<1x1x8x8xbf16>
    %149 = vector.shape_cast %148 : vector<1x1x8x8xbf16> to vector<8x8xbf16>
    %150 = vector.shape_cast %147 : vector<8x8xbf16> to vector<1x1x8x8xbf16>
    tpu.vector_store %arg11[%c0_60, %c3_61, %c0_62, %c0_63], %150 {strides = array<i32>} : memref<1x4x8x8xbf16, #tpu.memory_space<vmem>>, vector<1x1x8x8xbf16>,
    %151 = vector.extract_strided_slice %21 {offsets = [0, 24], sizes = [8, 8], strides = [1, 1]} : vector<8x32xf32> to vector<8x8xf32>
    %152 = arith.truncf %151 : vector<8x8xf32> to vector<8x8xbf16>
    %c0_64 = arith.constant 0 : index
    %c3_65 = arith.constant 3 : index
    %c0_66 = arith.constant 0 : index
    %c0_67 = arith.constant 0 : index
    %153 = vector.load %arg12[%c0_64, %c3_65, %c0_66, %c0_67] : memref<1x4x8x8xbf16, #tpu.memory_space<vmem>>, vector<1x1x8x8xbf16>
    %154 = vector.shape_cast %153 : vector<1x1x8x8xbf16> to vector<8x8xbf16>
    %155 = vector.shape_cast %152 : vector<8x8xbf16> to vector<1x1x8x8xbf16>
    tpu.vector_store %arg12[%c0_64, %c3_65, %c0_66, %c0_67], %155 {strides = array<i32>} : memref<1x4x8x8xbf16, #tpu.memory_space<vmem>>, vector<1x1x8x8xbf16>,
    return
  }
  func.func @transform_0(%arg0: i32, %arg1: i32, %arg2: i32) -> (i32, i32, i32) {
    %c0_i32 = arith.constant 0 : i32
    %c0_i32_0 = arith.constant 0 : i32
    return %arg0, %arg1, %c0_i32 : i32, i32, i32
  }
  func.func @transform_1(%arg0: i32, %arg1: i32, %arg2: i32) -> (i32, i32) {
    %c0_i32 = arith.constant 0 : i32
    %c0_i32_0 = arith.constant 0 : i32
    %c0_i32_1 = arith.constant 0 : i32
    return %c0_i32, %c0_i32_0 : i32, i32
  }
  func.func @transform_2(%arg0: i32, %arg1: i32, %arg2: i32) -> (i32, i32) {
    %c0_i32 = arith.constant 0 : i32
    %c0_i32_0 = arith.constant 0 : i32
    return %arg1, %c0_i32 : i32, i32
  }
  func.func @transform_3(%arg0: i32, %arg1: i32, %arg2: i32) -> (i32, i32) {
    %c0_i32 = arith.constant 0 : i32
    %c0_i32_0 = arith.constant 0 : i32
    return %arg1, %c0_i32 : i32, i32
  }
  func.func @transform_4(%arg0: i32, %arg1: i32, %arg2: i32) -> (i32, i32) {
    %c0_i32 = arith.constant 0 : i32
    %c0_i32_0 = arith.constant 0 : i32
    return %c0_i32, %arg2 : i32, i32
  }
  func.func @transform_5(%arg0: i32, %arg1: i32, %arg2: i32) -> (i32, i32) {
    %c0_i32 = arith.constant 0 : i32
    %c0_i32_0 = arith.constant 0 : i32
    return %c0_i32, %arg2 : i32, i32
  }
  func.func @transform_6(%arg0: i32, %arg1: i32, %arg2: i32) -> (i32, i32) {
    %c0_i32 = arith.constant 0 : i32
    %c0_i32_0 = arith.constant 0 : i32
    return %c0_i32, %arg2 : i32, i32
  }
  func.func @transform_7(%arg0: i32, %arg1: i32, %arg2: i32) -> (i32, i32, i32, i32) {
    %c0_i32 = arith.constant 0 : i32
    %c0_i32_0 = arith.constant 0 : i32
    return %arg0, %arg2, %arg1, %c0_i32 : i32, i32, i32, i32
  }
  func.func @transform_8(%arg0: i32, %arg1: i32, %arg2: i32) -> (i32, i32, i32, i32) {
    %c0_i32 = arith.constant 0 : i32
    %c0_i32_0 = arith.constant 0 : i32
    return %arg0, %arg2, %arg1, %c0_i32 : i32, i32, i32, i32
  }
  func.func @transform_9(%arg0: i32, %arg1: i32, %arg2: i32) -> (i32, i32, i32, i32) {
    %c0_i32 = arith.constant 0 : i32
    %c0_i32_0 = arith.constant 0 : i32
    return %arg0, %arg2, %arg1, %c0_i32 : i32, i32, i32, i32
  }
}

module attributes {stable_mosaic.version = 11 : i64} {
  func.func @kernel(%arg0: i32, %arg1: i32, %arg2: i32, %arg3: memref<1x8x32xf32, #tpu.memory_space<vmem>>, %arg4: memref<1x32xf32, #tpu.memory_space<vmem>>, %arg5: memref<32x96xbf16, #tpu.memory_space<vmem>>, %arg6: memref<32x96xbf16, #tpu.memory_space<vmem>>, %arg7: memref<1x8x96xbf16, #tpu.memory_space<vmem>>) attributes {dimension_semantics = [#tpu.dimension_semantics<parallel>, #tpu.dimension_semantics<parallel>, #tpu.dimension_semantics<parallel>], iteration_bounds = array<i64: 2, 1, 1>, scalar_prefetch = 0 : i64, scratch_operands = 0 : i64, tpu.core_type = #tpu.core_type<tc>, window_params = [{transform_indices = @transform_0, window_bounds = array<i64: 1, 8, 32>}, {pipeline_mode = #tpu.pipeline_mode<synchronous>, transform_indices = @transform_1, window_bounds = array<i64: 1, 32>}, {transform_indices = @transform_2, window_bounds = array<i64: 32, 96>}, {transform_indices = @transform_3, window_bounds = array<i64: 32, 96>}, {transform_indices = @transform_4, window_bounds = array<i64: 1, 8, 96>}]} {
    %c0 = arith.constant 0 : index
    %c0_0 = arith.constant 0 : index
    %c0_1 = arith.constant 0 : index
    %0 = vector.load %arg3[%c0, %c0_0, %c0_1] : memref<1x8x32xf32, #tpu.memory_space<vmem>>, vector<1x8x32xf32>
    %1 = vector.shape_cast %0 : vector<1x8x32xf32> to vector<8x32xf32>
    %2 = arith.mulf %1, %1 : vector<8x32xf32>
    %cst = arith.constant dense<0.000000e+00> : vector<8xf32>
    %3 = vector.multi_reduction <add>, %2, %cst [1] : vector<8x32xf32> to vector<8xf32>
    %4 = vector.shape_cast %3 : vector<8xf32> to vector<8x1xf32>
    %cst_2 = arith.constant 3.200000e+01 : f32
    %5 = vector.broadcast %cst_2 : f32 to vector<8x1xf32>
    %6 = arith.divf %4, %5 : vector<8x1xf32>
    %cst_3 = arith.constant 9.99999974E-6 : f32
    %7 = vector.broadcast %cst_3 : f32 to vector<8x1xf32>
    %8 = arith.addf %6, %7 : vector<8x1xf32>
    %9 = math.rsqrt %8 : vector<8x1xf32>
    %10 = vector.broadcast %9 : vector<8x1xf32> to vector<8x32xf32>
    %11 = arith.mulf %1, %10 : vector<8x32xf32>
    %c0_4 = arith.constant 0 : index
    %c0_5 = arith.constant 0 : index
    %12 = vector.load %arg4[%c0_4, %c0_5] : memref<1x32xf32, #tpu.memory_space<vmem>>, vector<1x32xf32>
    %13 = vector.broadcast %12 : vector<1x32xf32> to vector<8x32xf32>
    %14 = arith.mulf %11, %13 : vector<8x32xf32>
    %15 = arith.truncf %14 : vector<8x32xf32> to vector<8x32xbf16>
    %c0_6 = arith.constant 0 : index
    %c0_7 = arith.constant 0 : index
    %16 = vector.load %arg5[%c0_6, %c0_7] : memref<32x96xbf16, #tpu.memory_space<vmem>>, vector<32x96xbf16>
    %cst_8 = arith.constant dense<0.000000e+00> : vector<8x96xf32>
    %17 = tpu.matmul %15, %16, %cst_8 {dimension_numbers = #tpu.dot_dimension_numbers<[1], [0], [0], [1], [0, 0, 1, 1], [], []>} : vector<8x32xbf16>, vector<32x96xbf16>, vector<8x96xf32> -> vector<8x96xf32>
    %c0_9 = arith.constant 0 : index
    %c0_10 = arith.constant 0 : index
    %18 = vector.load %arg6[%c0_9, %c0_10] : memref<32x96xbf16, #tpu.memory_space<vmem>>, vector<32x96xbf16>
    %cst_11 = arith.constant dense<0.000000e+00> : vector<8x96xf32>
    %19 = tpu.matmul %15, %18, %cst_11 {dimension_numbers = #tpu.dot_dimension_numbers<[1], [0], [0], [1], [0, 0, 1, 1], [], []>} : vector<8x32xbf16>, vector<32x96xbf16>, vector<8x96xf32> -> vector<8x96xf32>
    %20 = arith.negf %17 : vector<8x96xf32>
    %21 = math.exp %20 : vector<8x96xf32>
    %cst_12 = arith.constant 1.000000e+00 : f32
    %22 = vector.broadcast %cst_12 : f32 to vector<8x96xf32>
    %23 = arith.addf %22, %21 : vector<8x96xf32>
    %24 = arith.divf %22, %23 : vector<8x96xf32>
    %25 = arith.mulf %17, %24 : vector<8x96xf32>
    %26 = arith.mulf %25, %19 : vector<8x96xf32>
    %27 = arith.truncf %26 : vector<8x96xf32> to vector<8x96xbf16>
    %c0_13 = arith.constant 0 : index
    %c0_14 = arith.constant 0 : index
    %c0_15 = arith.constant 0 : index
    %28 = vector.load %arg7[%c0_13, %c0_14, %c0_15] : memref<1x8x96xbf16, #tpu.memory_space<vmem>>, vector<1x8x96xbf16>
    %29 = vector.shape_cast %28 : vector<1x8x96xbf16> to vector<8x96xbf16>
    %30 = vector.shape_cast %27 : vector<8x96xbf16> to vector<1x8x96xbf16>
    tpu.vector_store %arg7[%c0_13, %c0_14, %c0_15], %30 {strides = array<i32>} : memref<1x8x96xbf16, #tpu.memory_space<vmem>>, vector<1x8x96xbf16>,
    return
  }
  func.func @transform_0(%arg0: i32, %arg1: i32, %arg2: i32) -> (i32, i32, i32) {
    %c0_i32 = arith.constant 0 : i32
    %c0_i32_0 = arith.constant 0 : i32
    return %arg0, %arg1, %c0_i32 : i32, i32, i32
  }
  func.func @transform_1(%arg0: i32, %arg1: i32, %arg2: i32) -> (i32, i32) {
    %c0_i32 = arith.constant 0 : i32
    %c0_i32_0 = arith.constant 0 : i32
    %c0_i32_1 = arith.constant 0 : i32
    return %c0_i32, %c0_i32_0 : i32, i32
  }
  func.func @transform_2(%arg0: i32, %arg1: i32, %arg2: i32) -> (i32, i32) {
    %c0_i32 = arith.constant 0 : i32
    %c0_i32_0 = arith.constant 0 : i32
    return %c0_i32, %arg2 : i32, i32
  }
  func.func @transform_3(%arg0: i32, %arg1: i32, %arg2: i32) -> (i32, i32) {
    %c0_i32 = arith.constant 0 : i32
    %c0_i32_0 = arith.constant 0 : i32
    return %c0_i32, %arg2 : i32, i32
  }
  func.func @transform_4(%arg0: i32, %arg1: i32, %arg2: i32) -> (i32, i32, i32) {
    %c0_i32 = arith.constant 0 : i32
    return %arg0, %arg1, %arg2 : i32, i32, i32
  }
}

module attributes {stable_mosaic.version = 11 : i64} {
  func.func @ffn_out_kernel(%arg0: i32, %arg1: i32, %arg2: i32, %arg3: i32, %arg4: memref<1x8x96xbf16, #tpu.memory_space<vmem>>, %arg5: memref<96x32xbf16, #tpu.memory_space<vmem>>, %arg6: memref<1x8x32xf32, #tpu.memory_space<vmem>>, %arg7: memref<1x8x32xf32, #tpu.memory_space<vmem>>, %arg8: memref<8x32xf32, #tpu.memory_space<vmem>>) attributes {dimension_semantics = [#tpu.dimension_semantics<parallel>, #tpu.dimension_semantics<parallel>, #tpu.dimension_semantics<parallel>, #tpu.dimension_semantics<arbitrary>], iteration_bounds = array<i64: 2, 1, 1, 1>, scalar_prefetch = 0 : i64, scratch_operands = 1 : i64, tpu.core_type = #tpu.core_type<tc>, window_params = [{transform_indices = @transform_0, window_bounds = array<i64: 1, 8, 96>}, {transform_indices = @transform_1, window_bounds = array<i64: 96, 32>}, {transform_indices = @transform_2, window_bounds = array<i64: 1, 8, 32>}, {transform_indices = @transform_3, window_bounds = array<i64: 1, 8, 32>}]} {
    %c0_i32 = arith.constant 0 : i32
    %0 = arith.cmpi eq, %arg3, %c0_i32 : i32
    %1 = arith.extui %0 : i1 to i32
    %c0_i32_0 = arith.constant 0 : i32
    %2 = arith.cmpi ne, %1, %c0_i32_0 : i32
    scf.if %2 {
      %cst_11 = arith.constant 0.000000e+00 : f32
      %13 = vector.broadcast %cst_11 : f32 to vector<8x32xf32>
      %c0_12 = arith.constant 0 : index
      %c0_13 = arith.constant 0 : index
      %14 = vector.load %arg8[%c0_12, %c0_13] : memref<8x32xf32, #tpu.memory_space<vmem>>, vector<8x32xf32>
      tpu.vector_store %arg8[%c0_12, %c0_13], %13 {strides = array<i32>} : memref<8x32xf32, #tpu.memory_space<vmem>>, vector<8x32xf32>,
    } else {
    }
    %c0 = arith.constant 0 : index
    %c0_1 = arith.constant 0 : index
    %3 = vector.load %arg8[%c0, %c0_1] : memref<8x32xf32, #tpu.memory_space<vmem>>, vector<8x32xf32>
    %c0_2 = arith.constant 0 : index
    %c0_3 = arith.constant 0 : index
    %c0_4 = arith.constant 0 : index
    %4 = vector.load %arg4[%c0_2, %c0_3, %c0_4] : memref<1x8x96xbf16, #tpu.memory_space<vmem>>, vector<1x8x96xbf16>
    %5 = vector.shape_cast %4 : vector<1x8x96xbf16> to vector<8x96xbf16>
    %c0_5 = arith.constant 0 : index
    %c0_6 = arith.constant 0 : index
    %6 = vector.load %arg5[%c0_5, %c0_6] : memref<96x32xbf16, #tpu.memory_space<vmem>>, vector<96x32xbf16>
    %cst = arith.constant dense<0.000000e+00> : vector<8x32xf32>
    %7 = tpu.matmul %5, %6, %cst {dimension_numbers = #tpu.dot_dimension_numbers<[1], [0], [0], [1], [0, 0, 1, 1], [], []>} : vector<8x96xbf16>, vector<96x32xbf16>, vector<8x32xf32> -> vector<8x32xf32>
    %8 = arith.addf %3, %7 : vector<8x32xf32>
    %c0_7 = arith.constant 0 : index
    %c0_8 = arith.constant 0 : index
    %9 = vector.load %arg8[%c0_7, %c0_8] : memref<8x32xf32, #tpu.memory_space<vmem>>, vector<8x32xf32>
    tpu.vector_store %arg8[%c0_7, %c0_8], %8 {strides = array<i32>} : memref<8x32xf32, #tpu.memory_space<vmem>>, vector<8x32xf32>,
    %c0_i32_9 = arith.constant 0 : i32
    %10 = arith.cmpi eq, %arg3, %c0_i32_9 : i32
    %11 = arith.extui %10 : i1 to i32
    %c0_i32_10 = arith.constant 0 : i32
    %12 = arith.cmpi ne, %11, %c0_i32_10 : i32
    scf.if %12 {
      %c0_11 = arith.constant 0 : index
      %c0_12 = arith.constant 0 : index
      %c0_13 = arith.constant 0 : index
      %13 = vector.load %arg6[%c0_11, %c0_12, %c0_13] : memref<1x8x32xf32, #tpu.memory_space<vmem>>, vector<1x8x32xf32>
      %14 = vector.shape_cast %13 : vector<1x8x32xf32> to vector<8x32xf32>
      %c0_14 = arith.constant 0 : index
      %c0_15 = arith.constant 0 : index
      %15 = vector.load %arg8[%c0_14, %c0_15] : memref<8x32xf32, #tpu.memory_space<vmem>>, vector<8x32xf32>
      %16 = arith.addf %14, %15 : vector<8x32xf32>
      %c0_16 = arith.constant 0 : index
      %c0_17 = arith.constant 0 : index
      %c0_18 = arith.constant 0 : index
      %17 = vector.load %arg7[%c0_16, %c0_17, %c0_18] : memref<1x8x32xf32, #tpu.memory_space<vmem>>, vector<1x8x32xf32>
      %18 = vector.shape_cast %17 : vector<1x8x32xf32> to vector<8x32xf32>
      %19 = vector.shape_cast %16 : vector<8x32xf32> to vector<1x8x32xf32>
      tpu.vector_store %arg7[%c0_16, %c0_17, %c0_18], %19 {strides = array<i32>} : memref<1x8x32xf32, #tpu.memory_space<vmem>>, vector<1x8x32xf32>,
    } else {
    }
    return
  }
  func.func @transform_0(%arg0: i32, %arg1: i32, %arg2: i32, %arg3: i32) -> (i32, i32, i32) {
    %c0_i32 = arith.constant 0 : i32
    return %arg0, %arg1, %arg3 : i32, i32, i32
  }
  func.func @transform_1(%arg0: i32, %arg1: i32, %arg2: i32, %arg3: i32) -> (i32, i32) {
    %c0_i32 = arith.constant 0 : i32
    return %arg3, %arg2 : i32, i32
  }
  func.func @transform_2(%arg0: i32, %arg1: i32, %arg2: i32, %arg3: i32) -> (i32, i32, i32) {
    %c0_i32 = arith.constant 0 : i32
    return %arg0, %arg1, %arg2 : i32, i32, i32
  }
  func.func @transform_3(%arg0: i32, %arg1: i32, %arg2: i32, %arg3: i32) -> (i32, i32, i32) {
    %c0_i32 = arith.constant 0 : i32
    return %arg0, %arg1, %arg2 : i32, i32, i32
  }
}

module attributes {stable_mosaic.version = 11 : i64} {
  func.func @kernel(%arg0: i32, %arg1: memref<2x32xf32, #tpu.memory_space<vmem>>, %arg2: memref<1x32xf32, #tpu.memory_space<vmem>>, %arg3: memref<32x64xbf16, #tpu.memory_space<vmem>>, %arg4: memref<2x64xf32, #tpu.memory_space<vmem>>) attributes {dimension_semantics = [#tpu.dimension_semantics<parallel>], iteration_bounds = array<i64: 1>, scalar_prefetch = 0 : i64, scratch_operands = 0 : i64, tpu.core_type = #tpu.core_type<tc>, window_params = [{pipeline_mode = #tpu.pipeline_mode<synchronous>, transform_indices = @transform_0, window_bounds = array<i64: 2, 32>}, {pipeline_mode = #tpu.pipeline_mode<synchronous>, transform_indices = @transform_1, window_bounds = array<i64: 1, 32>}, {transform_indices = @transform_2, window_bounds = array<i64: 32, 64>}, {transform_indices = @transform_3, window_bounds = array<i64: 2, 64>}]} {
    %c0 = arith.constant 0 : index
    %c0_0 = arith.constant 0 : index
    %0 = vector.load %arg1[%c0, %c0_0] : memref<2x32xf32, #tpu.memory_space<vmem>>, vector<2x32xf32>
    %1 = arith.mulf %0, %0 : vector<2x32xf32>
    %cst = arith.constant dense<0.000000e+00> : vector<2xf32>
    %2 = vector.multi_reduction <add>, %1, %cst [1] : vector<2x32xf32> to vector<2xf32>
    %3 = vector.shape_cast %2 : vector<2xf32> to vector<2x1xf32>
    %cst_1 = arith.constant 3.200000e+01 : f32
    %4 = vector.broadcast %cst_1 : f32 to vector<2x1xf32>
    %5 = arith.divf %3, %4 : vector<2x1xf32>
    %cst_2 = arith.constant 9.99999974E-6 : f32
    %6 = vector.broadcast %cst_2 : f32 to vector<2x1xf32>
    %7 = arith.addf %5, %6 : vector<2x1xf32>
    %8 = math.rsqrt %7 : vector<2x1xf32>
    %9 = vector.broadcast %8 : vector<2x1xf32> to vector<2x32xf32>
    %10 = arith.mulf %0, %9 : vector<2x32xf32>
    %c0_3 = arith.constant 0 : index
    %c0_4 = arith.constant 0 : index
    %11 = vector.load %arg2[%c0_3, %c0_4] : memref<1x32xf32, #tpu.memory_space<vmem>>, vector<1x32xf32>
    %12 = vector.broadcast %11 : vector<1x32xf32> to vector<2x32xf32>
    %13 = arith.mulf %10, %12 : vector<2x32xf32>
    %14 = arith.truncf %13 : vector<2x32xf32> to vector<2x32xbf16>
    %c0_5 = arith.constant 0 : index
    %c0_6 = arith.constant 0 : index
    %15 = vector.load %arg3[%c0_5, %c0_6] : memref<32x64xbf16, #tpu.memory_space<vmem>>, vector<32x64xbf16>
    %cst_7 = arith.constant dense<0.000000e+00> : vector<2x64xf32>
    %16 = tpu.matmul %14, %15, %cst_7 {dimension_numbers = #tpu.dot_dimension_numbers<[1], [0], [0], [1], [0, 0, 1, 1], [], []>} : vector<2x32xbf16>, vector<32x64xbf16>, vector<2x64xf32> -> vector<2x64xf32>
    %c0_8 = arith.constant 0 : index
    %c0_9 = arith.constant 0 : index
    %17 = vector.load %arg4[%c0_8, %c0_9] : memref<2x64xf32, #tpu.memory_space<vmem>>, vector<2x64xf32>
    tpu.vector_store %arg4[%c0_8, %c0_9], %16 {strides = array<i32>} : memref<2x64xf32, #tpu.memory_space<vmem>>, vector<2x64xf32>,
    return
  }
  func.func @transform_0(%arg0: i32) -> (i32, i32) {
    %c0_i32 = arith.constant 0 : i32
    %c0_i32_0 = arith.constant 0 : i32
    %c0_i32_1 = arith.constant 0 : i32
    return %c0_i32, %c0_i32_0 : i32, i32
  }
  func.func @transform_1(%arg0: i32) -> (i32, i32) {
    %c0_i32 = arith.constant 0 : i32
    %c0_i32_0 = arith.constant 0 : i32
    %c0_i32_1 = arith.constant 0 : i32
    return %c0_i32, %c0_i32_0 : i32, i32
  }
  func.func @transform_2(%arg0: i32) -> (i32, i32) {
    %c0_i32 = arith.constant 0 : i32
    %c0_i32_0 = arith.constant 0 : i32
    return %c0_i32, %arg0 : i32, i32
  }
  func.func @transform_3(%arg0: i32) -> (i32, i32) {
    %c0_i32 = arith.constant 0 : i32
    %c0_i32_0 = arith.constant 0 : i32
    return %c0_i32, %arg0 : i32, i32
  }
}

</mosaic_0001>

<llo_original>
// kernel: transformer_forward.12
$region0: #{transformer_forward.12}
  #allocation0 [shape = 'u32[]', space=smem, size = 0x4, offset = 0x4, fixed_abs, tag = 'smem constant byte address 0x4 - core index']
  #allocation1 [shape = 'u32[144,128]{1,0:T(1,128)}', space=vmem, size = 0x12000, scoped, tag = 'internal scratch']
  %s0 = inlined_call_operand.vmem [shape: bf16[2,4,8,8], index: 0, kind: input, shape index: {}]
  %s1 = inlined_call_operand.vmem [shape: bf16[2,4,8,8], index: 1, kind: input, shape index: {}]
  %s2 = inlined_call_operand.vmem [shape: bf16[2,4,8,8], index: 2, kind: input, shape index: {}]
  %s3 = inlined_call_operand.vmem [shape: bf16[2,4,8,8], index: 3, kind: output, shape index: {}]
  %s4 = sld [smem:[#allocation0]]
  $region45: #{transformer_forward.12} parent=0
    _
  %s6 = ssub.s32 1, %s4
  %s7 = scalar_select 0, %s6, %s4
  loop: start=0, step=1, limit=10
  $region2: #{transformer_forward.12} parent=0 // loop_pre_header
    _
  $region3: #{transformer_forward.12} parent=0 // loop_header
    %s9 = sphi 0, %s13
    %p10 = scmp.ge.s32.totalorder %s9, 10
    %s16 = sphi 0, %s28
    %s17 = sphi 0, %s24
    %s18 = sphi 0, %s16
    %s19 = sphi 0, %s17
    %s20 = sphi 0, %s18
    %s21 = sphi 0, %s19
    %s33 = sphi 0, %s35
    %s36 = sphi 0, %s33
    %s37 = sphi 0, %s36
    %s53 = sphi 0, %s37
    %s61 = sphi 0, %s63
    %s64 = sphi 0, %s61
    %s65 = sphi 0, %s64
    %s81 = sphi 0, %s65
    %s89 = sphi 0, %s91
    %s92 = sphi 0, %s89
    %s93 = sphi 0, %s92
    %s109 = sphi 0, %s93
    %s117 = sphi 0, %s119
    %s120 = sphi 0, %s117
    %s121 = sphi 0, %s120
    %s137 = sphi 0, %s121
  $region4: #{transformer_forward.12} parent=0 // loop_header_branch
    %12 = sbr.rel (%p10) target = $region8
  $region5: #{transformer_forward.12} parent=0 // loop_body
    %s14 = ssub.s32 %s9, 1
    %s15 = ssub.s32 %s9, 2
    %s22 = sadd.s32 1, %s17
    %p23 = scmp.ge.s32.totalorder %s22, 4
    %s24 = scalar_select %p23, 0, %s22
    %s25 = sadd.s32 1, %s16
    %s26 = scalar_select %p23, %s25, %s16
    %p27 = scmp.ge.s32.totalorder %s26, 2
    %s28 = scalar_select %p27, 0, %s26
    %s29 = ssub.s32 %s16, %s28
    %s30 = ssub.s32 %s17, %s24
    %s31 = sor.u32 %s29, %s30
    %p32 = scmp.eq.s32.totalorder %s31, 0
    %s34 = sadd.s32 %s33, 1
    %s35 = scalar_select %p32, %s33, %s34
    %p38 = pneg %p32
    %p39 = scmp.eq.s32.totalorder %s9, 7
    %p40 = por %p38, %p39
    %p41 = scmp.ne.s32.totalorder %s33, %s36
    %p42 = scmp.eq.s32.totalorder %s9, 0
    %p43 = por %p41, %p42
    %p44 = scmp.ne.s32.totalorder %s33, %s36
    %p45 = scmp.eq.s32.totalorder %s14, 7
    %p46 = por %p44, %p45
    %p47 = scmp.ne.s32.totalorder %s36, %s37
    %p48 = scmp.eq.s32.totalorder %s14, 0
    %p49 = por %p47, %p48
    %p50 = scmp.ne.s32.totalorder %s36, %s37
    %p51 = scmp.eq.s32.totalorder %s15, 7
    %p52 = por %p50, %p51
    %p54 = scmp.ne.s32.totalorder %s37, %s53
    %p55 = scmp.eq.s32.totalorder %s15, 0
    %p56 = por %p54, %p55
    %s57 = ssub.s32 %s16, %s28
    %s58 = ssub.s32 %s17, %s24
    %s59 = sor.u32 %s57, %s58
    %p60 = scmp.eq.s32.totalorder %s59, 0
    %s62 = sadd.s32 %s61, 1
    %s63 = scalar_select %p60, %s61, %s62
    %p66 = pneg %p60
    %p67 = scmp.eq.s32.totalorder %s9, 7
    %p68 = por %p66, %p67
    %p69 = scmp.ne.s32.totalorder %s61, %s64
    %p70 = scmp.eq.s32.totalorder %s9, 0
    %p71 = por %p69, %p70
    %p72 = scmp.ne.s32.totalorder %s61, %s64
    %p73 = scmp.eq.s32.totalorder %s14, 7
    %p74 = por %p72, %p73
    %p75 = scmp.ne.s32.totalorder %s64, %s65
    %p76 = scmp.eq.s32.totalorder %s14, 0
    %p77 = por %p75, %p76
    %p78 = scmp.ne.s32.totalorder %s64, %s65
    %p79 = scmp.eq.s32.totalorder %s15, 7
    %p80 = por %p78, %p79
    %p82 = scmp.ne.s32.totalorder %s65, %s81
    %p83 = scmp.eq.s32.totalorder %s15, 0
    %p84 = por %p82, %p83
    %s85 = ssub.s32 %s16, %s28
    %s86 = ssub.s32 %s17, %s24
    %s87 = sor.u32 %s85, %s86
    %p88 = scmp.eq.s32.totalorder %s87, 0
    %s90 = sadd.s32 %s89, 1
    %s91 = scalar_select %p88, %s89, %s90
    %p94 = pneg %p88
    %p95 = scmp.eq.s32.totalorder %s9, 7
    %p96 = por %p94, %p95
    %p97 = scmp.ne.s32.totalorder %s89, %s92
    %p98 = scmp.eq.s32.totalorder %s9, 0
    %p99 = por %p97, %p98
    %p100 = scmp.ne.s32.totalorder %s89, %s92
    %p101 = scmp.eq.s32.totalorder %s14, 7
    %p102 = por %p100, %p101
    %p103 = scmp.ne.s32.totalorder %s92, %s93
    %p104 = scmp.eq.s32.totalorder %s14, 0
    %p105 = por %p103, %p104
    %p106 = scmp.ne.s32.totalorder %s92, %s93
    %p107 = scmp.eq.s32.totalorder %s15, 7
    %p108 = por %p106, %p107
    %p110 = scmp.ne.s32.totalorder %s93, %s109
    %p111 = scmp.eq.s32.totalorder %s15, 0
    %p112 = por %p110, %p111
    %s113 = ssub.s32 %s16, %s28
    %s114 = ssub.s32 %s17, %s24
    %s115 = sor.u32 %s113, %s114
    %p116 = scmp.eq.s32.totalorder %s115, 0
    %s118 = sadd.s32 %s117, 1
    %s119 = scalar_select %p116, %s117, %s118
    %p122 = pneg %p116
    %p123 = scmp.eq.s32.totalorder %s9, 7
    %p124 = por %p122, %p123
    %p125 = scmp.ne.s32.totalorder %s117, %s120
    %p126 = scmp.eq.s32.totalorder %s9, 0
    %p127 = por %p125, %p126
    %p128 = scmp.ne.s32.totalorder %s117, %s120
    %p129 = scmp.eq.s32.totalorder %s14, 7
    %p130 = por %p128, %p129
    %p131 = scmp.ne.s32.totalorder %s120, %s121
    %p132 = scmp.eq.s32.totalorder %s14, 0
    %p133 = por %p131, %p132
    %p134 = scmp.ne.s32.totalorder %s120, %s121
    %p135 = scmp.eq.s32.totalorder %s15, 7
    %p136 = por %p134, %p135
    %p138 = scmp.ne.s32.totalorder %s121, %s137
    %p139 = scmp.eq.s32.totalorder %s15, 0
    %p140 = por %p138, %p139
    %p141 = scmp.le.s32.totalorder 1, %s9
    %p142 = scmp.lt.s32.totalorder %s9, 9
    %p143 = pnand %p141, %p142
    %p144 = pneg %p143
    // Predicated region
    $region9: #{transformer_forward.12} parent=5 // pred_check
      _
    $region10: #{transformer_forward.12} parent=5 // pred_check_branch
      %146 = sbr.rel (%p143) target = $region12
    $region11: #{transformer_forward.12} parent=5 // pred_region
      %s147 = ssub.s32 %s9, 1
    $region12: #{transformer_forward.12} parent=5 // pred_fallthru
      _
    %p148 = scmp.lt.s32.totalorder %s9, 8
    // Predicated region
    $region13: #{transformer_forward.12} parent=5 // pred_check
      %p149 = pneg %p148
    $region14: #{transformer_forward.12} parent=5 // pred_check_branch
      %151 = sbr.rel (%p149) target = $region16
    $region15: #{transformer_forward.12} parent=5 // pred_region
      // Predicated region
      $region17: #{transformer_forward.12} parent=15 // pred_check
        %p152 = pneg %p43
      $region18: #{transformer_forward.12} parent=15 // pred_check_branch
        %154 = sbr.rel (%p152) target = $region20
      $region19: #{transformer_forward.12} parent=15 // pred_region
        %p155 = scmp.lt.s32.totalorder %s16, 1
        %s156 = scalar_select %p155, %s16, 1
        %p157 = scmp.lt.s32.totalorder %s17, 3
        %s158 = scalar_select %p157, %s17, 3
        %s159 = smul.addr %s156, 4
        %s160 = sadd.s32 %s158, %s159
        %s161 = smul.addr %s160, 4
        %s162 = scalar_lea.vmem %s0, %s161
      $region20: #{transformer_forward.12} parent=15 // pred_fallthru
        _
      // Predicated region
      $region21: #{transformer_forward.12} parent=15 // pred_check
        %p163 = pneg %p71
      $region22: #{transformer_forward.12} parent=15 // pred_check_branch
        %165 = sbr.rel (%p163) target = $region24
      $region23: #{transformer_forward.12} parent=15 // pred_region
        %p166 = scmp.lt.s32.totalorder %s16, 1
        %s167 = scalar_select %p166, %s16, 1
        %p168 = scmp.lt.s32.totalorder %s17, 3
        %s169 = scalar_select %p168, %s17, 3
        %s170 = smul.addr %s167, 4
        %s171 = sadd.s32 %s169, %s170
        %s172 = smul.addr %s171, 4
        %s173 = scalar_lea.vmem %s1, %s172
      $region24: #{transformer_forward.12} parent=15 // pred_fallthru
        _
      // Predicated region
      $region25: #{transformer_forward.12} parent=15 // pred_check
        %p174 = pneg %p99
      $region26: #{transformer_forward.12} parent=15 // pred_check_branch
        %176 = sbr.rel (%p174) target = $region28
      $region27: #{transformer_forward.12} parent=15 // pred_region
        %p177 = scmp.lt.s32.totalorder %s16, 1
        %s178 = scalar_select %p177, %s16, 1
        %p179 = scmp.lt.s32.totalorder %s17, 3
        %s180 = scalar_select %p179, %s17, 3
        %s181 = smul.addr %s178, 4
        %s182 = sadd.s32 %s180, %s181
        %s183 = smul.addr %s182, 4
        %s184 = scalar_lea.vmem %s2, %s183
      $region28: #{transformer_forward.12} parent=15 // pred_fallthru
        _
    $region16: #{transformer_forward.12} parent=5 // pred_fallthru
      _
    %p185 = scmp.le.s32.totalorder 1, %s9
    %p186 = scmp.lt.s32.totalorder %s9, 9
    %p187 = pnand %p185, %p186
    %p188 = pneg %p187
    // Predicated region
    $region29: #{transformer_forward.12} parent=5 // pred_check
      _
    $region30: #{transformer_forward.12} parent=5 // pred_check_branch
      %190 = sbr.rel (%p187) target = $region32
    $region31: #{transformer_forward.12} parent=5 // pred_region
      %s191 = ssub.s32 %s9, 1
      %p192 = scmp.lt.s32.totalorder %s18, 1
      %s193 = scalar_select %p192, %s18, 1
      %p194 = scmp.lt.s32.totalorder %s19, 3
      %s195 = scalar_select %p194, %s19, 3
      %s196 = smul.addr %s193, 4
      %s197 = sadd.s32 %s195, %s196
      %s198 = smul.addr %s197, 4
      %s199 = scalar_lea.vmem %s0, %s198
      %p200 = pneg %p49
      %p201 = pneg %p46
      %p202 = scmp.lt.s32.totalorder %s18, 1
      %s203 = scalar_select %p202, %s18, 1
      %p204 = scmp.lt.s32.totalorder %s19, 3
      %s205 = scalar_select %p204, %s19, 3
      %s206 = smul.addr %s203, 4
      %s207 = sadd.s32 %s205, %s206
      %s208 = smul.addr %s207, 4
      %s209 = scalar_lea.vmem %s1, %s208
      %p210 = pneg %p77
      %p211 = pneg %p74
      %p212 = scmp.lt.s32.totalorder %s18, 1
      %s213 = scalar_select %p212, %s18, 1
      %p214 = scmp.lt.s32.totalorder %s19, 3
      %s215 = scalar_select %p214, %s19, 3
      %s216 = smul.addr %s213, 4
      %s217 = sadd.s32 %s215, %s216
      %s218 = smul.addr %s217, 4
      %s219 = scalar_lea.vmem %s2, %s218
      %p220 = pneg %p105
      %p221 = pneg %p102
      %p222 = pneg %p133
      %p223 = pneg %p130
      %p224 = scmp.lt.s32.totalorder %s18, 1
      %s225 = scalar_select %p224, %s18, 1
      %p226 = scmp.lt.s32.totalorder %s19, 3
      %s227 = scalar_select %p226, %s19, 3
      %s228 = smul.addr %s225, 4
      %s229 = sadd.s32 %s227, %s228
      %s230 = smul.addr %s229, 4
      %s231 = scalar_lea.vmem %s3, %s230
      %p232 = scmp.lt.s32.totalorder %s18, 1
      %s233 = scalar_select %p232, %s18, 1
      %p234 = scmp.lt.s32.totalorder %s19, 3
      %s235 = scalar_select %p234, %s19, 3
      %s236 = smul.addr %s233, 4
      %s237 = sadd.s32 %s235, %s236
      %s238 = smul.addr %s237, 4
      %s239 = scalar_lea.vmem %s0, %s238
      %p240 = scmp.lt.s32.totalorder %s18, 1
      %s241 = scalar_select %p240, %s18, 1
      %p242 = scmp.lt.s32.totalorder %s19, 3
      %s243 = scalar_select %p242, %s19, 3
      %s244 = smul.addr %s241, 4
      %s245 = sadd.s32 %s243, %s244
      %s246 = smul.addr %s245, 4
      %s247 = scalar_lea.vmem %s1, %s246
      %p248 = scmp.lt.s32.totalorder %s18, 1
      %s249 = scalar_select %p248, %s18, 1
      %p250 = scmp.lt.s32.totalorder %s19, 3
      %s251 = scalar_select %p250, %s19, 3
      %s252 = smul.addr %s249, 4
      %s253 = sadd.s32 %s251, %s252
      %s254 = smul.addr %s253, 4
      %s255 = scalar_lea.vmem %s2, %s254
      %p256 = scmp.lt.s32.totalorder %s18, 1
      %s257 = scalar_select %p256, %s18, 1
      %p258 = scmp.lt.s32.totalorder %s19, 3
      %s259 = scalar_select %p258, %s19, 3
      %s260 = smul.addr %s257, 4
      %s261 = sadd.s32 %s259, %s260
      %s262 = smul.addr %s261, 4
      %s263 = scalar_lea.vmem %s3, %s262
      %v265 = vld [vmem:[%s239] sm:$0xf]
      %v266 = vld [vmem:[%s247] sm:$0xf]
      %vm267 = vcmask 64512
      %v269 = vsel %vm267, %v265, 0
      %v272 = vsel %vm267, %v266, 0
      %274 = vmatprep.subr.bf16.mxu0 0
      %275 = vmatpush1.bf16.xpose.msra.mxu0 %v272
      %276 = vmatprep.subr.bf16.mxu0 0
      %277 = vmatpush1.bf16.xpose.msra.mxu0 0
      %278 = vmatprep.subr.bf16.mxu0 0
      %279 = vmatpush1.bf16.xpose.msra.mxu0 0
      %280 = vmatprep.subr.bf16.mxu0 0
      %281 = vmatpush1.bf16.xpose.msra.mxu0 0
      %282 = vmatprep.subr.bf16.mxu0 0
      %283 = vmatpush1.bf16.xpose.msra.mxu0 0
      %284 = vmatprep.subr.bf16.mxu0 0
      %285 = vmatpush1.bf16.xpose.msra.mxu0 0
      %286 = vmatprep.subr.bf16.mxu0 0
      %287 = vmatpush1.bf16.xpose.msra.mxu0 0
      %288 = vmatprep.subr.bf16.mxu0 0
      %289 = vmatpush1.bf16.xpose.msra.mxu0 0
      %290 = vmatprep.subr.bf16.mxu0 0
      %291 = vmatpush1.bf16.xpose.msra.mxu0 0
      %292 = vmatprep.subr.bf16.mxu0 0
      %293 = vmatpush1.bf16.xpose.msra.mxu0 0
      %294 = vmatprep.subr.bf16.mxu0 0
      %295 = vmatpush1.bf16.xpose.msra.mxu0 0
      %296 = vmatprep.subr.bf16.mxu0 0
      %297 = vmatpush1.bf16.xpose.msra.mxu0 0
      %298 = vmatprep.subr.bf16.mxu0 0
      %299 = vmatpush1.bf16.xpose.msra.mxu0 0
      %300 = vmatprep.subr.bf16.mxu0 0
      %301 = vmatpush1.bf16.xpose.msra.mxu0 0
      %302 = vmatprep.subr.bf16.mxu0 0
      %303 = vmatpush1.bf16.xpose.msra.mxu0 0
      %304 = vmatprep.subr.bf16.mxu0 0
      %305 = vmatpush1.bf16.xpose.msra.mxu0 0
      %306 = vmatprep.mubr.bf16.mxu0 0
      %307 = vmatmul.mubr.bf16.gmra.mrb[0].mxu0 %v269
      %v308 = vpop.f32.mrb[0].mxu0
      %v309 = vadd.f32 0.0, %v308
      %v310 = vpop.f32.mrb[0].mxu0
      %v311 = vpop.f32.mrb[0].mxu0
      %v312 = vpop.f32.mrb[0].mxu0
      %313 = vdwg.mxu0
      %v314 = vlaneseq
      %v315 = vshrl.u32 %v314, 7
      %v316 = vlaneseq
      %v317 = vand.u32 %v316, 127
      %vm318 = vcmp.le.s32.totalorder %v317, %v315
      %v319 = vsel %vm318, %v309, -1e+30
      %v320 = vsel %vm267, %v319, -inf
      %321 = vmax.xlane.f32.xlu0 %v320
      %v322 = vpop.xlane.xlu0 %321
      %v323 = vsub.f32 %v319, %v322
      %v324 = vmul.f32 %v323, 1.442695
      %v325 = vpow.pop %v324
      %v326 = vsel %vm267, %v325, 0.0
      %327 = vadd.xlane.f32.xlu0 %v326
      %v328 = vpop.xlane.xlu0 %327
      %v329 = vrcp.pop %v328
      %v330 = vmul.f32 %v325, %v329
      %v331 = vpack.c.bf16 %v330, %v330
      %v332 = vld [vmem:[%s255] sm:$0xf]
      %v334 = vsel %vm267, %v331, 0
      %vm336 = vcmask 1043456
      %v338 = vsel %vm336, %v332, 0
      %340 = vmatprep.subr.bf16.mxu0 0
      %341 = vmatpush1.bf16.msra.mxu0 %v338
      %342 = vmatprep.subr.bf16.mxu0 0
      %343 = vmatpush1.bf16.msra.mxu0 0
      %344 = vmatprep.subr.bf16.mxu0 0
      %345 = vmatpush1.bf16.msra.mxu0 0
      %346 = vmatprep.subr.bf16.mxu0 0
      %347 = vmatpush1.bf16.msra.mxu0 0
      %348 = vmatprep.subr.bf16.mxu0 0
      %349 = vmatpush1.bf16.msra.mxu0 0
      %350 = vmatprep.subr.bf16.mxu0 0
      %351 = vmatpush1.bf16.msra.mxu0 0
      %352 = vmatprep.subr.bf16.mxu0 0
      %353 = vmatpush1.bf16.msra.mxu0 0
      %354 = vmatprep.subr.bf16.mxu0 0
      %355 = vmatpush1.bf16.msra.mxu0 0
      %356 = vmatprep.subr.bf16.mxu0 0
      %357 = vmatpush1.bf16.msra.mxu0 0
      %358 = vmatprep.subr.bf16.mxu0 0
      %359 = vmatpush1.bf16.msra.mxu0 0
      %360 = vmatprep.subr.bf16.mxu0 0
      %361 = vmatpush1.bf16.msra.mxu0 0
      %362 = vmatprep.subr.bf16.mxu0 0
      %363 = vmatpush1.bf16.msra.mxu0 0
      %364 = vmatprep.subr.bf16.mxu0 0
      %365 = vmatpush1.bf16.msra.mxu0 0
      %366 = vmatprep.subr.bf16.mxu0 0
      %367 = vmatpush1.bf16.msra.mxu0 0
      %368 = vmatprep.subr.bf16.mxu0 0
      %369 = vmatpush1.bf16.msra.mxu0 0
      %370 = vmatprep.subr.bf16.mxu0 0
      %371 = vmatpush1.bf16.msra.mxu0 0
      %372 = vmatprep.mubr.bf16.mxu0 0
      %373 = vmatmul.mubr.bf16.gmra.mrb[0].mxu0 %v334
      %v374 = vpop.f32.mrb[0].mxu0
      %v375 = vadd.f32 0.0, %v374
      %v376 = vpop.f32.mrb[0].mxu0
      %v377 = vpop.f32.mrb[0].mxu0
      %v378 = vpop.f32.mrb[0].mxu0
      %379 = vdwg.mxu0
      %v380 = vpack.c.bf16 %v375, %v375
      %vm381 = vcmask 60416
      %382 = vst.msk [vmem:[%s263] sm:$0xf] %vm381, %v380
      %p383 = scmp.lt.s32.totalorder %s18, 1
      %s384 = scalar_select %p383, %s18, 1
      %p385 = scmp.lt.s32.totalorder %s19, 3
      %s386 = scalar_select %p385, %s19, 3
      %s387 = smul.addr %s384, 4
      %s388 = sadd.s32 %s386, %s387
      %s389 = smul.addr %s388, 4
      %s390 = scalar_lea.vmem %s3, %s389
      // Predicated region
      $region33: #{transformer_forward.12} parent=31 // pred_check
        %p391 = pneg %p130
      $region34: #{transformer_forward.12} parent=31 // pred_check_branch
        %393 = sbr.rel (%p391) target = $region36
      $region35: #{transformer_forward.12} parent=31 // pred_region
        _
      $region36: #{transformer_forward.12} parent=31 // pred_fallthru
        _
    $region32: #{transformer_forward.12} parent=5 // pred_fallthru
      _
    %p394 = scmp.le.s32.totalorder 2, %s9
    // Predicated region
    $region37: #{transformer_forward.12} parent=5 // pred_check
      %p395 = pneg %p394
    $region38: #{transformer_forward.12} parent=5 // pred_check_branch
      %397 = sbr.rel (%p395) target = $region40
    $region39: #{transformer_forward.12} parent=5 // pred_region
      %s398 = ssub.s32 %s9, 2
      // Predicated region
      $region41: #{transformer_forward.12} parent=39 // pred_check
        %p399 = pneg %p136
      $region42: #{transformer_forward.12} parent=39 // pred_check_branch
        %401 = sbr.rel (%p399) target = $region44
      $region43: #{transformer_forward.12} parent=39 // pred_region
        %p402 = scmp.lt.s32.totalorder %s20, 1
        %s403 = scalar_select %p402, %s20, 1
        %p404 = scmp.lt.s32.totalorder %s21, 3
        %s405 = scalar_select %p404, %s21, 3
        %s406 = smul.addr %s403, 4
        %s407 = sadd.s32 %s405, %s406
        %s408 = smul.addr %s407, 4
        %s409 = scalar_lea.vmem %s3, %s408
      $region44: #{transformer_forward.12} parent=39 // pred_fallthru
        _
    $region40: #{transformer_forward.12} parent=5 // pred_fallthru
      _
  $region6: #{transformer_forward.12} parent=0 // loop_footer
    %s13 = sadd.s32 1, %s9
  $region7: #{transformer_forward.12} parent=0 // loop_footer_branch
    %8 = sbr.rel target = $region3
  $region8: #{transformer_forward.12} parent=0 // loop_exit
    _

// kernel: transformer_forward.13
$region0: #{transformer_forward.13}
  #allocation0 [shape = 'u32[]', space=smem, size = 0x4, offset = 0x4, fixed_abs, tag = 'smem constant byte address 0x4 - core index']
  #allocation1 [shape = 'u32[144,128]{1,0:T(1,128)}', space=vmem, size = 0x12000, scoped, tag = 'internal scratch']
  #allocation2 [shape = 'f32[8,32]{1,0:T(8,128)}', space=vmem, size = 0x1000, scoped, tag = 'scratch operand']
  %s0 = inlined_call_operand.vmem [shape: bf16[2,4,8,8], index: 0, kind: input, shape index: {}]
  %s1 = inlined_call_operand.vmem [shape: bf16[4,8,32], index: 1, kind: input, shape index: {}]
  %s2 = inlined_call_operand.vmem [shape: f32[2,8,32], index: 2, kind: input, shape index: {}, may-alias: {2,3}]
  %s3 = inlined_call_operand.vmem [shape: f32[2,8,32], index: 3, kind: output, shape index: {}, may-alias: {2,3}]
  %s4 = sld [smem:[#allocation0]]
  $region53: #{transformer_forward.13} parent=0
    _
  %s6 = ssub.s32 1, %s4
  %s7 = scalar_select 0, %s6, %s4
  loop: start=0, step=1, limit=10
  $region2: #{transformer_forward.13} parent=0 // loop_pre_header
    _
  $region3: #{transformer_forward.13} parent=0 // loop_header
    %s9 = sphi 0, %s13
    %p10 = scmp.ge.s32.totalorder %s9, 10
    %s16 = sphi 0, %s35
    %s17 = sphi 0, %s31
    %s18 = sphi 0, %s27
    %s19 = sphi 0, %s16
    %s20 = sphi 0, %s17
    %s21 = sphi 0, %s18
    %s22 = sphi 0, %s19
    %s23 = sphi 0, %s20
    %s24 = sphi 0, %s21
    %s42 = sphi 0, %s44
    %s45 = sphi 0, %s42
    %s46 = sphi 0, %s45
    %s62 = sphi 0, %s46
    %s68 = sphi 0, %s70
    %s71 = sphi 0, %s68
    %s72 = sphi 0, %s71
    %s88 = sphi 0, %s72
    %s96 = sphi 0, %s98
    %s99 = sphi 0, %s96
    %s100 = sphi 0, %s99
    %s116 = sphi 0, %s100
    %s124 = sphi 0, %s126
    %s127 = sphi 0, %s124
    %s128 = sphi 0, %s127
    %s144 = sphi 0, %s128
  $region4: #{transformer_forward.13} parent=0 // loop_header_branch
    %12 = sbr.rel (%p10) target = $region8
  $region5: #{transformer_forward.13} parent=0 // loop_body
    %s14 = ssub.s32 %s9, 1
    %s15 = ssub.s32 %s9, 2
    %s25 = sadd.s32 1, %s18
    %p26 = scmp.ge.s32.totalorder %s25, 4
    %s27 = scalar_select %p26, 0, %s25
    %s28 = sadd.s32 1, %s17
    %s29 = scalar_select %p26, %s28, %s17
    %p30 = scmp.ge.s32.totalorder %s29, 1
    %s31 = scalar_select %p30, 0, %s29
    %s32 = sadd.s32 1, %s16
    %s33 = scalar_select %p30, %s32, %s16
    %p34 = scmp.ge.s32.totalorder %s33, 2
    %s35 = scalar_select %p34, 0, %s33
    %s36 = ssub.s32 %s16, %s35
    %s37 = ssub.s32 %s18, %s27
    %s38 = sor.u32 %s36, %s37
    %s39 = ssub.s32 %s17, %s31
    %s40 = sor.u32 %s38, %s39
    %p41 = scmp.eq.s32.totalorder %s40, 0
    %s43 = sadd.s32 %s42, 1
    %s44 = scalar_select %p41, %s42, %s43
    %p47 = pneg %p41
    %p48 = scmp.eq.s32.totalorder %s9, 7
    %p49 = por %p47, %p48
    %p50 = scmp.ne.s32.totalorder %s42, %s45
    %p51 = scmp.eq.s32.totalorder %s9, 0
    %p52 = por %p50, %p51
    %p53 = scmp.ne.s32.totalorder %s42, %s45
    %p54 = scmp.eq.s32.totalorder %s14, 7
    %p55 = por %p53, %p54
    %p56 = scmp.ne.s32.totalorder %s45, %s46
    %p57 = scmp.eq.s32.totalorder %s14, 0
    %p58 = por %p56, %p57
    %p59 = scmp.ne.s32.totalorder %s45, %s46
    %p60 = scmp.eq.s32.totalorder %s15, 7
    %p61 = por %p59, %p60
    %p63 = scmp.ne.s32.totalorder %s46, %s62
    %p64 = scmp.eq.s32.totalorder %s15, 0
    %p65 = por %p63, %p64
    %s66 = ssub.s32 %s18, %s27
    %p67 = scmp.eq.s32.totalorder %s66, 0
    %s69 = sadd.s32 %s68, 1
    %s70 = scalar_select %p67, %s68, %s69
    %p73 = pneg %p67
    %p74 = scmp.eq.s32.totalorder %s9, 7
    %p75 = por %p73, %p74
    %p76 = scmp.ne.s32.totalorder %s68, %s71
    %p77 = scmp.eq.s32.totalorder %s9, 0
    %p78 = por %p76, %p77
    %p79 = scmp.ne.s32.totalorder %s68, %s71
    %p80 = scmp.eq.s32.totalorder %s14, 7
    %p81 = por %p79, %p80
    %p82 = scmp.ne.s32.totalorder %s71, %s72
    %p83 = scmp.eq.s32.totalorder %s14, 0
    %p84 = por %p82, %p83
    %p85 = scmp.ne.s32.totalorder %s71, %s72
    %p86 = scmp.eq.s32.totalorder %s15, 7
    %p87 = por %p85, %p86
    %p89 = scmp.ne.s32.totalorder %s72, %s88
    %p90 = scmp.eq.s32.totalorder %s15, 0
    %p91 = por %p89, %p90
    %s92 = ssub.s32 %s16, %s35
    %s93 = ssub.s32 %s17, %s31
    %s94 = sor.u32 %s92, %s93
    %p95 = scmp.eq.s32.totalorder %s94, 0
    %s97 = sadd.s32 %s96, 1
    %s98 = scalar_select %p95, %s96, %s97
    %p101 = pneg %p95
    %p102 = scmp.eq.s32.totalorder %s9, 7
    %p103 = por %p101, %p102
    %p104 = scmp.ne.s32.totalorder %s96, %s99
    %p105 = scmp.eq.s32.totalorder %s9, 0
    %p106 = por %p104, %p105
    %p107 = scmp.ne.s32.totalorder %s96, %s99
    %p108 = scmp.eq.s32.totalorder %s14, 7
    %p109 = por %p107, %p108
    %p110 = scmp.ne.s32.totalorder %s99, %s100
    %p111 = scmp.eq.s32.totalorder %s14, 0
    %p112 = por %p110, %p111
    %p113 = scmp.ne.s32.totalorder %s99, %s100
    %p114 = scmp.eq.s32.totalorder %s15, 7
    %p115 = por %p113, %p114
    %p117 = scmp.ne.s32.totalorder %s100, %s116
    %p118 = scmp.eq.s32.totalorder %s15, 0
    %p119 = por %p117, %p118
    %s120 = ssub.s32 %s16, %s35
    %s121 = ssub.s32 %s17, %s31
    %s122 = sor.u32 %s120, %s121
    %p123 = scmp.eq.s32.totalorder %s122, 0
    %s125 = sadd.s32 %s124, 1
    %s126 = scalar_select %p123, %s124, %s125
    %p129 = pneg %p123
    %p130 = scmp.eq.s32.totalorder %s9, 7
    %p131 = por %p129, %p130
    %p132 = scmp.ne.s32.totalorder %s124, %s127
    %p133 = scmp.eq.s32.totalorder %s9, 0
    %p134 = por %p132, %p133
    %p135 = scmp.ne.s32.totalorder %s124, %s127
    %p136 = scmp.eq.s32.totalorder %s14, 7
    %p137 = por %p135, %p136
    %p138 = scmp.ne.s32.totalorder %s127, %s128
    %p139 = scmp.eq.s32.totalorder %s14, 0
    %p140 = por %p138, %p139
    %p141 = scmp.ne.s32.totalorder %s127, %s128
    %p142 = scmp.eq.s32.totalorder %s15, 7
    %p143 = por %p141, %p142
    %p145 = scmp.ne.s32.totalorder %s128, %s144
    %p146 = scmp.eq.s32.totalorder %s15, 0
    %p147 = por %p145, %p146
    %p148 = scmp.le.s32.totalorder 1, %s9
    %p149 = scmp.lt.s32.totalorder %s9, 9
    %p150 = pnand %p148, %p149
    %p151 = pneg %p150
    // Predicated region
    $region9: #{transformer_forward.13} parent=5 // pred_check
      _
    $region10: #{transformer_forward.13} parent=5 // pred_check_branch
      %153 = sbr.rel (%p150) target = $region12
    $region11: #{transformer_forward.13} parent=5 // pred_region
      %s154 = ssub.s32 %s9, 1
    $region12: #{transformer_forward.13} parent=5 // pred_fallthru
      _
    %p155 = scmp.lt.s32.totalorder %s9, 8
    // Predicated region
    $region13: #{transformer_forward.13} parent=5 // pred_check
      %p156 = pneg %p155
    $region14: #{transformer_forward.13} parent=5 // pred_check_branch
      %158 = sbr.rel (%p156) target = $region16
    $region15: #{transformer_forward.13} parent=5 // pred_region
      // Predicated region
      $region17: #{transformer_forward.13} parent=15 // pred_check
        %p159 = pneg %p52
      $region18: #{transformer_forward.13} parent=15 // pred_check_branch
        %161 = sbr.rel (%p159) target = $region20
      $region19: #{transformer_forward.13} parent=15 // pred_region
        %p162 = scmp.lt.s32.totalorder %s16, 1
        %s163 = scalar_select %p162, %s16, 1
        %p164 = scmp.lt.s32.totalorder %s18, 3
        %s165 = scalar_select %p164, %s18, 3
        %p166 = scmp.lt.s32.totalorder %s17, 0
        %s167 = scalar_select %p166, %s17, 0
        %s168 = sadd.s32 %s167, %s165
        %s169 = smul.addr %s163, 4
        %s170 = sadd.s32 %s168, %s169
        %s171 = smul.addr %s170, 4
        %s172 = scalar_lea.vmem %s0, %s171
      $region20: #{transformer_forward.13} parent=15 // pred_fallthru
        _
      // Predicated region
      $region21: #{transformer_forward.13} parent=15 // pred_check
        %p173 = pneg %p78
      $region22: #{transformer_forward.13} parent=15 // pred_check_branch
        %175 = sbr.rel (%p173) target = $region24
      $region23: #{transformer_forward.13} parent=15 // pred_region
        %p176 = scmp.lt.s32.totalorder %s18, 3
        %s177 = scalar_select %p176, %s18, 3
        %s178 = smul.addr %s177, 4
        %s179 = scalar_lea.vmem %s1, %s178
      $region24: #{transformer_forward.13} parent=15 // pred_fallthru
        _
      // Predicated region
      $region25: #{transformer_forward.13} parent=15 // pred_check
        %p180 = pneg %p106
      $region26: #{transformer_forward.13} parent=15 // pred_check_branch
        %182 = sbr.rel (%p180) target = $region28
      $region27: #{transformer_forward.13} parent=15 // pred_region
        %p183 = scmp.lt.s32.totalorder %s16, 1
        %s184 = scalar_select %p183, %s16, 1
        %p185 = scmp.lt.s32.totalorder %s17, 0
        %s186 = scalar_select %p185, %s17, 0
        %s187 = sadd.s32 %s186, %s184
        %s188 = smul.addr %s187, 8
        %s189 = scalar_lea.vmem %s2, %s188
      $region28: #{transformer_forward.13} parent=15 // pred_fallthru
        _
    $region16: #{transformer_forward.13} parent=5 // pred_fallthru
      _
    %p190 = scmp.le.s32.totalorder 1, %s9
    %p191 = scmp.lt.s32.totalorder %s9, 9
    %p192 = pnand %p190, %p191
    %p193 = pneg %p192
    // Predicated region
    $region29: #{transformer_forward.13} parent=5 // pred_check
      _
    $region30: #{transformer_forward.13} parent=5 // pred_check_branch
      %195 = sbr.rel (%p192) target = $region32
    $region31: #{transformer_forward.13} parent=5 // pred_region
      %s196 = ssub.s32 %s9, 1
      %p197 = scmp.lt.s32.totalorder %s19, 1
      %s198 = scalar_select %p197, %s19, 1
      %p199 = scmp.lt.s32.totalorder %s21, 3
      %s200 = scalar_select %p199, %s21, 3
      %p201 = scmp.lt.s32.totalorder %s20, 0
      %s202 = scalar_select %p201, %s20, 0
      %s203 = sadd.s32 %s202, %s200
      %s204 = smul.addr %s198, 4
      %s205 = sadd.s32 %s203, %s204
      %s206 = smul.addr %s205, 4
      %s207 = scalar_lea.vmem %s0, %s206
      %p208 = pneg %p58
      %p209 = pneg %p55
      %p210 = scmp.lt.s32.totalorder %s21, 3
      %s211 = scalar_select %p210, %s21, 3
      %s212 = smul.addr %s211, 4
      %s213 = scalar_lea.vmem %s1, %s212
      %p214 = pneg %p84
      %p215 = pneg %p81
      %p216 = scmp.lt.s32.totalorder %s19, 1
      %s217 = scalar_select %p216, %s19, 1
      %p218 = scmp.lt.s32.totalorder %s20, 0
      %s219 = scalar_select %p218, %s20, 0
      %s220 = sadd.s32 %s219, %s217
      %s221 = smul.addr %s220, 8
      %s222 = scalar_lea.vmem %s2, %s221
      %p223 = pneg %p112
      %p224 = pneg %p109
      %p225 = pneg %p140
      %p226 = pneg %p137
      %p227 = scmp.lt.s32.totalorder %s19, 1
      %s228 = scalar_select %p227, %s19, 1
      %p229 = scmp.lt.s32.totalorder %s20, 0
      %s230 = scalar_select %p229, %s20, 0
      %s231 = sadd.s32 %s230, %s228
      %s232 = smul.addr %s231, 8
      %s233 = scalar_lea.vmem %s3, %s232
      %p234 = scmp.lt.s32.totalorder %s19, 1
      %s235 = scalar_select %p234, %s19, 1
      %p236 = scmp.lt.s32.totalorder %s21, 3
      %s237 = scalar_select %p236, %s21, 3
      %p238 = scmp.lt.s32.totalorder %s20, 0
      %s239 = scalar_select %p238, %s20, 0
      %s240 = sadd.s32 %s239, %s237
      %s241 = smul.addr %s235, 4
      %s242 = sadd.s32 %s240, %s241
      %s243 = smul.addr %s242, 4
      %s244 = scalar_lea.vmem %s0, %s243
      %p245 = scmp.lt.s32.totalorder %s21, 3
      %s246 = scalar_select %p245, %s21, 3
      %s247 = smul.addr %s246, 4
      %s248 = scalar_lea.vmem %s1, %s247
      %p249 = scmp.lt.s32.totalorder %s19, 1
      %s250 = scalar_select %p249, %s19, 1
      %p251 = scmp.lt.s32.totalorder %s20, 0
      %s252 = scalar_select %p251, %s20, 0
      %s253 = sadd.s32 %s252, %s250
      %s254 = smul.addr %s253, 8
      %s255 = scalar_lea.vmem %s2, %s254
      %p256 = scmp.lt.s32.totalorder %s19, 1
      %s257 = scalar_select %p256, %s19, 1
      %p258 = scmp.lt.s32.totalorder %s20, 0
      %s259 = scalar_select %p258, %s20, 0
      %s260 = sadd.s32 %s259, %s257
      %s261 = smul.addr %s260, 8
      %s262 = scalar_lea.vmem %s3, %s261
      %p264 = scmp.eq.s32.totalorder %s21, 0
      // Predicated region
      $region33: #{transformer_forward.13} parent=31 // pred_check
        %p265 = pneg %p264
      $region34: #{transformer_forward.13} parent=31 // pred_check_branch
        %267 = sbr.rel (%p265) target = $region36
      $region35: #{transformer_forward.13} parent=31 // pred_region
        %vm268 = vcmask 261120
        %269 = vst.msk [vmem:[#allocation2] sm:$0xff] %vm268, 0.0
      $region36: #{transformer_forward.13} parent=31 // pred_fallthru
        _
      %v270 = vld [vmem:[#allocation2] sm:$0xff]
      %v271 = vld [vmem:[%s244] sm:$0xf]
      %v272 = vld [vmem:[%s248] sm:$0xf]
      %vm273 = vcmask 64512
      %v275 = vsel %vm273, %v271, 0
      %vm277 = vcmask 1043456
      %v279 = vsel %vm277, %v272, 0
      %281 = vmatprep.subr.bf16.mxu0 0
      %282 = vmatpush1.bf16.msra.mxu0 %v279
      %283 = vmatprep.subr.bf16.mxu0 0
      %284 = vmatpush1.bf16.msra.mxu0 0
      %285 = vmatprep.subr.bf16.mxu0 0
      %286 = vmatpush1.bf16.msra.mxu0 0
      %287 = vmatprep.subr.bf16.mxu0 0
      %288 = vmatpush1.bf16.msra.mxu0 0
      %289 = vmatprep.subr.bf16.mxu0 0
      %290 = vmatpush1.bf16.msra.mxu0 0
      %291 = vmatprep.subr.bf16.mxu0 0
      %292 = vmatpush1.bf16.msra.mxu0 0
      %293 = vmatprep.subr.bf16.mxu0 0
      %294 = vmatpush1.bf16.msra.mxu0 0
      %295 = vmatprep.subr.bf16.mxu0 0
      %296 = vmatpush1.bf16.msra.mxu0 0
      %297 = vmatprep.subr.bf16.mxu0 0
      %298 = vmatpush1.bf16.msra.mxu0 0
      %299 = vmatprep.subr.bf16.mxu0 0
      %300 = vmatpush1.bf16.msra.mxu0 0
      %301 = vmatprep.subr.bf16.mxu0 0
      %302 = vmatpush1.bf16.msra.mxu0 0
      %303 = vmatprep.subr.bf16.mxu0 0
      %304 = vmatpush1.bf16.msra.mxu0 0
      %305 = vmatprep.subr.bf16.mxu0 0
      %306 = vmatpush1.bf16.msra.mxu0 0
      %307 = vmatprep.subr.bf16.mxu0 0
      %308 = vmatpush1.bf16.msra.mxu0 0
      %309 = vmatprep.subr.bf16.mxu0 0
      %310 = vmatpush1.bf16.msra.mxu0 0
      %311 = vmatprep.subr.bf16.mxu0 0
      %312 = vmatpush1.bf16.msra.mxu0 0
      %313 = vmatprep.mubr.bf16.mxu0 0
      %314 = vmatmul.mubr.bf16.gmra.mrb[0].mxu0 %v275
      %v315 = vpop.f32.mrb[0].mxu0
      %v316 = vadd.f32 0.0, %v315
      %v317 = vpop.f32.mrb[0].mxu0
      %v318 = vpop.f32.mrb[0].mxu0
      %v319 = vpop.f32.mrb[0].mxu0
      %320 = vdwg.mxu0
      %v321 = vadd.f32 %v270, %v316
      %vm322 = vcmask 261120
      %323 = vst.msk [vmem:[#allocation2] sm:$0xff] %vm322, %v321
      %p324 = scmp.eq.s32.totalorder %s21, 3
      // Predicated region
      $region37: #{transformer_forward.13} parent=31 // pred_check
        %p325 = pneg %p324
      $region38: #{transformer_forward.13} parent=31 // pred_check_branch
        %327 = sbr.rel (%p325) target = $region40
      $region39: #{transformer_forward.13} parent=31 // pred_region
        %v328 = vld [vmem:[%s255] sm:$0xff]
        %v329 = vld [vmem:[#allocation2] sm:$0xff]
        %v330 = vadd.f32 %v328, %v329
        %331 = vst.msk [vmem:[%s262] sm:$0xff] %vm322, %v330
      $region40: #{transformer_forward.13} parent=31 // pred_fallthru
        _
      %p332 = scmp.lt.s32.totalorder %s19, 1
      %s333 = scalar_select %p332, %s19, 1
      %p334 = scmp.lt.s32.totalorder %s20, 0
      %s335 = scalar_select %p334, %s20, 0
      %s336 = sadd.s32 %s335, %s333
      %s337 = smul.addr %s336, 8
      %s338 = scalar_lea.vmem %s3, %s337
      // Predicated region
      $region41: #{transformer_forward.13} parent=31 // pred_check
        %p339 = pneg %p137
      $region42: #{transformer_forward.13} parent=31 // pred_check_branch
        %341 = sbr.rel (%p339) target = $region44
      $region43: #{transformer_forward.13} parent=31 // pred_region
        _
      $region44: #{transformer_forward.13} parent=31 // pred_fallthru
        _
    $region32: #{transformer_forward.13} parent=5 // pred_fallthru
      _
    %p342 = scmp.le.s32.totalorder 2, %s9
    // Predicated region
    $region45: #{transformer_forward.13} parent=5 // pred_check
      %p343 = pneg %p342
    $region46: #{transformer_forward.13} parent=5 // pred_check_branch
      %345 = sbr.rel (%p343) target = $region48
    $region47: #{transformer_forward.13} parent=5 // pred_region
      %s346 = ssub.s32 %s9, 2
      // Predicated region
      $region49: #{transformer_forward.13} parent=47 // pred_check
        %p347 = pneg %p143
      $region50: #{transformer_forward.13} parent=47 // pred_check_branch
        %349 = sbr.rel (%p347) target = $region52
      $region51: #{transformer_forward.13} parent=47 // pred_region
        %p350 = scmp.lt.s32.totalorder %s22, 1
        %s351 = scalar_select %p350, %s22, 1
        %p352 = scmp.lt.s32.totalorder %s23, 0
        %s353 = scalar_select %p352, %s23, 0
        %s354 = sadd.s32 %s353, %s351
        %s355 = smul.addr %s354, 8
        %s356 = scalar_lea.vmem %s3, %s355
      $region52: #{transformer_forward.13} parent=47 // pred_fallthru
        _
    $region48: #{transformer_forward.13} parent=5 // pred_fallthru
      _
  $region6: #{transformer_forward.13} parent=0 // loop_footer
    %s13 = sadd.s32 1, %s9
  $region7: #{transformer_forward.13} parent=0 // loop_footer_branch
    %8 = sbr.rel target = $region3
  $region8: #{transformer_forward.13} parent=0 // loop_exit
    _

// kernel: transformer_forward.14
$region0: #{transformer_forward.14}
  #allocation0 [shape = 'u32[]', space=smem, size = 0x4, offset = 0x4, fixed_abs, tag = 'smem constant byte address 0x4 - core index']
  #allocation1 [shape = 'u32[144,128]{1,0:T(1,128)}', space=vmem, size = 0x12000, scoped, tag = 'internal scratch']
  %s0 = inlined_call_operand.vmem [shape: f32[2,8,32], index: 0, kind: input, shape index: {}]
  %s1 = inlined_call_operand.vmem [shape: f32[1,32], index: 1, kind: input, shape index: {}]
  %s2 = inlined_call_operand.vmem [shape: bf16[32,96], index: 2, kind: input, shape index: {}]
  %s3 = inlined_call_operand.vmem [shape: bf16[32,96], index: 3, kind: input, shape index: {}]
  %s4 = inlined_call_operand.vmem [shape: bf16[2,8,96], index: 4, kind: output, shape index: {}]
  %s5 = sld [smem:[#allocation0]]
  $region49: #{transformer_forward.14} parent=0
    _
  %s7 = ssub.s32 1, %s5
  %s8 = scalar_select 0, %s7, %s5
  loop: start=0, step=1, limit=4
  $region2: #{transformer_forward.14} parent=0 // loop_pre_header
    _
  $region3: #{transformer_forward.14} parent=0 // loop_header
    %s10 = sphi 0, %s14
    %p11 = scmp.ge.s32.totalorder %s10, 4
    %s17 = sphi 0, %s36
    %s18 = sphi 0, %s32
    %s19 = sphi 0, %s28
    %s20 = sphi 0, %s17
    %s21 = sphi 0, %s18
    %s22 = sphi 0, %s19
    %s23 = sphi 0, %s20
    %s24 = sphi 0, %s21
    %s25 = sphi 0, %s22
    %s41 = sphi 0, %s43
    %s44 = sphi 0, %s41
    %s45 = sphi 0, %s44
    %s61 = sphi 0, %s45
    %s65 = sphi 0, %s65
    %s67 = sphi 0, %s65
    %s68 = sphi 0, %s67
    %s82 = sphi 0, %s68
    %s88 = sphi 0, %s90
    %s91 = sphi 0, %s88
    %s92 = sphi 0, %s91
    %s108 = sphi 0, %s92
    %s114 = sphi 0, %s116
    %s117 = sphi 0, %s114
    %s118 = sphi 0, %s117
    %s134 = sphi 0, %s118
    %s144 = sphi 0, %s146
    %s147 = sphi 0, %s144
    %s148 = sphi 0, %s147
    %s164 = sphi 0, %s148
  $region4: #{transformer_forward.14} parent=0 // loop_header_branch
    %13 = sbr.rel (%p11) target = $region8
  $region5: #{transformer_forward.14} parent=0 // loop_body
    %s15 = ssub.s32 %s10, 1
    %s16 = ssub.s32 %s10, 2
    %s26 = sadd.s32 1, %s19
    %p27 = scmp.ge.s32.totalorder %s26, 1
    %s28 = scalar_select %p27, 0, %s26
    %s29 = sadd.s32 1, %s18
    %s30 = scalar_select %p27, %s29, %s18
    %p31 = scmp.ge.s32.totalorder %s30, 1
    %s32 = scalar_select %p31, 0, %s30
    %s33 = sadd.s32 1, %s17
    %s34 = scalar_select %p31, %s33, %s17
    %p35 = scmp.ge.s32.totalorder %s34, 2
    %s36 = scalar_select %p35, 0, %s34
    %s37 = ssub.s32 %s17, %s36
    %s38 = ssub.s32 %s18, %s32
    %s39 = sor.u32 %s37, %s38
    %p40 = scmp.eq.s32.totalorder %s39, 0
    %s42 = sadd.s32 %s41, 1
    %s43 = scalar_select %p40, %s41, %s42
    %p46 = pneg %p40
    %p47 = scmp.eq.s32.totalorder %s10, 1
    %p48 = por %p46, %p47
    %p49 = scmp.ne.s32.totalorder %s41, %s44
    %p50 = scmp.eq.s32.totalorder %s10, 0
    %p51 = por %p49, %p50
    %p52 = scmp.ne.s32.totalorder %s41, %s44
    %p53 = scmp.eq.s32.totalorder %s15, 1
    %p54 = por %p52, %p53
    %p55 = scmp.ne.s32.totalorder %s44, %s45
    %p56 = scmp.eq.s32.totalorder %s15, 0
    %p57 = por %p55, %p56
    %p58 = scmp.ne.s32.totalorder %s44, %s45
    %p59 = scmp.eq.s32.totalorder %s16, 1
    %p60 = por %p58, %p59
    %p62 = scmp.ne.s32.totalorder %s45, %s61
    %p63 = scmp.eq.s32.totalorder %s16, 0
    %p64 = por %p62, %p63
    %s66 = sadd.s32 %s65, 1
    %p69 = scmp.eq.s32.totalorder %s10, 1
    %p70 = scmp.ne.s32.totalorder %s65, %s67
    %p71 = scmp.eq.s32.totalorder %s10, 0
    %p72 = por %p70, %p71
    %p73 = scmp.ne.s32.totalorder %s65, %s67
    %p74 = scmp.eq.s32.totalorder %s15, 1
    %p75 = por %p73, %p74
    %p76 = scmp.ne.s32.totalorder %s67, %s68
    %p77 = scmp.eq.s32.totalorder %s15, 0
    %p78 = por %p76, %p77
    %p79 = scmp.ne.s32.totalorder %s67, %s68
    %p80 = scmp.eq.s32.totalorder %s16, 1
    %p81 = por %p79, %p80
    %p83 = scmp.ne.s32.totalorder %s68, %s82
    %p84 = scmp.eq.s32.totalorder %s16, 0
    %p85 = por %p83, %p84
    %s86 = ssub.s32 %s19, %s28
    %p87 = scmp.eq.s32.totalorder %s86, 0
    %s89 = sadd.s32 %s88, 1
    %s90 = scalar_select %p87, %s88, %s89
    %p93 = pneg %p87
    %p94 = scmp.eq.s32.totalorder %s10, 1
    %p95 = por %p93, %p94
    %p96 = scmp.ne.s32.totalorder %s88, %s91
    %p97 = scmp.eq.s32.totalorder %s10, 0
    %p98 = por %p96, %p97
    %p99 = scmp.ne.s32.totalorder %s88, %s91
    %p100 = scmp.eq.s32.totalorder %s15, 1
    %p101 = por %p99, %p100
    %p102 = scmp.ne.s32.totalorder %s91, %s92
    %p103 = scmp.eq.s32.totalorder %s15, 0
    %p104 = por %p102, %p103
    %p105 = scmp.ne.s32.totalorder %s91, %s92
    %p106 = scmp.eq.s32.totalorder %s16, 1
    %p107 = por %p105, %p106
    %p109 = scmp.ne.s32.totalorder %s92, %s108
    %p110 = scmp.eq.s32.totalorder %s16, 0
    %p111 = por %p109, %p110
    %s112 = ssub.s32 %s19, %s28
    %p113 = scmp.eq.s32.totalorder %s112, 0
    %s115 = sadd.s32 %s114, 1
    %s116 = scalar_select %p113, %s114, %s115
    %p119 = pneg %p113
    %p120 = scmp.eq.s32.totalorder %s10, 1
    %p121 = por %p119, %p120
    %p122 = scmp.ne.s32.totalorder %s114, %s117
    %p123 = scmp.eq.s32.totalorder %s10, 0
    %p124 = por %p122, %p123
    %p125 = scmp.ne.s32.totalorder %s114, %s117
    %p126 = scmp.eq.s32.totalorder %s15, 1
    %p127 = por %p125, %p126
    %p128 = scmp.ne.s32.totalorder %s117, %s118
    %p129 = scmp.eq.s32.totalorder %s15, 0
    %p130 = por %p128, %p129
    %p131 = scmp.ne.s32.totalorder %s117, %s118
    %p132 = scmp.eq.s32.totalorder %s16, 1
    %p133 = por %p131, %p132
    %p135 = scmp.ne.s32.totalorder %s118, %s134
    %p136 = scmp.eq.s32.totalorder %s16, 0
    %p137 = por %p135, %p136
    %s138 = ssub.s32 %s17, %s36
    %s139 = ssub.s32 %s18, %s32
    %s140 = sor.u32 %s138, %s139
    %s141 = ssub.s32 %s19, %s28
    %s142 = sor.u32 %s140, %s141
    %p143 = scmp.eq.s32.totalorder %s142, 0
    %s145 = sadd.s32 %s144, 1
    %s146 = scalar_select %p143, %s144, %s145
    %p149 = pneg %p143
    %p150 = scmp.eq.s32.totalorder %s10, 1
    %p151 = por %p149, %p150
    %p152 = scmp.ne.s32.totalorder %s144, %s147
    %p153 = scmp.eq.s32.totalorder %s10, 0
    %p154 = por %p152, %p153
    %p155 = scmp.ne.s32.totalorder %s144, %s147
    %p156 = scmp.eq.s32.totalorder %s15, 1
    %p157 = por %p155, %p156
    %p158 = scmp.ne.s32.totalorder %s147, %s148
    %p159 = scmp.eq.s32.totalorder %s15, 0
    %p160 = por %p158, %p159
    %p161 = scmp.ne.s32.totalorder %s147, %s148
    %p162 = scmp.eq.s32.totalorder %s16, 1
    %p163 = por %p161, %p162
    %p165 = scmp.ne.s32.totalorder %s148, %s164
    %p166 = scmp.eq.s32.totalorder %s16, 0
    %p167 = por %p165, %p166
    %p168 = scmp.le.s32.totalorder 1, %s10
    %p169 = scmp.lt.s32.totalorder %s10, 3
    %p170 = pnand %p168, %p169
    %p171 = pneg %p170
    // Predicated region
    $region9: #{transformer_forward.14} parent=5 // pred_check
      _
    $region10: #{transformer_forward.14} parent=5 // pred_check_branch
      %173 = sbr.rel (%p170) target = $region12
    $region11: #{transformer_forward.14} parent=5 // pred_region
      %s174 = ssub.s32 %s10, 1
      // Predicated region
      $region13: #{transformer_forward.14} parent=11 // pred_check
        %p175 = pneg %p78
      $region14: #{transformer_forward.14} parent=11 // pred_check_branch
        %177 = sbr.rel (%p175) target = $region16
      $region15: #{transformer_forward.14} parent=11 // pred_region
        _
      $region16: #{transformer_forward.14} parent=11 // pred_fallthru
        _
      // Predicated region
      $region17: #{transformer_forward.14} parent=11 // pred_check
        %p178 = pneg %p104
      $region18: #{transformer_forward.14} parent=11 // pred_check_branch
        %180 = sbr.rel (%p178) target = $region20
      $region19: #{transformer_forward.14} parent=11 // pred_region
        %p181 = scmp.lt.s32.totalorder %s22, 0
        %s182 = scalar_select %p181, %s22, 0
        %s183 = smul.addr %s182, 4
        %s184 = scalar_lea.vmem %s2, %s183
      $region20: #{transformer_forward.14} parent=11 // pred_fallthru
        _
      // Predicated region
      $region21: #{transformer_forward.14} parent=11 // pred_check
        %p185 = pneg %p130
      $region22: #{transformer_forward.14} parent=11 // pred_check_branch
        %187 = sbr.rel (%p185) target = $region24
      $region23: #{transformer_forward.14} parent=11 // pred_region
        %p188 = scmp.lt.s32.totalorder %s22, 0
        %s189 = scalar_select %p188, %s22, 0
        %s190 = smul.addr %s189, 4
        %s191 = scalar_lea.vmem %s3, %s190
      $region24: #{transformer_forward.14} parent=11 // pred_fallthru
        _
    $region12: #{transformer_forward.14} parent=5 // pred_fallthru
      _
    %p192 = scmp.lt.s32.totalorder %s10, 2
    // Predicated region
    $region25: #{transformer_forward.14} parent=5 // pred_check
      %p193 = pneg %p192
    $region26: #{transformer_forward.14} parent=5 // pred_check_branch
      %195 = sbr.rel (%p193) target = $region28
    $region27: #{transformer_forward.14} parent=5 // pred_region
      // Predicated region
      $region29: #{transformer_forward.14} parent=27 // pred_check
        %p196 = pneg %p51
      $region30: #{transformer_forward.14} parent=27 // pred_check_branch
        %198 = sbr.rel (%p196) target = $region32
      $region31: #{transformer_forward.14} parent=27 // pred_region
        %p199 = scmp.lt.s32.totalorder %s17, 1
        %s200 = scalar_select %p199, %s17, 1
        %p201 = scmp.lt.s32.totalorder %s18, 0
        %s202 = scalar_select %p201, %s18, 0
        %s203 = sadd.s32 %s202, %s200
        %s204 = smul.addr %s203, 8
        %s205 = scalar_lea.vmem %s0, %s204
      $region32: #{transformer_forward.14} parent=27 // pred_fallthru
        _
    $region28: #{transformer_forward.14} parent=5 // pred_fallthru
      _
    %p206 = scmp.le.s32.totalorder 1, %s10
    %p207 = scmp.lt.s32.totalorder %s10, 3
    %p208 = pnand %p206, %p207
    %p209 = pneg %p208
    // Predicated region
    $region33: #{transformer_forward.14} parent=5 // pred_check
      _
    $region34: #{transformer_forward.14} parent=5 // pred_check_branch
      %211 = sbr.rel (%p208) target = $region36
    $region35: #{transformer_forward.14} parent=5 // pred_region
      %s212 = ssub.s32 %s10, 1
      %p213 = scmp.lt.s32.totalorder %s20, 1
      %s214 = scalar_select %p213, %s20, 1
      %p215 = scmp.lt.s32.totalorder %s21, 0
      %s216 = scalar_select %p215, %s21, 0
      %s217 = sadd.s32 %s216, %s214
      %s218 = smul.addr %s217, 8
      %s219 = scalar_lea.vmem %s0, %s218
      %p220 = pneg %p57
      %p221 = pneg %p54
      %p222 = pneg %p78
      %p223 = pneg %p75
      %p224 = scmp.lt.s32.totalorder %s22, 0
      %s225 = scalar_select %p224, %s22, 0
      %s226 = smul.addr %s225, 4
      %s227 = scalar_lea.vmem %s2, %s226
      %p228 = pneg %p104
      %p229 = pneg %p101
      %p230 = scmp.lt.s32.totalorder %s22, 0
      %s231 = scalar_select %p230, %s22, 0
      %s232 = smul.addr %s231, 4
      %s233 = scalar_lea.vmem %s3, %s232
      %p234 = pneg %p130
      %p235 = pneg %p127
      %p236 = pneg %p160
      %p237 = pneg %p157
      %p238 = scmp.lt.s32.totalorder %s20, 1
      %s239 = scalar_select %p238, %s20, 1
      %p240 = scmp.lt.s32.totalorder %s21, 0
      %s241 = scalar_select %p240, %s21, 0
      %p242 = scmp.lt.s32.totalorder %s22, 0
      %s243 = scalar_select %p242, %s22, 0
      %s244 = sadd.s32 %s243, %s241
      %s245 = sadd.s32 %s244, %s239
      %s246 = smul.addr %s245, 4
      %s247 = scalar_lea.vmem %s4, %s246
      %p248 = scmp.lt.s32.totalorder %s20, 1
      %s249 = scalar_select %p248, %s20, 1
      %p250 = scmp.lt.s32.totalorder %s21, 0
      %s251 = scalar_select %p250, %s21, 0
      %s252 = sadd.s32 %s251, %s249
      %s253 = smul.addr %s252, 8
      %s254 = scalar_lea.vmem %s0, %s253
      %p255 = scmp.lt.s32.totalorder %s22, 0
      %s256 = scalar_select %p255, %s22, 0
      %s257 = smul.addr %s256, 4
      %s258 = scalar_lea.vmem %s2, %s257
      %p259 = scmp.lt.s32.totalorder %s22, 0
      %s260 = scalar_select %p259, %s22, 0
      %s261 = smul.addr %s260, 4
      %s262 = scalar_lea.vmem %s3, %s261
      %p263 = scmp.lt.s32.totalorder %s20, 1
      %s264 = scalar_select %p263, %s20, 1
      %p265 = scmp.lt.s32.totalorder %s21, 0
      %s266 = scalar_select %p265, %s21, 0
      %p267 = scmp.lt.s32.totalorder %s22, 0
      %s268 = scalar_select %p267, %s22, 0
      %s269 = sadd.s32 %s268, %s266
      %s270 = sadd.s32 %s269, %s264
      %s271 = smul.addr %s270, 4
      %s272 = scalar_lea.vmem %s4, %s271
      %v274 = vld [vmem:[%s254] sm:$0xff]
      %v275 = vmul.f32 %v274, %v274
      %vm276 = vcmask 261120
      %v277 = vsel %vm276, %v275, 0.0
      %278 = vadd.xlane.f32.xlu0 %v277
      %v279 = vpop.xlane.xlu0 %278
      %v280 = vrcp.pop 32.0
      %v281 = vmul.f32 %v279, %v280
      %v282 = vadd.f32 %v281, 1e-05
      %v283 = vrsqrt.pop %v282
      %v284 = vmul.f32 %v274, %v283
      %v285 = vld [vmem:[%s1] sm:$0x1]
      %v287 = vlaneseq
      %v288 = vshrl.u32 %v287, 7
      %v289 = vsub.s32 0, %v288
      %v290 = vrot.slane %v285, %v289
      %v292 = vmul.f32 %v284, %v290
      %v293 = vpack.c.bf16 %v292, %v292
      %v294 = vld [vmem:[%s258] sm:$0xf]
      %v295 = vld [vmem:[%s258 + $0x4] sm:$0xf]
      %v296 = vld [vmem:[%s258 + $0x8] sm:$0xf]
      %v297 = vld [vmem:[%s258 + $0xc] sm:$0xf]
      %v302 = vunpack.c.l.b16 %v294
      %v303 = vunpack.c.l.b16 %v295
      %v304 = vunpack.c.l.b16 %v296
      %v305 = vunpack.c.l.b16 %v297
      %v306 = vpack.c.b16 %v303, %v302
      %v307 = vpack.c.b16 %v305, %v304
      %v311 = vsel %vm276, %v293, 0
      %313 = vmatprep.subr.bf16.mxu0 0
      %314 = vmatpush1.bf16.msra.mxu0 %v306
      %315 = vmatprep.subr.bf16.mxu0 0
      %316 = vmatpush1.bf16.msra.mxu0 %v307
      %317 = vmatprep.subr.bf16.mxu0 0
      %318 = vmatpush1.bf16.msra.mxu0 0
      %319 = vmatprep.subr.bf16.mxu0 0
      %320 = vmatpush1.bf16.msra.mxu0 0
      %321 = vmatprep.subr.bf16.mxu0 0
      %322 = vmatpush1.bf16.msra.mxu0 0
      %323 = vmatprep.subr.bf16.mxu0 0
      %324 = vmatpush1.bf16.msra.mxu0 0
      %325 = vmatprep.subr.bf16.mxu0 0
      %326 = vmatpush1.bf16.msra.mxu0 0
      %327 = vmatprep.subr.bf16.mxu0 0
      %328 = vmatpush1.bf16.msra.mxu0 0
      %329 = vmatprep.subr.bf16.mxu0 0
      %330 = vmatpush1.bf16.msra.mxu0 0
      %331 = vmatprep.subr.bf16.mxu0 0
      %332 = vmatpush1.bf16.msra.mxu0 0
      %333 = vmatprep.subr.bf16.mxu0 0
      %334 = vmatpush1.bf16.msra.mxu0 0
      %335 = vmatprep.subr.bf16.mxu0 0
      %336 = vmatpush1.bf16.msra.mxu0 0
      %337 = vmatprep.subr.bf16.mxu0 0
      %338 = vmatpush1.bf16.msra.mxu0 0
      %339 = vmatprep.subr.bf16.mxu0 0
      %340 = vmatpush1.bf16.msra.mxu0 0
      %341 = vmatprep.subr.bf16.mxu0 0
      %342 = vmatpush1.bf16.msra.mxu0 0
      %343 = vmatprep.subr.bf16.mxu0 0
      %344 = vmatpush1.bf16.msra.mxu0 0
      %345 = vmatprep.mubr.bf16.mxu0 0
      %346 = vmatmul.mubr.bf16.gmra.mrb[0].mxu0 %v311
      %v347 = vpop.f32.mrb[0].mxu0
      %v348 = vadd.f32 0.0, %v347
      %v349 = vpop.f32.mrb[0].mxu0
      %v350 = vpop.f32.mrb[0].mxu0
      %v351 = vpop.f32.mrb[0].mxu0
      %352 = vdwg.mxu0
      %v353 = vld [vmem:[%s262] sm:$0xf]
      %v354 = vld [vmem:[%s262 + $0x4] sm:$0xf]
      %v355 = vld [vmem:[%s262 + $0x8] sm:$0xf]
      %v356 = vld [vmem:[%s262 + $0xc] sm:$0xf]
      %v361 = vunpack.c.l.b16 %v353
      %v362 = vunpack.c.l.b16 %v354
      %v363 = vunpack.c.l.b16 %v355
      %v364 = vunpack.c.l.b16 %v356
      %v365 = vpack.c.b16 %v362, %v361
      %v366 = vpack.c.b16 %v364, %v363
      %369 = vmatprep.subr.bf16.mxu0 0
      %370 = vmatpush1.bf16.msra.mxu0 %v365
      %371 = vmatprep.subr.bf16.mxu0 0
      %372 = vmatpush1.bf16.msra.mxu0 %v366
      %373 = vmatprep.subr.bf16.mxu0 0
      %374 = vmatpush1.bf16.msra.mxu0 0
      %375 = vmatprep.subr.bf16.mxu0 0
      %376 = vmatpush1.bf16.msra.mxu0 0
      %377 = vmatprep.subr.bf16.mxu0 0
      %378 = vmatpush1.bf16.msra.mxu0 0
      %379 = vmatprep.subr.bf16.mxu0 0
      %380 = vmatpush1.bf16.msra.mxu0 0
      %381 = vmatprep.subr.bf16.mxu0 0
      %382 = vmatpush1.bf16.msra.mxu0 0
      %383 = vmatprep.subr.bf16.mxu0 0
      %384 = vmatpush1.bf16.msra.mxu0 0
      %385 = vmatprep.subr.bf16.mxu0 0
      %386 = vmatpush1.bf16.msra.mxu0 0
      %387 = vmatprep.subr.bf16.mxu0 0
      %388 = vmatpush1.bf16.msra.mxu0 0
      %389 = vmatprep.subr.bf16.mxu0 0
      %390 = vmatpush1.bf16.msra.mxu0 0
      %391 = vmatprep.subr.bf16.mxu0 0
      %392 = vmatpush1.bf16.msra.mxu0 0
      %393 = vmatprep.subr.bf16.mxu0 0
      %394 = vmatpush1.bf16.msra.mxu0 0
      %395 = vmatprep.subr.bf16.mxu0 0
      %396 = vmatpush1.bf16.msra.mxu0 0
      %397 = vmatprep.subr.bf16.mxu0 0
      %398 = vmatpush1.bf16.msra.mxu0 0
      %399 = vmatprep.subr.bf16.mxu0 0
      %400 = vmatpush1.bf16.msra.mxu0 0
      %401 = vmatprep.mubr.bf16.mxu0 0
      %402 = vmatmul.mubr.bf16.gmra.mrb[0].mxu0 %v311
      %v403 = vpop.f32.mrb[0].mxu0
      %v404 = vadd.f32 0.0, %v403
      %v405 = vpop.f32.mrb[0].mxu0
      %v406 = vpop.f32.mrb[0].mxu0
      %v407 = vpop.f32.mrb[0].mxu0
      %408 = vdwg.mxu0
      %v409 = vxor.u32 %v348, 2147483648
      %v410 = vmul.f32 %v409, 1.442695
      %v411 = vpow.pop %v410
      %v412 = vadd.f32 %v411, 1.0
      %v413 = vrcp.pop %v412
      %v414 = vmul.f32 1.0, %v413
      %v415 = vmul.f32 %v348, %v414
      %v416 = vmul.f32 %v415, %v404
      %v417 = vpack.c.bf16 %v416, %v416
      %vm418 = vcmask 781312
      %419 = vst.msk [vmem:[%s272] sm:$0xf] %vm418, %v417
      %p420 = scmp.lt.s32.totalorder %s20, 1
      %s421 = scalar_select %p420, %s20, 1
      %p422 = scmp.lt.s32.totalorder %s21, 0
      %s423 = scalar_select %p422, %s21, 0
      %p424 = scmp.lt.s32.totalorder %s22, 0
      %s425 = scalar_select %p424, %s22, 0
      %s426 = sadd.s32 %s425, %s423
      %s427 = sadd.s32 %s426, %s421
      %s428 = smul.addr %s427, 4
      %s429 = scalar_lea.vmem %s4, %s428
      // Predicated region
      $region37: #{transformer_forward.14} parent=35 // pred_check
        %p430 = pneg %p157
      $region38: #{transformer_forward.14} parent=35 // pred_check_branch
        %432 = sbr.rel (%p430) target = $region40
      $region39: #{transformer_forward.14} parent=35 // pred_region
        _
      $region40: #{transformer_forward.14} parent=35 // pred_fallthru
        _
    $region36: #{transformer_forward.14} parent=5 // pred_fallthru
      _
    %p433 = scmp.le.s32.totalorder 2, %s10
    // Predicated region
    $region41: #{transformer_forward.14} parent=5 // pred_check
      %p434 = pneg %p433
    $region42: #{transformer_forward.14} parent=5 // pred_check_branch
      %436 = sbr.rel (%p434) target = $region44
    $region43: #{transformer_forward.14} parent=5 // pred_region
      %s437 = ssub.s32 %s10, 2
      // Predicated region
      $region45: #{transformer_forward.14} parent=43 // pred_check
        %p438 = pneg %p163
      $region46: #{transformer_forward.14} parent=43 // pred_check_branch
        %440 = sbr.rel (%p438) target = $region48
      $region47: #{transformer_forward.14} parent=43 // pred_region
        %p441 = scmp.lt.s32.totalorder %s23, 1
        %s442 = scalar_select %p441, %s23, 1
        %p443 = scmp.lt.s32.totalorder %s24, 0
        %s444 = scalar_select %p443, %s24, 0
        %p445 = scmp.lt.s32.totalorder %s25, 0
        %s446 = scalar_select %p445, %s25, 0
        %s447 = sadd.s32 %s446, %s444
        %s448 = sadd.s32 %s447, %s442
        %s449 = smul.addr %s448, 4
        %s450 = scalar_lea.vmem %s4, %s449
      $region48: #{transformer_forward.14} parent=43 // pred_fallthru
        _
    $region44: #{transformer_forward.14} parent=5 // pred_fallthru
      _
  $region6: #{transformer_forward.14} parent=0 // loop_footer
    %s14 = sadd.s32 1, %s10
  $region7: #{transformer_forward.14} parent=0 // loop_footer_branch
    %9 = sbr.rel target = $region3
  $region8: #{transformer_forward.14} parent=0 // loop_exit
    _

// kernel: transformer_forward.11
$region0: #{transformer_forward.11}
  #allocation0 [shape = 'u32[]', space=smem, size = 0x4, offset = 0x4, fixed_abs, tag = 'smem constant byte address 0x4 - core index']
  #allocation1 [shape = 'u32[144,128]{1,0:T(1,128)}', space=vmem, size = 0x12000, scoped, tag = 'internal scratch']
  %s0 = inlined_call_operand.vmem [shape: f32[2,8,32], index: 0, kind: input, shape index: {}]
  %s1 = inlined_call_operand.vmem [shape: f32[1,32], index: 1, kind: input, shape index: {}]
  %s2 = inlined_call_operand.vmem [shape: f32[8,4], index: 2, kind: input, shape index: {}]
  %s3 = inlined_call_operand.vmem [shape: f32[8,4], index: 3, kind: input, shape index: {}]
  %s4 = inlined_call_operand.vmem [shape: bf16[32,32], index: 4, kind: input, shape index: {}]
  %s5 = inlined_call_operand.vmem [shape: bf16[32,32], index: 5, kind: input, shape index: {}]
  %s6 = inlined_call_operand.vmem [shape: bf16[32,32], index: 6, kind: input, shape index: {}]
  %s7 = inlined_call_operand.vmem [shape: bf16[2,4,8,8], index: 7, kind: output, shape index: {0}]
  %s8 = inlined_call_operand.vmem [shape: bf16[2,4,8,8], index: 8, kind: output, shape index: {1}]
  %s9 = inlined_call_operand.vmem [shape: bf16[2,4,8,8], index: 9, kind: output, shape index: {2}]
  %10 = xla_tuple %s7, %s8, %s9
  %s11 = sld [smem:[#allocation0]]
  $region77: #{transformer_forward.11} parent=0
    _
  %s13 = ssub.s32 1, %s11
  %s14 = scalar_select 0, %s13, %s11
  loop: start=0, step=1, limit=4
  $region2: #{transformer_forward.11} parent=0 // loop_pre_header
    _
  $region3: #{transformer_forward.11} parent=0 // loop_header
    %s16 = sphi 0, %s20
    %p17 = scmp.ge.s32.totalorder %s16, 4
    %s23 = sphi 0, %s42
    %s24 = sphi 0, %s38
    %s25 = sphi 0, %s34
    %s26 = sphi 0, %s23
    %s27 = sphi 0, %s24
    %s28 = sphi 0, %s25
    %s29 = sphi 0, %s26
    %s30 = sphi 0, %s27
    %s31 = sphi 0, %s28
    %s47 = sphi 0, %s49
    %s50 = sphi 0, %s47
    %s51 = sphi 0, %s50
    %s67 = sphi 0, %s51
    %s71 = sphi 0, %s71
    %s73 = sphi 0, %s71
    %s74 = sphi 0, %s73
    %s88 = sphi 0, %s74
    %s94 = sphi 0, %s96
    %s97 = sphi 0, %s94
    %s98 = sphi 0, %s97
    %s114 = sphi 0, %s98
    %s120 = sphi 0, %s122
    %s123 = sphi 0, %s120
    %s124 = sphi 0, %s123
    %s140 = sphi 0, %s124
    %s146 = sphi 0, %s148
    %s149 = sphi 0, %s146
    %s150 = sphi 0, %s149
    %s166 = sphi 0, %s150
    %s172 = sphi 0, %s174
    %s175 = sphi 0, %s172
    %s176 = sphi 0, %s175
    %s192 = sphi 0, %s176
    %s198 = sphi 0, %s200
    %s201 = sphi 0, %s198
    %s202 = sphi 0, %s201
    %s218 = sphi 0, %s202
    %s228 = sphi 0, %s230
    %s231 = sphi 0, %s228
    %s232 = sphi 0, %s231
    %s248 = sphi 0, %s232
    %s258 = sphi 0, %s260
    %s261 = sphi 0, %s258
    %s262 = sphi 0, %s261
    %s278 = sphi 0, %s262
    %s288 = sphi 0, %s290
    %s291 = sphi 0, %s288
    %s292 = sphi 0, %s291
    %s308 = sphi 0, %s292
  $region4: #{transformer_forward.11} parent=0 // loop_header_branch
    %19 = sbr.rel (%p17) target = $region8
  $region5: #{transformer_forward.11} parent=0 // loop_body
    %s21 = ssub.s32 %s16, 1
    %s22 = ssub.s32 %s16, 2
    %s32 = sadd.s32 1, %s25
    %p33 = scmp.ge.s32.totalorder %s32, 1
    %s34 = scalar_select %p33, 0, %s32
    %s35 = sadd.s32 1, %s24
    %s36 = scalar_select %p33, %s35, %s24
    %p37 = scmp.ge.s32.totalorder %s36, 1
    %s38 = scalar_select %p37, 0, %s36
    %s39 = sadd.s32 1, %s23
    %s40 = scalar_select %p37, %s39, %s23
    %p41 = scmp.ge.s32.totalorder %s40, 2
    %s42 = scalar_select %p41, 0, %s40
    %s43 = ssub.s32 %s23, %s42
    %s44 = ssub.s32 %s24, %s38
    %s45 = sor.u32 %s43, %s44
    %p46 = scmp.eq.s32.totalorder %s45, 0
    %s48 = sadd.s32 %s47, 1
    %s49 = scalar_select %p46, %s47, %s48
    %p52 = pneg %p46
    %p53 = scmp.eq.s32.totalorder %s16, 1
    %p54 = por %p52, %p53
    %p55 = scmp.ne.s32.totalorder %s47, %s50
    %p56 = scmp.eq.s32.totalorder %s16, 0
    %p57 = por %p55, %p56
    %p58 = scmp.ne.s32.totalorder %s47, %s50
    %p59 = scmp.eq.s32.totalorder %s21, 1
    %p60 = por %p58, %p59
    %p61 = scmp.ne.s32.totalorder %s50, %s51
    %p62 = scmp.eq.s32.totalorder %s21, 0
    %p63 = por %p61, %p62
    %p64 = scmp.ne.s32.totalorder %s50, %s51
    %p65 = scmp.eq.s32.totalorder %s22, 1
    %p66 = por %p64, %p65
    %p68 = scmp.ne.s32.totalorder %s51, %s67
    %p69 = scmp.eq.s32.totalorder %s22, 0
    %p70 = por %p68, %p69
    %s72 = sadd.s32 %s71, 1
    %p75 = scmp.eq.s32.totalorder %s16, 1
    %p76 = scmp.ne.s32.totalorder %s71, %s73
    %p77 = scmp.eq.s32.totalorder %s16, 0
    %p78 = por %p76, %p77
    %p79 = scmp.ne.s32.totalorder %s71, %s73
    %p80 = scmp.eq.s32.totalorder %s21, 1
    %p81 = por %p79, %p80
    %p82 = scmp.ne.s32.totalorder %s73, %s74
    %p83 = scmp.eq.s32.totalorder %s21, 0
    %p84 = por %p82, %p83
    %p85 = scmp.ne.s32.totalorder %s73, %s74
    %p86 = scmp.eq.s32.totalorder %s22, 1
    %p87 = por %p85, %p86
    %p89 = scmp.ne.s32.totalorder %s74, %s88
    %p90 = scmp.eq.s32.totalorder %s22, 0
    %p91 = por %p89, %p90
    %s92 = ssub.s32 %s24, %s38
    %p93 = scmp.eq.s32.totalorder %s92, 0
    %s95 = sadd.s32 %s94, 1
    %s96 = scalar_select %p93, %s94, %s95
    %p99 = pneg %p93
    %p100 = scmp.eq.s32.totalorder %s16, 1
    %p101 = por %p99, %p100
    %p102 = scmp.ne.s32.totalorder %s94, %s97
    %p103 = scmp.eq.s32.totalorder %s16, 0
    %p104 = por %p102, %p103
    %p105 = scmp.ne.s32.totalorder %s94, %s97
    %p106 = scmp.eq.s32.totalorder %s21, 1
    %p107 = por %p105, %p106
    %p108 = scmp.ne.s32.totalorder %s97, %s98
    %p109 = scmp.eq.s32.totalorder %s21, 0
    %p110 = por %p108, %p109
    %p111 = scmp.ne.s32.totalorder %s97, %s98
    %p112 = scmp.eq.s32.totalorder %s22, 1
    %p113 = por %p111, %p112
    %p115 = scmp.ne.s32.totalorder %s98, %s114
    %p116 = scmp.eq.s32.totalorder %s22, 0
    %p117 = por %p115, %p116
    %s118 = ssub.s32 %s24, %s38
    %p119 = scmp.eq.s32.totalorder %s118, 0
    %s121 = sadd.s32 %s120, 1
    %s122 = scalar_select %p119, %s120, %s121
    %p125 = pneg %p119
    %p126 = scmp.eq.s32.totalorder %s16, 1
    %p127 = por %p125, %p126
    %p128 = scmp.ne.s32.totalorder %s120, %s123
    %p129 = scmp.eq.s32.totalorder %s16, 0
    %p130 = por %p128, %p129
    %p131 = scmp.ne.s32.totalorder %s120, %s123
    %p132 = scmp.eq.s32.totalorder %s21, 1
    %p133 = por %p131, %p132
    %p134 = scmp.ne.s32.totalorder %s123, %s124
    %p135 = scmp.eq.s32.totalorder %s21, 0
    %p136 = por %p134, %p135
    %p137 = scmp.ne.s32.totalorder %s123, %s124
    %p138 = scmp.eq.s32.totalorder %s22, 1
    %p139 = por %p137, %p138
    %p141 = scmp.ne.s32.totalorder %s124, %s140
    %p142 = scmp.eq.s32.totalorder %s22, 0
    %p143 = por %p141, %p142
    %s144 = ssub.s32 %s25, %s34
    %p145 = scmp.eq.s32.totalorder %s144, 0
    %s147 = sadd.s32 %s146, 1
    %s148 = scalar_select %p145, %s146, %s147
    %p151 = pneg %p145
    %p152 = scmp.eq.s32.totalorder %s16, 1
    %p153 = por %p151, %p152
    %p154 = scmp.ne.s32.totalorder %s146, %s149
    %p155 = scmp.eq.s32.totalorder %s16, 0
    %p156 = por %p154, %p155
    %p157 = scmp.ne.s32.totalorder %s146, %s149
    %p158 = scmp.eq.s32.totalorder %s21, 1
    %p159 = por %p157, %p158
    %p160 = scmp.ne.s32.totalorder %s149, %s150
    %p161 = scmp.eq.s32.totalorder %s21, 0
    %p162 = por %p160, %p161
    %p163 = scmp.ne.s32.totalorder %s149, %s150
    %p164 = scmp.eq.s32.totalorder %s22, 1
    %p165 = por %p163, %p164
    %p167 = scmp.ne.s32.totalorder %s150, %s166
    %p168 = scmp.eq.s32.totalorder %s22, 0
    %p169 = por %p167, %p168
    %s170 = ssub.s32 %s25, %s34
    %p171 = scmp.eq.s32.totalorder %s170, 0
    %s173 = sadd.s32 %s172, 1
    %s174 = scalar_select %p171, %s172, %s173
    %p177 = pneg %p171
    %p178 = scmp.eq.s32.totalorder %s16, 1
    %p179 = por %p177, %p178
    %p180 = scmp.ne.s32.totalorder %s172, %s175
    %p181 = scmp.eq.s32.totalorder %s16, 0
    %p182 = por %p180, %p181
    %p183 = scmp.ne.s32.totalorder %s172, %s175
    %p184 = scmp.eq.s32.totalorder %s21, 1
    %p185 = por %p183, %p184
    %p186 = scmp.ne.s32.totalorder %s175, %s176
    %p187 = scmp.eq.s32.totalorder %s21, 0
    %p188 = por %p186, %p187
    %p189 = scmp.ne.s32.totalorder %s175, %s176
    %p190 = scmp.eq.s32.totalorder %s22, 1
    %p191 = por %p189, %p190
    %p193 = scmp.ne.s32.totalorder %s176, %s192
    %p194 = scmp.eq.s32.totalorder %s22, 0
    %p195 = por %p193, %p194
    %s196 = ssub.s32 %s25, %s34
    %p197 = scmp.eq.s32.totalorder %s196, 0
    %s199 = sadd.s32 %s198, 1
    %s200 = scalar_select %p197, %s198, %s199
    %p203 = pneg %p197
    %p204 = scmp.eq.s32.totalorder %s16, 1
    %p205 = por %p203, %p204
    %p206 = scmp.ne.s32.totalorder %s198, %s201
    %p207 = scmp.eq.s32.totalorder %s16, 0
    %p208 = por %p206, %p207
    %p209 = scmp.ne.s32.totalorder %s198, %s201
    %p210 = scmp.eq.s32.totalorder %s21, 1
    %p211 = por %p209, %p210
    %p212 = scmp.ne.s32.totalorder %s201, %s202
    %p213 = scmp.eq.s32.totalorder %s21, 0
    %p214 = por %p212, %p213
    %p215 = scmp.ne.s32.totalorder %s201, %s202
    %p216 = scmp.eq.s32.totalorder %s22, 1
    %p217 = por %p215, %p216
    %p219 = scmp.ne.s32.totalorder %s202, %s218
    %p220 = scmp.eq.s32.totalorder %s22, 0
    %p221 = por %p219, %p220
    %s222 = ssub.s32 %s23, %s42
    %s223 = ssub.s32 %s25, %s34
    %s224 = sor.u32 %s222, %s223
    %s225 = ssub.s32 %s24, %s38
    %s226 = sor.u32 %s224, %s225
    %p227 = scmp.eq.s32.totalorder %s226, 0
    %s229 = sadd.s32 %s228, 1
    %s230 = scalar_select %p227, %s228, %s229
    %p233 = pneg %p227
    %p234 = scmp.eq.s32.totalorder %s16, 1
    %p235 = por %p233, %p234
    %p236 = scmp.ne.s32.totalorder %s228, %s231
    %p237 = scmp.eq.s32.totalorder %s16, 0
    %p238 = por %p236, %p237
    %p239 = scmp.ne.s32.totalorder %s228, %s231
    %p240 = scmp.eq.s32.totalorder %s21, 1
    %p241 = por %p239, %p240
    %p242 = scmp.ne.s32.totalorder %s231, %s232
    %p243 = scmp.eq.s32.totalorder %s21, 0
    %p244 = por %p242, %p243
    %p245 = scmp.ne.s32.totalorder %s231, %s232
    %p246 = scmp.eq.s32.totalorder %s22, 1
    %p247 = por %p245, %p246
    %p249 = scmp.ne.s32.totalorder %s232, %s248
    %p250 = scmp.eq.s32.totalorder %s22, 0
    %p251 = por %p249, %p250
    %s252 = ssub.s32 %s23, %s42
    %s253 = ssub.s32 %s25, %s34
    %s254 = sor.u32 %s252, %s253
    %s255 = ssub.s32 %s24, %s38
    %s256 = sor.u32 %s254, %s255
    %p257 = scmp.eq.s32.totalorder %s256, 0
    %s259 = sadd.s32 %s258, 1
    %s260 = scalar_select %p257, %s258, %s259
    %p263 = pneg %p257
    %p264 = scmp.eq.s32.totalorder %s16, 1
    %p265 = por %p263, %p264
    %p266 = scmp.ne.s32.totalorder %s258, %s261
    %p267 = scmp.eq.s32.totalorder %s16, 0
    %p268 = por %p266, %p267
    %p269 = scmp.ne.s32.totalorder %s258, %s261
    %p270 = scmp.eq.s32.totalorder %s21, 1
    %p271 = por %p269, %p270
    %p272 = scmp.ne.s32.totalorder %s261, %s262
    %p273 = scmp.eq.s32.totalorder %s21, 0
    %p274 = por %p272, %p273
    %p275 = scmp.ne.s32.totalorder %s261, %s262
    %p276 = scmp.eq.s32.totalorder %s22, 1
    %p277 = por %p275, %p276
    %p279 = scmp.ne.s32.totalorder %s262, %s278
    %p280 = scmp.eq.s32.totalorder %s22, 0
    %p281 = por %p279, %p280
    %s282 = ssub.s32 %s23, %s42
    %s283 = ssub.s32 %s25, %s34
    %s284 = sor.u32 %s282, %s283
    %s285 = ssub.s32 %s24, %s38
    %s286 = sor.u32 %s284, %s285
    %p287 = scmp.eq.s32.totalorder %s286, 0
    %s289 = sadd.s32 %s288, 1
    %s290 = scalar_select %p287, %s288, %s289
    %p293 = pneg %p287
    %p294 = scmp.eq.s32.totalorder %s16, 1
    %p295 = por %p293, %p294
    %p296 = scmp.ne.s32.totalorder %s288, %s291
    %p297 = scmp.eq.s32.totalorder %s16, 0
    %p298 = por %p296, %p297
    %p299 = scmp.ne.s32.totalorder %s288, %s291
    %p300 = scmp.eq.s32.totalorder %s21, 1
    %p301 = por %p299, %p300
    %p302 = scmp.ne.s32.totalorder %s291, %s292
    %p303 = scmp.eq.s32.totalorder %s21, 0
    %p304 = por %p302, %p303
    %p305 = scmp.ne.s32.totalorder %s291, %s292
    %p306 = scmp.eq.s32.totalorder %s22, 1
    %p307 = por %p305, %p306
    %p309 = scmp.ne.s32.totalorder %s292, %s308
    %p310 = scmp.eq.s32.totalorder %s22, 0
    %p311 = por %p309, %p310
    %p312 = scmp.le.s32.totalorder 1, %s16
    %p313 = scmp.lt.s32.totalorder %s16, 3
    %p314 = pnand %p312, %p313
    %p315 = pneg %p314
    // Predicated region
    $region9: #{transformer_forward.11} parent=5 // pred_check
      _
    $region10: #{transformer_forward.11} parent=5 // pred_check_branch
      %317 = sbr.rel (%p314) target = $region12
    $region11: #{transformer_forward.11} parent=5 // pred_region
      %s318 = ssub.s32 %s16, 1
      // Predicated region
      $region13: #{transformer_forward.11} parent=11 // pred_check
        %p319 = pneg %p84
      $region14: #{transformer_forward.11} parent=11 // pred_check_branch
        %321 = sbr.rel (%p319) target = $region16
      $region15: #{transformer_forward.11} parent=11 // pred_region
        _
      $region16: #{transformer_forward.11} parent=11 // pred_fallthru
        _
      // Predicated region
      $region17: #{transformer_forward.11} parent=11 // pred_check
        %p322 = pneg %p110
      $region18: #{transformer_forward.11} parent=11 // pred_check_branch
        %324 = sbr.rel (%p322) target = $region20
      $region19: #{transformer_forward.11} parent=11 // pred_region
        %p325 = scmp.lt.s32.totalorder %s27, 0
        %s326 = scalar_select %p325, %s27, 0
        %s327 = smul.addr %s326, 8
        %s328 = scalar_lea.vmem %s2, %s327
      $region20: #{transformer_forward.11} parent=11 // pred_fallthru
        _
      // Predicated region
      $region21: #{transformer_forward.11} parent=11 // pred_check
        %p329 = pneg %p136
      $region22: #{transformer_forward.11} parent=11 // pred_check_branch
        %331 = sbr.rel (%p329) target = $region24
      $region23: #{transformer_forward.11} parent=11 // pred_region
        %p332 = scmp.lt.s32.totalorder %s27, 0
        %s333 = scalar_select %p332, %s27, 0
        %s334 = smul.addr %s333, 8
        %s335 = scalar_lea.vmem %s3, %s334
      $region24: #{transformer_forward.11} parent=11 // pred_fallthru
        _
      // Predicated region
      $region25: #{transformer_forward.11} parent=11 // pred_check
        %p336 = pneg %p162
      $region26: #{transformer_forward.11} parent=11 // pred_check_branch
        %338 = sbr.rel (%p336) target = $region28
      $region27: #{transformer_forward.11} parent=11 // pred_region
        %p339 = scmp.lt.s32.totalorder %s28, 0
        %s340 = scalar_select %p339, %s28, 0
        %s341 = smul.addr %s340, 4
        %s342 = scalar_lea.vmem %s4, %s341
      $region28: #{transformer_forward.11} parent=11 // pred_fallthru
        _
      // Predicated region
      $region29: #{transformer_forward.11} parent=11 // pred_check
        %p343 = pneg %p188
      $region30: #{transformer_forward.11} parent=11 // pred_check_branch
        %345 = sbr.rel (%p343) target = $region32
      $region31: #{transformer_forward.11} parent=11 // pred_region
        %p346 = scmp.lt.s32.totalorder %s28, 0
        %s347 = scalar_select %p346, %s28, 0
        %s348 = smul.addr %s347, 4
        %s349 = scalar_lea.vmem %s5, %s348
      $region32: #{transformer_forward.11} parent=11 // pred_fallthru
        _
      // Predicated region
      $region33: #{transformer_forward.11} parent=11 // pred_check
        %p350 = pneg %p214
      $region34: #{transformer_forward.11} parent=11 // pred_check_branch
        %352 = sbr.rel (%p350) target = $region36
      $region35: #{transformer_forward.11} parent=11 // pred_region
        %p353 = scmp.lt.s32.totalorder %s28, 0
        %s354 = scalar_select %p353, %s28, 0
        %s355 = smul.addr %s354, 4
        %s356 = scalar_lea.vmem %s6, %s355
      $region36: #{transformer_forward.11} parent=11 // pred_fallthru
        _
    $region12: #{transformer_forward.11} parent=5 // pred_fallthru
      _
    %p357 = scmp.lt.s32.totalorder %s16, 2
    // Predicated region
    $region37: #{transformer_forward.11} parent=5 // pred_check
      %p358 = pneg %p357
    $region38: #{transformer_forward.11} parent=5 // pred_check_branch
      %360 = sbr.rel (%p358) target = $region40
    $region39: #{transformer_forward.11} parent=5 // pred_region
      // Predicated region
      $region41: #{transformer_forward.11} parent=39 // pred_check
        %p361 = pneg %p57
      $region42: #{transformer_forward.11} parent=39 // pred_check_branch
        %363 = sbr.rel (%p361) target = $region44
      $region43: #{transformer_forward.11} parent=39 // pred_region
        %p364 = scmp.lt.s32.totalorder %s23, 1
        %s365 = scalar_select %p364, %s23, 1
        %p366 = scmp.lt.s32.totalorder %s24, 0
        %s367 = scalar_select %p366, %s24, 0
        %s368 = sadd.s32 %s367, %s365
        %s369 = smul.addr %s368, 8
        %s370 = scalar_lea.vmem %s0, %s369
      $region44: #{transformer_forward.11} parent=39 // pred_fallthru
        _
    $region40: #{transformer_forward.11} parent=5 // pred_fallthru
      _
    %p371 = scmp.le.s32.totalorder 1, %s16
    %p372 = scmp.lt.s32.totalorder %s16, 3
    %p373 = pnand %p371, %p372
    %p374 = pneg %p373
    // Predicated region
    $region45: #{transformer_forward.11} parent=5 // pred_check
      _
    $region46: #{transformer_forward.11} parent=5 // pred_check_branch
      %376 = sbr.rel (%p373) target = $region48
    $region47: #{transformer_forward.11} parent=5 // pred_region
      %s377 = ssub.s32 %s16, 1
      %p378 = scmp.lt.s32.totalorder %s26, 1
      %s379 = scalar_select %p378, %s26, 1
      %p380 = scmp.lt.s32.totalorder %s27, 0
      %s381 = scalar_select %p380, %s27, 0
      %s382 = sadd.s32 %s381, %s379
      %s383 = smul.addr %s382, 8
      %s384 = scalar_lea.vmem %s0, %s383
      %p385 = pneg %p63
      %p386 = pneg %p60
      %p387 = pneg %p84
      %p388 = pneg %p81
      %p389 = scmp.lt.s32.totalorder %s27, 0
      %s390 = scalar_select %p389, %s27, 0
      %s391 = smul.addr %s390, 8
      %s392 = scalar_lea.vmem %s2, %s391
      %p393 = pneg %p110
      %p394 = pneg %p107
      %p395 = scmp.lt.s32.totalorder %s27, 0
      %s396 = scalar_select %p395, %s27, 0
      %s397 = smul.addr %s396, 8
      %s398 = scalar_lea.vmem %s3, %s397
      %p399 = pneg %p136
      %p400 = pneg %p133
      %p401 = scmp.lt.s32.totalorder %s28, 0
      %s402 = scalar_select %p401, %s28, 0
      %s403 = smul.addr %s402, 4
      %s404 = scalar_lea.vmem %s4, %s403
      %p405 = pneg %p162
      %p406 = pneg %p159
      %p407 = scmp.lt.s32.totalorder %s28, 0
      %s408 = scalar_select %p407, %s28, 0
      %s409 = smul.addr %s408, 4
      %s410 = scalar_lea.vmem %s5, %s409
      %p411 = pneg %p188
      %p412 = pneg %p185
      %p413 = scmp.lt.s32.totalorder %s28, 0
      %s414 = scalar_select %p413, %s28, 0
      %s415 = smul.addr %s414, 4
      %s416 = scalar_lea.vmem %s6, %s415
      %p417 = pneg %p214
      %p418 = pneg %p211
      %p419 = pneg %p244
      %p420 = pneg %p241
      %s421 = smul.u32 4, %s28
      %p422 = scmp.lt.s32.totalorder %s26, 1
      %s423 = scalar_select %p422, %s26, 1
      %p424 = scmp.lt.s32.totalorder %s421, 3
      %s425 = scalar_select %p424, %s421, 3
      %p426 = scmp.lt.s32.totalorder %s27, 0
      %s427 = scalar_select %p426, %s27, 0
      %s428 = sadd.s32 %s427, %s425
      %s429 = smul.addr %s423, 4
      %s430 = sadd.s32 %s428, %s429
      %s431 = smul.addr %s430, 4
      %s432 = scalar_lea.vmem %s7, %s431
      %p433 = pneg %p274
      %p434 = pneg %p271
      %s435 = smul.u32 4, %s28
      %p436 = scmp.lt.s32.totalorder %s26, 1
      %s437 = scalar_select %p436, %s26, 1
      %p438 = scmp.lt.s32.totalorder %s435, 3
      %s439 = scalar_select %p438, %s435, 3
      %p440 = scmp.lt.s32.totalorder %s27, 0
      %s441 = scalar_select %p440, %s27, 0
      %s442 = sadd.s32 %s441, %s439
      %s443 = smul.addr %s437, 4
      %s444 = sadd.s32 %s442, %s443
      %s445 = smul.addr %s444, 4
      %s446 = scalar_lea.vmem %s8, %s445
      %p447 = pneg %p304
      %p448 = pneg %p301
      %s449 = smul.u32 4, %s28
      %p450 = scmp.lt.s32.totalorder %s26, 1
      %s451 = scalar_select %p450, %s26, 1
      %p452 = scmp.lt.s32.totalorder %s449, 3
      %s453 = scalar_select %p452, %s449, 3
      %p454 = scmp.lt.s32.totalorder %s27, 0
      %s455 = scalar_select %p454, %s27, 0
      %s456 = sadd.s32 %s455, %s453
      %s457 = smul.addr %s451, 4
      %s458 = sadd.s32 %s456, %s457
      %s459 = smul.addr %s458, 4
      %s460 = scalar_lea.vmem %s9, %s459
      %p461 = scmp.lt.s32.totalorder %s26, 1
      %s462 = scalar_select %p461, %s26, 1
      %p463 = scmp.lt.s32.totalorder %s27, 0
      %s464 = scalar_select %p463, %s27, 0
      %s465 = sadd.s32 %s464, %s462
      %s466 = smul.addr %s465, 8
      %s467 = scalar_lea.vmem %s0, %s466
      %p468 = scmp.lt.s32.totalorder %s27, 0
      %s469 = scalar_select %p468, %s27, 0
      %s470 = smul.addr %s469, 8
      %s471 = scalar_lea.vmem %s2, %s470
      %p472 = scmp.lt.s32.totalorder %s27, 0
      %s473 = scalar_select %p472, %s27, 0
      %s474 = smul.addr %s473, 8
      %s475 = scalar_lea.vmem %s3, %s474
      %p476 = scmp.lt.s32.totalorder %s28, 0
      %s477 = scalar_select %p476, %s28, 0
      %s478 = smul.addr %s477, 4
      %s479 = scalar_lea.vmem %s4, %s478
      %p480 = scmp.lt.s32.totalorder %s28, 0
      %s481 = scalar_select %p480, %s28, 0
      %s482 = smul.addr %s481, 4
      %s483 = scalar_lea.vmem %s5, %s482
      %p484 = scmp.lt.s32.totalorder %s28, 0
      %s485 = scalar_select %p484, %s28, 0
      %s486 = smul.addr %s485, 4
      %s487 = scalar_lea.vmem %s6, %s486
      %s488 = smul.u32 4, %s28
      %p489 = scmp.lt.s32.totalorder %s26, 1
      %s490 = scalar_select %p489, %s26, 1
      %p491 = scmp.lt.s32.totalorder %s488, 3
      %s492 = scalar_select %p491, %s488, 3
      %p493 = scmp.lt.s32.totalorder %s27, 0
      %s494 = scalar_select %p493, %s27, 0
      %s495 = sadd.s32 %s494, %s492
      %s496 = smul.addr %s490, 4
      %s497 = sadd.s32 %s495, %s496
      %s498 = smul.addr %s497, 4
      %s499 = scalar_lea.vmem %s7, %s498
      %s500 = smul.u32 4, %s28
      %s501 = smul.u32 4, %s28
      %p502 = scmp.lt.s32.totalorder %s26, 1
      %s503 = scalar_select %p502, %s26, 1
      %p504 = scmp.lt.s32.totalorder %s501, 3
      %s505 = scalar_select %p504, %s501, 3
      %p506 = scmp.lt.s32.totalorder %s27, 0
      %s507 = scalar_select %p506, %s27, 0
      %s508 = sadd.s32 %s507, %s505
      %s509 = smul.addr %s503, 4
      %s510 = sadd.s32 %s508, %s509
      %s511 = smul.addr %s510, 4
      %s512 = scalar_lea.vmem %s8, %s511
      %s513 = smul.u32 4, %s28
      %s514 = smul.u32 4, %s28
      %p515 = scmp.lt.s32.totalorder %s26, 1
      %s516 = scalar_select %p515, %s26, 1
      %p517 = scmp.lt.s32.totalorder %s514, 3
      %s518 = scalar_select %p517, %s514, 3
      %p519 = scmp.lt.s32.totalorder %s27, 0
      %s520 = scalar_select %p519, %s27, 0
      %s521 = sadd.s32 %s520, %s518
      %s522 = smul.addr %s516, 4
      %s523 = sadd.s32 %s521, %s522
      %s524 = smul.addr %s523, 4
      %s525 = scalar_lea.vmem %s9, %s524
      %s526 = smul.u32 4, %s28
      %v528 = vld [vmem:[%s467] sm:$0xff]
      %v529 = vmul.f32 %v528, %v528
      %vm530 = vcmask 261120
      %v531 = vsel %vm530, %v529, 0.0
      %532 = vadd.xlane.f32.xlu0 %v531
      %v533 = vpop.xlane.xlu0 %532
      %v534 = vrcp.pop 32.0
      %v535 = vmul.f32 %v533, %v534
      %v536 = vadd.f32 %v535, 1e-05
      %v537 = vrsqrt.pop %v536
      %v538 = vmul.f32 %v528, %v537
      %v539 = vld [vmem:[%s1] sm:$0x1]
      %v541 = vlaneseq
      %v542 = vshrl.u32 %v541, 7
      %v543 = vsub.s32 0, %v542
      %v544 = vrot.slane %v539, %v543
      %v546 = vmul.f32 %v538, %v544
      %v547 = vpack.c.bf16 %v546, %v546
      %v548 = vld [vmem:[%s479] sm:$0xf]
      %v549 = vld [vmem:[%s479 + $0x4] sm:$0xf]
      %v550 = vld [vmem:[%s479 + $0x8] sm:$0xf]
      %v551 = vld [vmem:[%s479 + $0xc] sm:$0xf]
      %v556 = vunpack.c.l.b16 %v548
      %v557 = vunpack.c.l.b16 %v549
      %v558 = vunpack.c.l.b16 %v550
      %v559 = vunpack.c.l.b16 %v551
      %v560 = vpack.c.b16 %v557, %v556
      %v561 = vpack.c.b16 %v559, %v558
      %v565 = vsel %vm530, %v547, 0
      %567 = vmatprep.subr.bf16.mxu0 0
      %568 = vmatpush1.bf16.msra.mxu0 %v560
      %569 = vmatprep.subr.bf16.mxu0 0
      %570 = vmatpush1.bf16.msra.mxu0 %v561
      %571 = vmatprep.subr.bf16.mxu0 0
      %572 = vmatpush1.bf16.msra.mxu0 0
      %573 = vmatprep.subr.bf16.mxu0 0
      %574 = vmatpush1.bf16.msra.mxu0 0
      %575 = vmatprep.subr.bf16.mxu0 0
      %576 = vmatpush1.bf16.msra.mxu0 0
      %577 = vmatprep.subr.bf16.mxu0 0
      %578 = vmatpush1.bf16.msra.mxu0 0
      %579 = vmatprep.subr.bf16.mxu0 0
      %580 = vmatpush1.bf16.msra.mxu0 0
      %581 = vmatprep.subr.bf16.mxu0 0
      %582 = vmatpush1.bf16.msra.mxu0 0
      %583 = vmatprep.subr.bf16.mxu0 0
      %584 = vmatpush1.bf16.msra.mxu0 0
      %585 = vmatprep.subr.bf16.mxu0 0
      %586 = vmatpush1.bf16.msra.mxu0 0
      %587 = vmatprep.subr.bf16.mxu0 0
      %588 = vmatpush1.bf16.msra.mxu0 0
      %589 = vmatprep.subr.bf16.mxu0 0
      %590 = vmatpush1.bf16.msra.mxu0 0
      %591 = vmatprep.subr.bf16.mxu0 0
      %592 = vmatpush1.bf16.msra.mxu0 0
      %593 = vmatprep.subr.bf16.mxu0 0
      %594 = vmatpush1.bf16.msra.mxu0 0
      %595 = vmatprep.subr.bf16.mxu0 0
      %596 = vmatpush1.bf16.msra.mxu0 0
      %597 = vmatprep.subr.bf16.mxu0 0
      %598 = vmatpush1.bf16.msra.mxu0 0
      %599 = vmatprep.mubr.bf16.mxu0 0
      %600 = vmatmul.mubr.bf16.gmra.mrb[0].mxu0 %v565
      %v601 = vpop.f32.mrb[0].mxu0
      %v602 = vadd.f32 0.0, %v601
      %v603 = vpop.f32.mrb[0].mxu0
      %v604 = vpop.f32.mrb[0].mxu0
      %v605 = vpop.f32.mrb[0].mxu0
      %606 = vdwg.mxu0
      %v607 = vld [vmem:[%s483] sm:$0xf]
      %v608 = vld [vmem:[%s483 + $0x4] sm:$0xf]
      %v609 = vld [vmem:[%s483 + $0x8] sm:$0xf]
      %v610 = vld [vmem:[%s483 + $0xc] sm:$0xf]
      %v615 = vunpack.c.l.b16 %v607
      %v616 = vunpack.c.l.b16 %v608
      %v617 = vunpack.c.l.b16 %v609
      %v618 = vunpack.c.l.b16 %v610
      %v619 = vpack.c.b16 %v616, %v615
      %v620 = vpack.c.b16 %v618, %v617
      %623 = vmatprep.subr.bf16.mxu0 0
      %624 = vmatpush1.bf16.msra.mxu0 %v619
      %625 = vmatprep.subr.bf16.mxu0 0
      %626 = vmatpush1.bf16.msra.mxu0 %v620
      %627 = vmatprep.subr.bf16.mxu0 0
      %628 = vmatpush1.bf16.msra.mxu0 0
      %629 = vmatprep.subr.bf16.mxu0 0
      %630 = vmatpush1.bf16.msra.mxu0 0
      %631 = vmatprep.subr.bf16.mxu0 0
      %632 = vmatpush1.bf16.msra.mxu0 0
      %633 = vmatprep.subr.bf16.mxu0 0
      %634 = vmatpush1.bf16.msra.mxu0 0
      %635 = vmatprep.subr.bf16.mxu0 0
      %636 = vmatpush1.bf16.msra.mxu0 0
      %637 = vmatprep.subr.bf16.mxu0 0
      %638 = vmatpush1.bf16.msra.mxu0 0
      %639 = vmatprep.subr.bf16.mxu0 0
      %640 = vmatpush1.bf16.msra.mxu0 0
      %641 = vmatprep.subr.bf16.mxu0 0
      %642 = vmatpush1.bf16.msra.mxu0 0
      %643 = vmatprep.subr.bf16.mxu0 0
      %644 = vmatpush1.bf16.msra.mxu0 0
      %645 = vmatprep.subr.bf16.mxu0 0
      %646 = vmatpush1.bf16.msra.mxu0 0
      %647 = vmatprep.subr.bf16.mxu0 0
      %648 = vmatpush1.bf16.msra.mxu0 0
      %649 = vmatprep.subr.bf16.mxu0 0
      %650 = vmatpush1.bf16.msra.mxu0 0
      %651 = vmatprep.subr.bf16.mxu0 0
      %652 = vmatpush1.bf16.msra.mxu0 0
      %653 = vmatprep.subr.bf16.mxu0 0
      %654 = vmatpush1.bf16.msra.mxu0 0
      %655 = vmatprep.mubr.bf16.mxu0 0
      %656 = vmatmul.mubr.bf16.gmra.mrb[0].mxu0 %v565
      %v657 = vpop.f32.mrb[0].mxu0
      %v658 = vadd.f32 0.0, %v657
      %v659 = vpop.f32.mrb[0].mxu0
      %v660 = vpop.f32.mrb[0].mxu0
      %v661 = vpop.f32.mrb[0].mxu0
      %662 = vdwg.mxu0
      %v663 = vld [vmem:[%s487] sm:$0xf]
      %v664 = vld [vmem:[%s487 + $0x4] sm:$0xf]
      %v665 = vld [vmem:[%s487 + $0x8] sm:$0xf]
      %v666 = vld [vmem:[%s487 + $0xc] sm:$0xf]
      %v671 = vunpack.c.l.b16 %v663
      %v672 = vunpack.c.l.b16 %v664
      %v673 = vunpack.c.l.b16 %v665
      %v674 = vunpack.c.l.b16 %v666
      %v675 = vpack.c.b16 %v672, %v671
      %v676 = vpack.c.b16 %v674, %v673
      %679 = vmatprep.subr.bf16.mxu0 0
      %680 = vmatpush1.bf16.msra.mxu0 %v675
      %681 = vmatprep.subr.bf16.mxu0 0
      %682 = vmatpush1.bf16.msra.mxu0 %v676
      %683 = vmatprep.subr.bf16.mxu0 0
      %684 = vmatpush1.bf16.msra.mxu0 0
      %685 = vmatprep.subr.bf16.mxu0 0
      %686 = vmatpush1.bf16.msra.mxu0 0
      %687 = vmatprep.subr.bf16.mxu0 0
      %688 = vmatpush1.bf16.msra.mxu0 0
      %689 = vmatprep.subr.bf16.mxu0 0
      %690 = vmatpush1.bf16.msra.mxu0 0
      %691 = vmatprep.subr.bf16.mxu0 0
      %692 = vmatpush1.bf16.msra.mxu0 0
      %693 = vmatprep.subr.bf16.mxu0 0
      %694 = vmatpush1.bf16.msra.mxu0 0
      %695 = vmatprep.subr.bf16.mxu0 0
      %696 = vmatpush1.bf16.msra.mxu0 0
      %697 = vmatprep.subr.bf16.mxu0 0
      %698 = vmatpush1.bf16.msra.mxu0 0
      %699 = vmatprep.subr.bf16.mxu0 0
      %700 = vmatpush1.bf16.msra.mxu0 0
      %701 = vmatprep.subr.bf16.mxu0 0
      %702 = vmatpush1.bf16.msra.mxu0 0
      %703 = vmatprep.subr.bf16.mxu0 0
      %704 = vmatpush1.bf16.msra.mxu0 0
      %705 = vmatprep.subr.bf16.mxu0 0
      %706 = vmatpush1.bf16.msra.mxu0 0
      %707 = vmatprep.subr.bf16.mxu0 0
      %708 = vmatpush1.bf16.msra.mxu0 0
      %709 = vmatprep.subr.bf16.mxu0 0
      %710 = vmatpush1.bf16.msra.mxu0 0
      %711 = vmatprep.mubr.bf16.mxu0 0
      %712 = vmatmul.mubr.bf16.gmra.mrb[0].mxu0 %v565
      %v713 = vpop.f32.mrb[0].mxu0
      %v714 = vadd.f32 0.0, %v713
      %v715 = vpop.f32.mrb[0].mxu0
      %v716 = vpop.f32.mrb[0].mxu0
      %v717 = vpop.f32.mrb[0].mxu0
      %718 = vdwg.mxu0
      %v719 = vld [vmem:[%s471] sm:$0xff]
      %v720 = vld [vmem:[%s475] sm:$0xff]
      %v721 = vmul.f32 %v602, %v719
      %723 = vrot.lane.b32.xlu0 %v720, 4
      %v724 = vpop.permute.xlu0 %723
      %v726 = vmul.f32 %v602, %v724
      %728 = vrot.lane.b32.xlu0 %v726, 124
      %v729 = vpop.permute.xlu0 %728
      %v731 = vsub.f32 %v721, %v729
      %v732 = vmul.f32 %v602, %v720
      %734 = vrot.lane.b32.xlu0 %v719, 4
      %v735 = vpop.permute.xlu0 %734
      %v737 = vmul.f32 %v602, %v735
      %739 = vrot.lane.b32.xlu0 %v737, 124
      %v740 = vpop.permute.xlu0 %739
      %v742 = vadd.f32 %v732, %v740
      %744 = vrot.lane.b32.xlu0 %v742, 4
      %v745 = vpop.permute.xlu0 %744
      %vm747 = vcmask 31744
      %v748 = vsel %vm747, %v731, %v745
      %v749 = vmul.f32 %v748, 0.35355338
      %v750 = vpack.c.bf16 %v749, %v749
      %vm751 = vcmask 60416
      %752 = vst.msk [vmem:[%s499] sm:$0xf] %vm751, %v750
      %v753 = vmul.f32 %v658, %v719
      %v754 = vmul.f32 %v658, %v724
      %756 = vrot.lane.b32.xlu0 %v754, 124
      %v757 = vpop.permute.xlu0 %756
      %v759 = vsub.f32 %v753, %v757
      %v760 = vmul.f32 %v658, %v720
      %v761 = vmul.f32 %v658, %v735
      %763 = vrot.lane.b32.xlu0 %v761, 124
      %v764 = vpop.permute.xlu0 %763
      %v766 = vadd.f32 %v760, %v764
      %768 = vrot.lane.b32.xlu0 %v766, 4
      %v769 = vpop.permute.xlu0 %768
      %v771 = vsel %vm747, %v759, %v769
      %v772 = vpack.c.bf16 %v771, %v771
      %773 = vst.msk [vmem:[%s512] sm:$0xf] %vm751, %v772
      %v774 = vpack.c.bf16 %v714, %v714
      %775 = vst.msk [vmem:[%s525] sm:$0xf] %vm751, %v774
      %776 = vrot.lane.b32.xlu0 %v719, 8
      %v777 = vpop.permute.xlu0 %776
      %v779 = vmul.f32 %v602, %v777
      %780 = vrot.lane.b32.xlu0 %v720, 12
      %v781 = vpop.permute.xlu0 %780
      %v783 = vmul.f32 %v602, %v781
      %785 = vrot.lane.b32.xlu0 %v783, 124
      %v786 = vpop.permute.xlu0 %785
      %v788 = vsub.f32 %v779, %v786
      %789 = vrot.lane.b32.xlu0 %v720, 8
      %v790 = vpop.permute.xlu0 %789
      %v792 = vmul.f32 %v602, %v790
      %793 = vrot.lane.b32.xlu0 %v719, 12
      %v794 = vpop.permute.xlu0 %793
      %v796 = vmul.f32 %v602, %v794
      %798 = vrot.lane.b32.xlu0 %v796, 124
      %v799 = vpop.permute.xlu0 %798
      %v801 = vadd.f32 %v792, %v799
      %803 = vrot.lane.b32.xlu0 %v788, 120
      %v804 = vpop.permute.xlu0 %803
      %807 = vrot.lane.b32.xlu0 %v801, 124
      %v808 = vpop.permute.xlu0 %807
      %v810 = vsel %vm747, %v804, %v808
      %v811 = vmul.f32 %v810, 0.35355338
      %v812 = vpack.c.bf16 %v811, %v811
      %s813 = scalar_lea.vmem %s499, 4
      %814 = vst.msk [vmem:[%s813] sm:$0xf] %vm751, %v812
      %v815 = vmul.f32 %v658, %v777
      %v816 = vmul.f32 %v658, %v781
      %818 = vrot.lane.b32.xlu0 %v816, 124
      %v819 = vpop.permute.xlu0 %818
      %v821 = vsub.f32 %v815, %v819
      %v822 = vmul.f32 %v658, %v790
      %v823 = vmul.f32 %v658, %v794
      %825 = vrot.lane.b32.xlu0 %v823, 124
      %v826 = vpop.permute.xlu0 %825
      %v828 = vadd.f32 %v822, %v826
      %830 = vrot.lane.b32.xlu0 %v821, 120
      %v831 = vpop.permute.xlu0 %830
      %834 = vrot.lane.b32.xlu0 %v828, 124
      %v835 = vpop.permute.xlu0 %834
      %v837 = vsel %vm747, %v831, %v835
      %v838 = vpack.c.bf16 %v837, %v837
      %s839 = scalar_lea.vmem %s512, 4
      %840 = vst.msk [vmem:[%s839] sm:$0xf] %vm751, %v838
      %v842 = vunpack.c.l.b16 %v774
      %v843 = vpack.c.b16 %v842, %v842
      %844 = vrot.lane.b32.xlu0 %v843, 120
      %v845 = vpop.permute.xlu0 %844
      %s847 = scalar_lea.vmem %s525, 4
      %848 = vst.msk [vmem:[%s847] sm:$0xf] %vm751, %v845
      %849 = vrot.lane.b32.xlu0 %v719, 16
      %v850 = vpop.permute.xlu0 %849
      %v852 = vmul.f32 %v602, %v850
      %853 = vrot.lane.b32.xlu0 %v720, 20
      %v854 = vpop.permute.xlu0 %853
      %v856 = vmul.f32 %v602, %v854
      %858 = vrot.lane.b32.xlu0 %v856, 124
      %v859 = vpop.permute.xlu0 %858
      %v861 = vsub.f32 %v852, %v859
      %862 = vrot.lane.b32.xlu0 %v720, 16
      %v863 = vpop.permute.xlu0 %862
      %v865 = vmul.f32 %v602, %v863
      %866 = vrot.lane.b32.xlu0 %v719, 20
      %v867 = vpop.permute.xlu0 %866
      %v869 = vmul.f32 %v602, %v867
      %871 = vrot.lane.b32.xlu0 %v869, 124
      %v872 = vpop.permute.xlu0 %871
      %v874 = vadd.f32 %v865, %v872
      %876 = vrot.lane.b32.xlu0 %v861, 112
      %v877 = vpop.permute.xlu0 %876
      %880 = vrot.lane.b32.xlu0 %v874, 116
      %v881 = vpop.permute.xlu0 %880
      %v883 = vsel %vm747, %v877, %v881
      %v884 = vmul.f32 %v883, 0.35355338
      %v885 = vpack.c.bf16 %v884, %v884
      %s886 = scalar_lea.vmem %s499, 8
      %887 = vst.msk [vmem:[%s886] sm:$0xf] %vm751, %v885
      %v888 = vmul.f32 %v658, %v850
      %v889 = vmul.f32 %v658, %v854
      %891 = vrot.lane.b32.xlu0 %v889, 124
      %v892 = vpop.permute.xlu0 %891
      %v894 = vsub.f32 %v888, %v892
      %v895 = vmul.f32 %v658, %v863
      %v896 = vmul.f32 %v658, %v867
      %898 = vrot.lane.b32.xlu0 %v896, 124
      %v899 = vpop.permute.xlu0 %898
      %v901 = vadd.f32 %v895, %v899
      %903 = vrot.lane.b32.xlu0 %v894, 112
      %v904 = vpop.permute.xlu0 %903
      %907 = vrot.lane.b32.xlu0 %v901, 116
      %v908 = vpop.permute.xlu0 %907
      %v910 = vsel %vm747, %v904, %v908
      %v911 = vpack.c.bf16 %v910, %v910
      %s912 = scalar_lea.vmem %s512, 8
      %913 = vst.msk [vmem:[%s912] sm:$0xf] %vm751, %v911
      %914 = vrot.lane.b32.xlu0 %v843, 112
      %v915 = vpop.permute.xlu0 %914
      %s917 = scalar_lea.vmem %s525, 8
      %918 = vst.msk [vmem:[%s917] sm:$0xf] %vm751, %v915
      %919 = vrot.lane.b32.xlu0 %v719, 24
      %v920 = vpop.permute.xlu0 %919
      %v922 = vmul.f32 %v602, %v920
      %923 = vrot.lane.b32.xlu0 %v720, 28
      %v924 = vpop.permute.xlu0 %923
      %v926 = vmul.f32 %v602, %v924
      %928 = vrot.lane.b32.xlu0 %v926, 124
      %v929 = vpop.permute.xlu0 %928
      %v931 = vsub.f32 %v922, %v929
      %932 = vrot.lane.b32.xlu0 %v720, 24
      %v933 = vpop.permute.xlu0 %932
      %v935 = vmul.f32 %v602, %v933
      %936 = vrot.lane.b32.xlu0 %v719, 28
      %v937 = vpop.permute.xlu0 %936
      %v939 = vmul.f32 %v602, %v937
      %941 = vrot.lane.b32.xlu0 %v939, 124
      %v942 = vpop.permute.xlu0 %941
      %v944 = vadd.f32 %v935, %v942
      %946 = vrot.lane.b32.xlu0 %v931, 104
      %v947 = vpop.permute.xlu0 %946
      %950 = vrot.lane.b32.xlu0 %v944, 108
      %v951 = vpop.permute.xlu0 %950
      %v953 = vsel %vm747, %v947, %v951
      %v954 = vmul.f32 %v953, 0.35355338
      %v955 = vpack.c.bf16 %v954, %v954
      %s956 = scalar_lea.vmem %s499, 12
      %957 = vst.msk [vmem:[%s956] sm:$0xf] %vm751, %v955
      %v958 = vmul.f32 %v658, %v920
      %v959 = vmul.f32 %v658, %v924
      %961 = vrot.lane.b32.xlu0 %v959, 124
      %v962 = vpop.permute.xlu0 %961
      %v964 = vsub.f32 %v958, %v962
      %v965 = vmul.f32 %v658, %v933
      %v966 = vmul.f32 %v658, %v937
      %968 = vrot.lane.b32.xlu0 %v966, 124
      %v969 = vpop.permute.xlu0 %968
      %v971 = vadd.f32 %v965, %v969
      %973 = vrot.lane.b32.xlu0 %v964, 104
      %v974 = vpop.permute.xlu0 %973
      %977 = vrot.lane.b32.xlu0 %v971, 108
      %v978 = vpop.permute.xlu0 %977
      %v980 = vsel %vm747, %v974, %v978
      %v981 = vpack.c.bf16 %v980, %v980
      %s982 = scalar_lea.vmem %s512, 12
      %983 = vst.msk [vmem:[%s982] sm:$0xf] %vm751, %v981
      %984 = vrot.lane.b32.xlu0 %v843, 104
      %v985 = vpop.permute.xlu0 %984
      %s987 = scalar_lea.vmem %s525, 12
      %988 = vst.msk [vmem:[%s987] sm:$0xf] %vm751, %v985
      %s989 = smul.u32 4, %s28
      %p990 = scmp.lt.s32.totalorder %s26, 1
      %s991 = scalar_select %p990, %s26, 1
      %p992 = scmp.lt.s32.totalorder %s989, 3
      %s993 = scalar_select %p992, %s989, 3
      %p994 = scmp.lt.s32.totalorder %s27, 0
      %s995 = scalar_select %p994, %s27, 0
      %s996 = sadd.s32 %s995, %s993
      %s997 = smul.addr %s991, 4
      %s998 = sadd.s32 %s996, %s997
      %s999 = smul.addr %s998, 4
      %s1000 = scalar_lea.vmem %s7, %s999
      %s1001 = smul.u32 4, %s28
      %p1002 = scmp.lt.s32.totalorder %s26, 1
      %s1003 = scalar_select %p1002, %s26, 1
      %p1004 = scmp.lt.s32.totalorder %s1001, 3
      %s1005 = scalar_select %p1004, %s1001, 3
      %p1006 = scmp.lt.s32.totalorder %s27, 0
      %s1007 = scalar_select %p1006, %s27, 0
      %s1008 = sadd.s32 %s1007, %s1005
      %s1009 = smul.addr %s1003, 4
      %s1010 = sadd.s32 %s1008, %s1009
      %s1011 = smul.addr %s1010, 4
      %s1012 = scalar_lea.vmem %s8, %s1011
      %s1013 = smul.u32 4, %s28
      %p1014 = scmp.lt.s32.totalorder %s26, 1
      %s1015 = scalar_select %p1014, %s26, 1
      %p1016 = scmp.lt.s32.totalorder %s1013, 3
      %s1017 = scalar_select %p1016, %s1013, 3
      %p1018 = scmp.lt.s32.totalorder %s27, 0
      %s1019 = scalar_select %p1018, %s27, 0
      %s1020 = sadd.s32 %s1019, %s1017
      %s1021 = smul.addr %s1015, 4
      %s1022 = sadd.s32 %s1020, %s1021
      %s1023 = smul.addr %s1022, 4
      %s1024 = scalar_lea.vmem %s9, %s1023
      // Predicated region
      $region49: #{transformer_forward.11} parent=47 // pred_check
        %p1025 = pneg %p241
      $region50: #{transformer_forward.11} parent=47 // pred_check_branch
        %1027 = sbr.rel (%p1025) target = $region52
      $region51: #{transformer_forward.11} parent=47 // pred_region
        %s1028 = smul.u32 4, %s28
      $region52: #{transformer_forward.11} parent=47 // pred_fallthru
        _
      // Predicated region
      $region53: #{transformer_forward.11} parent=47 // pred_check
        %p1029 = pneg %p271
      $region54: #{transformer_forward.11} parent=47 // pred_check_branch
        %1031 = sbr.rel (%p1029) target = $region56
      $region55: #{transformer_forward.11} parent=47 // pred_region
        %s1032 = smul.u32 4, %s28
      $region56: #{transformer_forward.11} parent=47 // pred_fallthru
        _
      // Predicated region
      $region57: #{transformer_forward.11} parent=47 // pred_check
        %p1033 = pneg %p301
      $region58: #{transformer_forward.11} parent=47 // pred_check_branch
        %1035 = sbr.rel (%p1033) target = $region60
      $region59: #{transformer_forward.11} parent=47 // pred_region
        %s1036 = smul.u32 4, %s28
      $region60: #{transformer_forward.11} parent=47 // pred_fallthru
        _
    $region48: #{transformer_forward.11} parent=5 // pred_fallthru
      _
    %p1037 = scmp.le.s32.totalorder 2, %s16
    // Predicated region
    $region61: #{transformer_forward.11} parent=5 // pred_check
      %p1038 = pneg %p1037
    $region62: #{transformer_forward.11} parent=5 // pred_check_branch
      %1040 = sbr.rel (%p1038) target = $region64
    $region63: #{transformer_forward.11} parent=5 // pred_region
      %s1041 = ssub.s32 %s16, 2
      // Predicated region
      $region65: #{transformer_forward.11} parent=63 // pred_check
        %p1042 = pneg %p247
      $region66: #{transformer_forward.11} parent=63 // pred_check_branch
        %1044 = sbr.rel (%p1042) target = $region68
      $region67: #{transformer_forward.11} parent=63 // pred_region
        %s1045 = smul.u32 4, %s31
        %p1046 = scmp.lt.s32.totalorder %s29, 1
        %s1047 = scalar_select %p1046, %s29, 1
        %p1048 = scmp.lt.s32.totalorder %s1045, 3
        %s1049 = scalar_select %p1048, %s1045, 3
        %p1050 = scmp.lt.s32.totalorder %s30, 0
        %s1051 = scalar_select %p1050, %s30, 0
        %s1052 = sadd.s32 %s1051, %s1049
        %s1053 = smul.addr %s1047, 4
        %s1054 = sadd.s32 %s1052, %s1053
        %s1055 = smul.addr %s1054, 4
        %s1056 = scalar_lea.vmem %s7, %s1055
      $region68: #{transformer_forward.11} parent=63 // pred_fallthru
        _
      // Predicated region
      $region69: #{transformer_forward.11} parent=63 // pred_check
        %p1057 = pneg %p277
      $region70: #{transformer_forward.11} parent=63 // pred_check_branch
        %1059 = sbr.rel (%p1057) target = $region72
      $region71: #{transformer_forward.11} parent=63 // pred_region
        %s1060 = smul.u32 4, %s31
        %p1061 = scmp.lt.s32.totalorder %s29, 1
        %s1062 = scalar_select %p1061, %s29, 1
        %p1063 = scmp.lt.s32.totalorder %s1060, 3
        %s1064 = scalar_select %p1063, %s1060, 3
        %p1065 = scmp.lt.s32.totalorder %s30, 0
        %s1066 = scalar_select %p1065, %s30, 0
        %s1067 = sadd.s32 %s1066, %s1064
        %s1068 = smul.addr %s1062, 4
        %s1069 = sadd.s32 %s1067, %s1068
        %s1070 = smul.addr %s1069, 4
        %s1071 = scalar_lea.vmem %s8, %s1070
      $region72: #{transformer_forward.11} parent=63 // pred_fallthru
        _
      // Predicated region
      $region73: #{transformer_forward.11} parent=63 // pred_check
        %p1072 = pneg %p307
      $region74: #{transformer_forward.11} parent=63 // pred_check_branch
        %1074 = sbr.rel (%p1072) target = $region76
      $region75: #{transformer_forward.11} parent=63 // pred_region
        %s1075 = smul.u32 4, %s31
        %p1076 = scmp.lt.s32.totalorder %s29, 1
        %s1077 = scalar_select %p1076, %s29, 1
        %p1078 = scmp.lt.s32.totalorder %s1075, 3
        %s1079 = scalar_select %p1078, %s1075, 3
        %p1080 = scmp.lt.s32.totalorder %s30, 0
        %s1081 = scalar_select %p1080, %s30, 0
        %s1082 = sadd.s32 %s1081, %s1079
        %s1083 = smul.addr %s1077, 4
        %s1084 = sadd.s32 %s1082, %s1083
        %s1085 = smul.addr %s1084, 4
        %s1086 = scalar_lea.vmem %s9, %s1085
      $region76: #{transformer_forward.11} parent=63 // pred_fallthru
        _
    $region64: #{transformer_forward.11} parent=5 // pred_fallthru
      _
  $region6: #{transformer_forward.11} parent=0 // loop_footer
    %s20 = sadd.s32 1, %s16
  $region7: #{transformer_forward.11} parent=0 // loop_footer_branch
    %15 = sbr.rel target = $region3
  $region8: #{transformer_forward.11} parent=0 // loop_exit
    _

// kernel: transformer_forward.15
$region0: #{transformer_forward.15}
  #allocation0 [shape = 'u32[]', space=smem, size = 0x4, offset = 0x4, fixed_abs, tag = 'smem constant byte address 0x4 - core index']
  #allocation1 [shape = 'u32[144,128]{1,0:T(1,128)}', space=vmem, size = 0x12000, scoped, tag = 'internal scratch']
  #allocation2 [shape = 'f32[8,32]{1,0:T(8,128)}', space=vmem, size = 0x1000, scoped, tag = 'scratch operand']
  %s0 = inlined_call_operand.vmem [shape: bf16[2,8,96], index: 0, kind: input, shape index: {}]
  %s1 = inlined_call_operand.vmem [shape: bf16[96,32], index: 1, kind: input, shape index: {}]
  %s2 = inlined_call_operand.vmem [shape: f32[2,8,32], index: 2, kind: input, shape index: {}, may-alias: {2,3}]
  %s3 = inlined_call_operand.vmem [shape: f32[2,8,32], index: 3, kind: output, shape index: {}, may-alias: {2,3}]
  %s4 = sld [smem:[#allocation0]]
  $region53: #{transformer_forward.15} parent=0
    _
  %s6 = ssub.s32 1, %s4
  %s7 = scalar_select 0, %s6, %s4
  loop: start=0, step=1, limit=4
  $region2: #{transformer_forward.15} parent=0 // loop_pre_header
    _
  $region3: #{transformer_forward.15} parent=0 // loop_header
    %s9 = sphi 0, %s13
    %p10 = scmp.ge.s32.totalorder %s9, 4
    %s16 = sphi 0, %s42
    %s17 = sphi 0, %s38
    %s18 = sphi 0, %s34
    %s19 = sphi 0, %s30
    %s20 = sphi 0, %s16
    %s21 = sphi 0, %s17
    %s22 = sphi 0, %s18
    %s23 = sphi 0, %s19
    %s24 = sphi 0, %s20
    %s25 = sphi 0, %s21
    %s26 = sphi 0, %s22
    %s27 = sphi 0, %s23
    %s49 = sphi 0, %s51
    %s52 = sphi 0, %s49
    %s53 = sphi 0, %s52
    %s69 = sphi 0, %s53
    %s77 = sphi 0, %s79
    %s80 = sphi 0, %s77
    %s81 = sphi 0, %s80
    %s97 = sphi 0, %s81
    %s107 = sphi 0, %s109
    %s110 = sphi 0, %s107
    %s111 = sphi 0, %s110
    %s127 = sphi 0, %s111
    %s137 = sphi 0, %s139
    %s140 = sphi 0, %s137
    %s141 = sphi 0, %s140
    %s157 = sphi 0, %s141
  $region4: #{transformer_forward.15} parent=0 // loop_header_branch
    %12 = sbr.rel (%p10) target = $region8
  $region5: #{transformer_forward.15} parent=0 // loop_body
    %s14 = ssub.s32 %s9, 1
    %s15 = ssub.s32 %s9, 2
    %s28 = sadd.s32 1, %s19
    %p29 = scmp.ge.s32.totalorder %s28, 1
    %s30 = scalar_select %p29, 0, %s28
    %s31 = sadd.s32 1, %s18
    %s32 = scalar_select %p29, %s31, %s18
    %p33 = scmp.ge.s32.totalorder %s32, 1
    %s34 = scalar_select %p33, 0, %s32
    %s35 = sadd.s32 1, %s17
    %s36 = scalar_select %p33, %s35, %s17
    %p37 = scmp.ge.s32.totalorder %s36, 1
    %s38 = scalar_select %p37, 0, %s36
    %s39 = sadd.s32 1, %s16
    %s40 = scalar_select %p37, %s39, %s16
    %p41 = scmp.ge.s32.totalorder %s40, 2
    %s42 = scalar_select %p41, 0, %s40
    %s43 = ssub.s32 %s16, %s42
    %s44 = ssub.s32 %s17, %s38
    %s45 = sor.u32 %s43, %s44
    %s46 = ssub.s32 %s19, %s30
    %s47 = sor.u32 %s45, %s46
    %p48 = scmp.eq.s32.totalorder %s47, 0
    %s50 = sadd.s32 %s49, 1
    %s51 = scalar_select %p48, %s49, %s50
    %p54 = pneg %p48
    %p55 = scmp.eq.s32.totalorder %s9, 1
    %p56 = por %p54, %p55
    %p57 = scmp.ne.s32.totalorder %s49, %s52
    %p58 = scmp.eq.s32.totalorder %s9, 0
    %p59 = por %p57, %p58
    %p60 = scmp.ne.s32.totalorder %s49, %s52
    %p61 = scmp.eq.s32.totalorder %s14, 1
    %p62 = por %p60, %p61
    %p63 = scmp.ne.s32.totalorder %s52, %s53
    %p64 = scmp.eq.s32.totalorder %s14, 0
    %p65 = por %p63, %p64
    %p66 = scmp.ne.s32.totalorder %s52, %s53
    %p67 = scmp.eq.s32.totalorder %s15, 1
    %p68 = por %p66, %p67
    %p70 = scmp.ne.s32.totalorder %s53, %s69
    %p71 = scmp.eq.s32.totalorder %s15, 0
    %p72 = por %p70, %p71
    %s73 = ssub.s32 %s19, %s30
    %s74 = ssub.s32 %s18, %s34
    %s75 = sor.u32 %s73, %s74
    %p76 = scmp.eq.s32.totalorder %s75, 0
    %s78 = sadd.s32 %s77, 1
    %s79 = scalar_select %p76, %s77, %s78
    %p82 = pneg %p76
    %p83 = scmp.eq.s32.totalorder %s9, 1
    %p84 = por %p82, %p83
    %p85 = scmp.ne.s32.totalorder %s77, %s80
    %p86 = scmp.eq.s32.totalorder %s9, 0
    %p87 = por %p85, %p86
    %p88 = scmp.ne.s32.totalorder %s77, %s80
    %p89 = scmp.eq.s32.totalorder %s14, 1
    %p90 = por %p88, %p89
    %p91 = scmp.ne.s32.totalorder %s80, %s81
    %p92 = scmp.eq.s32.totalorder %s14, 0
    %p93 = por %p91, %p92
    %p94 = scmp.ne.s32.totalorder %s80, %s81
    %p95 = scmp.eq.s32.totalorder %s15, 1
    %p96 = por %p94, %p95
    %p98 = scmp.ne.s32.totalorder %s81, %s97
    %p99 = scmp.eq.s32.totalorder %s15, 0
    %p100 = por %p98, %p99
    %s101 = ssub.s32 %s16, %s42
    %s102 = ssub.s32 %s17, %s38
    %s103 = sor.u32 %s101, %s102
    %s104 = ssub.s32 %s18, %s34
    %s105 = sor.u32 %s103, %s104
    %p106 = scmp.eq.s32.totalorder %s105, 0
    %s108 = sadd.s32 %s107, 1
    %s109 = scalar_select %p106, %s107, %s108
    %p112 = pneg %p106
    %p113 = scmp.eq.s32.totalorder %s9, 1
    %p114 = por %p112, %p113
    %p115 = scmp.ne.s32.totalorder %s107, %s110
    %p116 = scmp.eq.s32.totalorder %s9, 0
    %p117 = por %p115, %p116
    %p118 = scmp.ne.s32.totalorder %s107, %s110
    %p119 = scmp.eq.s32.totalorder %s14, 1
    %p120 = por %p118, %p119
    %p121 = scmp.ne.s32.totalorder %s110, %s111
    %p122 = scmp.eq.s32.totalorder %s14, 0
    %p123 = por %p121, %p122
    %p124 = scmp.ne.s32.totalorder %s110, %s111
    %p125 = scmp.eq.s32.totalorder %s15, 1
    %p126 = por %p124, %p125
    %p128 = scmp.ne.s32.totalorder %s111, %s127
    %p129 = scmp.eq.s32.totalorder %s15, 0
    %p130 = por %p128, %p129
    %s131 = ssub.s32 %s16, %s42
    %s132 = ssub.s32 %s17, %s38
    %s133 = sor.u32 %s131, %s132
    %s134 = ssub.s32 %s18, %s34
    %s135 = sor.u32 %s133, %s134
    %p136 = scmp.eq.s32.totalorder %s135, 0
    %s138 = sadd.s32 %s137, 1
    %s139 = scalar_select %p136, %s137, %s138
    %p142 = pneg %p136
    %p143 = scmp.eq.s32.totalorder %s9, 1
    %p144 = por %p142, %p143
    %p145 = scmp.ne.s32.totalorder %s137, %s140
    %p146 = scmp.eq.s32.totalorder %s9, 0
    %p147 = por %p145, %p146
    %p148 = scmp.ne.s32.totalorder %s137, %s140
    %p149 = scmp.eq.s32.totalorder %s14, 1
    %p150 = por %p148, %p149
    %p151 = scmp.ne.s32.totalorder %s140, %s141
    %p152 = scmp.eq.s32.totalorder %s14, 0
    %p153 = por %p151, %p152
    %p154 = scmp.ne.s32.totalorder %s140, %s141
    %p155 = scmp.eq.s32.totalorder %s15, 1
    %p156 = por %p154, %p155
    %p158 = scmp.ne.s32.totalorder %s141, %s157
    %p159 = scmp.eq.s32.totalorder %s15, 0
    %p160 = por %p158, %p159
    %p161 = scmp.le.s32.totalorder 1, %s9
    %p162 = scmp.lt.s32.totalorder %s9, 3
    %p163 = pnand %p161, %p162
    %p164 = pneg %p163
    // Predicated region
    $region9: #{transformer_forward.15} parent=5 // pred_check
      _
    $region10: #{transformer_forward.15} parent=5 // pred_check_branch
      %166 = sbr.rel (%p163) target = $region12
    $region11: #{transformer_forward.15} parent=5 // pred_region
      %s167 = ssub.s32 %s9, 1
      // Predicated region
      $region13: #{transformer_forward.15} parent=11 // pred_check
        %p168 = pneg %p93
      $region14: #{transformer_forward.15} parent=11 // pred_check_branch
        %170 = sbr.rel (%p168) target = $region16
      $region15: #{transformer_forward.15} parent=11 // pred_region
        %s171 = smul.u32 12, %s23
        %p172 = scmp.lt.s32.totalorder %s171, 11
        %s173 = scalar_select %p172, %s171, 11
        %p174 = scmp.lt.s32.totalorder %s22, 0
        %s175 = scalar_select %p174, %s22, 0
        %s176 = sadd.s32 %s175, %s173
        %s177 = smul.addr %s176, 4
        %s178 = scalar_lea.vmem %s1, %s177
        %s179 = smul.u32 12, %s23
      $region16: #{transformer_forward.15} parent=11 // pred_fallthru
        _
    $region12: #{transformer_forward.15} parent=5 // pred_fallthru
      _
    %p180 = scmp.lt.s32.totalorder %s9, 2
    // Predicated region
    $region17: #{transformer_forward.15} parent=5 // pred_check
      %p181 = pneg %p180
    $region18: #{transformer_forward.15} parent=5 // pred_check_branch
      %183 = sbr.rel (%p181) target = $region20
    $region19: #{transformer_forward.15} parent=5 // pred_region
      // Predicated region
      $region21: #{transformer_forward.15} parent=19 // pred_check
        %p184 = pneg %p59
      $region22: #{transformer_forward.15} parent=19 // pred_check_branch
        %186 = sbr.rel (%p184) target = $region24
      $region23: #{transformer_forward.15} parent=19 // pred_region
        %p187 = scmp.lt.s32.totalorder %s16, 1
        %s188 = scalar_select %p187, %s16, 1
        %p189 = scmp.lt.s32.totalorder %s17, 0
        %s190 = scalar_select %p189, %s17, 0
        %p191 = scmp.lt.s32.totalorder %s19, 0
        %s192 = scalar_select %p191, %s19, 0
        %s193 = sadd.s32 %s192, %s190
        %s194 = sadd.s32 %s193, %s188
        %s195 = smul.addr %s194, 4
        %s196 = scalar_lea.vmem %s0, %s195
      $region24: #{transformer_forward.15} parent=19 // pred_fallthru
        _
      // Predicated region
      $region25: #{transformer_forward.15} parent=19 // pred_check
        %p197 = pneg %p117
      $region26: #{transformer_forward.15} parent=19 // pred_check_branch
        %199 = sbr.rel (%p197) target = $region28
      $region27: #{transformer_forward.15} parent=19 // pred_region
        %p200 = scmp.lt.s32.totalorder %s16, 1
        %s201 = scalar_select %p200, %s16, 1
        %p202 = scmp.lt.s32.totalorder %s17, 0
        %s203 = scalar_select %p202, %s17, 0
        %p204 = scmp.lt.s32.totalorder %s18, 0
        %s205 = scalar_select %p204, %s18, 0
        %s206 = sadd.s32 %s205, %s203
        %s207 = sadd.s32 %s206, %s201
        %s208 = smul.addr %s207, 8
        %s209 = scalar_lea.vmem %s2, %s208
      $region28: #{transformer_forward.15} parent=19 // pred_fallthru
        _
    $region20: #{transformer_forward.15} parent=5 // pred_fallthru
      _
    %p210 = scmp.le.s32.totalorder 1, %s9
    %p211 = scmp.lt.s32.totalorder %s9, 3
    %p212 = pnand %p210, %p211
    %p213 = pneg %p212
    // Predicated region
    $region29: #{transformer_forward.15} parent=5 // pred_check
      _
    $region30: #{transformer_forward.15} parent=5 // pred_check_branch
      %215 = sbr.rel (%p212) target = $region32
    $region31: #{transformer_forward.15} parent=5 // pred_region
      %s216 = ssub.s32 %s9, 1
      %p217 = scmp.lt.s32.totalorder %s20, 1
      %s218 = scalar_select %p217, %s20, 1
      %p219 = scmp.lt.s32.totalorder %s21, 0
      %s220 = scalar_select %p219, %s21, 0
      %p221 = scmp.lt.s32.totalorder %s23, 0
      %s222 = scalar_select %p221, %s23, 0
      %s223 = sadd.s32 %s222, %s220
      %s224 = sadd.s32 %s223, %s218
      %s225 = smul.addr %s224, 4
      %s226 = scalar_lea.vmem %s0, %s225
      %p227 = pneg %p65
      %p228 = pneg %p62
      %s229 = smul.u32 12, %s23
      %p230 = scmp.lt.s32.totalorder %s229, 11
      %s231 = scalar_select %p230, %s229, 11
      %p232 = scmp.lt.s32.totalorder %s22, 0
      %s233 = scalar_select %p232, %s22, 0
      %s234 = sadd.s32 %s233, %s231
      %s235 = smul.addr %s234, 4
      %s236 = scalar_lea.vmem %s1, %s235
      %p237 = pneg %p93
      %p238 = pneg %p90
      %p239 = scmp.lt.s32.totalorder %s20, 1
      %s240 = scalar_select %p239, %s20, 1
      %p241 = scmp.lt.s32.totalorder %s21, 0
      %s242 = scalar_select %p241, %s21, 0
      %p243 = scmp.lt.s32.totalorder %s22, 0
      %s244 = scalar_select %p243, %s22, 0
      %s245 = sadd.s32 %s244, %s242
      %s246 = sadd.s32 %s245, %s240
      %s247 = smul.addr %s246, 8
      %s248 = scalar_lea.vmem %s2, %s247
      %p249 = pneg %p123
      %p250 = pneg %p120
      %p251 = pneg %p153
      %p252 = pneg %p150
      %p253 = scmp.lt.s32.totalorder %s20, 1
      %s254 = scalar_select %p253, %s20, 1
      %p255 = scmp.lt.s32.totalorder %s21, 0
      %s256 = scalar_select %p255, %s21, 0
      %p257 = scmp.lt.s32.totalorder %s22, 0
      %s258 = scalar_select %p257, %s22, 0
      %s259 = sadd.s32 %s258, %s256
      %s260 = sadd.s32 %s259, %s254
      %s261 = smul.addr %s260, 8
      %s262 = scalar_lea.vmem %s3, %s261
      %p263 = scmp.lt.s32.totalorder %s20, 1
      %s264 = scalar_select %p263, %s20, 1
      %p265 = scmp.lt.s32.totalorder %s21, 0
      %s266 = scalar_select %p265, %s21, 0
      %p267 = scmp.lt.s32.totalorder %s23, 0
      %s268 = scalar_select %p267, %s23, 0
      %s269 = sadd.s32 %s268, %s266
      %s270 = sadd.s32 %s269, %s264
      %s271 = smul.addr %s270, 4
      %s272 = scalar_lea.vmem %s0, %s271
      %s273 = smul.u32 12, %s23
      %p274 = scmp.lt.s32.totalorder %s273, 11
      %s275 = scalar_select %p274, %s273, 11
      %p276 = scmp.lt.s32.totalorder %s22, 0
      %s277 = scalar_select %p276, %s22, 0
      %s278 = sadd.s32 %s277, %s275
      %s279 = smul.addr %s278, 4
      %s280 = scalar_lea.vmem %s1, %s279
      %s281 = smul.u32 12, %s23
      %p282 = scmp.lt.s32.totalorder %s20, 1
      %s283 = scalar_select %p282, %s20, 1
      %p284 = scmp.lt.s32.totalorder %s21, 0
      %s285 = scalar_select %p284, %s21, 0
      %p286 = scmp.lt.s32.totalorder %s22, 0
      %s287 = scalar_select %p286, %s22, 0
      %s288 = sadd.s32 %s287, %s285
      %s289 = sadd.s32 %s288, %s283
      %s290 = smul.addr %s289, 8
      %s291 = scalar_lea.vmem %s2, %s290
      %p292 = scmp.lt.s32.totalorder %s20, 1
      %s293 = scalar_select %p292, %s20, 1
      %p294 = scmp.lt.s32.totalorder %s21, 0
      %s295 = scalar_select %p294, %s21, 0
      %p296 = scmp.lt.s32.totalorder %s22, 0
      %s297 = scalar_select %p296, %s22, 0
      %s298 = sadd.s32 %s297, %s295
      %s299 = sadd.s32 %s298, %s293
      %s300 = smul.addr %s299, 8
      %s301 = scalar_lea.vmem %s3, %s300
      %p303 = scmp.eq.s32.totalorder %s23, 0
      // Predicated region
      $region33: #{transformer_forward.15} parent=31 // pred_check
        %p304 = pneg %p303
      $region34: #{transformer_forward.15} parent=31 // pred_check_branch
        %306 = sbr.rel (%p304) target = $region36
      $region35: #{transformer_forward.15} parent=31 // pred_region
        %vm307 = vcmask 261120
        %308 = vst.msk [vmem:[#allocation2] sm:$0xff] %vm307, 0.0
      $region36: #{transformer_forward.15} parent=31 // pred_fallthru
        _
      %v309 = vld [vmem:[#allocation2] sm:$0xff]
      %v310 = vld [vmem:[%s272] sm:$0xf]
      %v311 = vld [vmem:[%s280] sm:$0xf]
      %v312 = vld [vmem:[%s280 + $0x4] sm:$0xf]
      %v313 = vld [vmem:[%s280 + $0x8] sm:$0xf]
      %v314 = vld [vmem:[%s280 + $0xc] sm:$0xf]
      %v315 = vld [vmem:[%s280 + $0x10] sm:$0xf]
      %v316 = vld [vmem:[%s280 + $0x14] sm:$0xf]
      %v317 = vld [vmem:[%s280 + $0x18] sm:$0xf]
      %v318 = vld [vmem:[%s280 + $0x1c] sm:$0xf]
      %v319 = vld [vmem:[%s280 + $0x20] sm:$0xf]
      %v320 = vld [vmem:[%s280 + $0x24] sm:$0xf]
      %v321 = vld [vmem:[%s280 + $0x28] sm:$0xf]
      %v322 = vld [vmem:[%s280 + $0x2c] sm:$0xf]
      %v335 = vunpack.c.l.b16 %v311
      %v336 = vunpack.c.l.b16 %v312
      %v337 = vunpack.c.l.b16 %v313
      %v338 = vunpack.c.l.b16 %v314
      %v339 = vunpack.c.l.b16 %v315
      %v340 = vunpack.c.l.b16 %v316
      %v341 = vunpack.c.l.b16 %v317
      %v342 = vunpack.c.l.b16 %v318
      %v343 = vunpack.c.l.b16 %v319
      %v344 = vunpack.c.l.b16 %v320
      %v345 = vunpack.c.l.b16 %v321
      %v346 = vunpack.c.l.b16 %v322
      %v347 = vpack.c.b16 %v336, %v335
      %v348 = vpack.c.b16 %v338, %v337
      %v349 = vpack.c.b16 %v340, %v339
      %v350 = vpack.c.b16 %v342, %v341
      %v351 = vpack.c.b16 %v344, %v343
      %v352 = vpack.c.b16 %v346, %v345
      %vm359 = vcmask 785408
      %v361 = vsel %vm359, %v310, 0
      %363 = vmatprep.subr.bf16.mxu0 0
      %364 = vmatpush1.bf16.msra.mxu0 %v347
      %365 = vmatprep.subr.bf16.mxu0 0
      %366 = vmatpush1.bf16.msra.mxu0 %v348
      %367 = vmatprep.subr.bf16.mxu0 0
      %368 = vmatpush1.bf16.msra.mxu0 %v349
      %369 = vmatprep.subr.bf16.mxu0 0
      %370 = vmatpush1.bf16.msra.mxu0 %v350
      %371 = vmatprep.subr.bf16.mxu0 0
      %372 = vmatpush1.bf16.msra.mxu0 %v351
      %373 = vmatprep.subr.bf16.mxu0 0
      %374 = vmatpush1.bf16.msra.mxu0 %v352
      %375 = vmatprep.subr.bf16.mxu0 0
      %376 = vmatpush1.bf16.msra.mxu0 0
      %377 = vmatprep.subr.bf16.mxu0 0
      %378 = vmatpush1.bf16.msra.mxu0 0
      %379 = vmatprep.subr.bf16.mxu0 0
      %380 = vmatpush1.bf16.msra.mxu0 0
      %381 = vmatprep.subr.bf16.mxu0 0
      %382 = vmatpush1.bf16.msra.mxu0 0
      %383 = vmatprep.subr.bf16.mxu0 0
      %384 = vmatpush1.bf16.msra.mxu0 0
      %385 = vmatprep.subr.bf16.mxu0 0
      %386 = vmatpush1.bf16.msra.mxu0 0
      %387 = vmatprep.subr.bf16.mxu0 0
      %388 = vmatpush1.bf16.msra.mxu0 0
      %389 = vmatprep.subr.bf16.mxu0 0
      %390 = vmatpush1.bf16.msra.mxu0 0
      %391 = vmatprep.subr.bf16.mxu0 0
      %392 = vmatpush1.bf16.msra.mxu0 0
      %393 = vmatprep.subr.bf16.mxu0 0
      %394 = vmatpush1.bf16.msra.mxu0 0
      %395 = vmatprep.mubr.bf16.mxu0 0
      %396 = vmatmul.mubr.bf16.gmra.mrb[0].mxu0 %v361
      %v397 = vpop.f32.mrb[0].mxu0
      %v398 = vadd.f32 0.0, %v397
      %v399 = vpop.f32.mrb[0].mxu0
      %v400 = vpop.f32.mrb[0].mxu0
      %v401 = vpop.f32.mrb[0].mxu0
      %402 = vdwg.mxu0
      %v403 = vadd.f32 %v309, %v398
      %vm404 = vcmask 261120
      %405 = vst.msk [vmem:[#allocation2] sm:$0xff] %vm404, %v403
      // Predicated region
      $region37: #{transformer_forward.15} parent=31 // pred_check
        %p406 = pneg %p303
      $region38: #{transformer_forward.15} parent=31 // pred_check_branch
        %408 = sbr.rel (%p406) target = $region40
      $region39: #{transformer_forward.15} parent=31 // pred_region
        %v409 = vld [vmem:[%s291] sm:$0xff]
        %v410 = vld [vmem:[#allocation2] sm:$0xff]
        %v411 = vadd.f32 %v409, %v410
        %412 = vst.msk [vmem:[%s301] sm:$0xff] %vm404, %v411
      $region40: #{transformer_forward.15} parent=31 // pred_fallthru
        _
      %p413 = scmp.lt.s32.totalorder %s20, 1
      %s414 = scalar_select %p413, %s20, 1
      %p415 = scmp.lt.s32.totalorder %s21, 0
      %s416 = scalar_select %p415, %s21, 0
      %p417 = scmp.lt.s32.totalorder %s22, 0
      %s418 = scalar_select %p417, %s22, 0
      %s419 = sadd.s32 %s418, %s416
      %s420 = sadd.s32 %s419, %s414
      %s421 = smul.addr %s420, 8
      %s422 = scalar_lea.vmem %s3, %s421
      // Predicated region
      $region41: #{transformer_forward.15} parent=31 // pred_check
        %p423 = pneg %p150
      $region42: #{transformer_forward.15} parent=31 // pred_check_branch
        %425 = sbr.rel (%p423) target = $region44
      $region43: #{transformer_forward.15} parent=31 // pred_region
        _
      $region44: #{transformer_forward.15} parent=31 // pred_fallthru
        _
    $region32: #{transformer_forward.15} parent=5 // pred_fallthru
      _
    %p426 = scmp.le.s32.totalorder 2, %s9
    // Predicated region
    $region45: #{transformer_forward.15} parent=5 // pred_check
      %p427 = pneg %p426
    $region46: #{transformer_forward.15} parent=5 // pred_check_branch
      %429 = sbr.rel (%p427) target = $region48
    $region47: #{transformer_forward.15} parent=5 // pred_region
      %s430 = ssub.s32 %s9, 2
      // Predicated region
      $region49: #{transformer_forward.15} parent=47 // pred_check
        %p431 = pneg %p156
      $region50: #{transformer_forward.15} parent=47 // pred_check_branch
        %433 = sbr.rel (%p431) target = $region52
      $region51: #{transformer_forward.15} parent=47 // pred_region
        %p434 = scmp.lt.s32.totalorder %s24, 1
        %s435 = scalar_select %p434, %s24, 1
        %p436 = scmp.lt.s32.totalorder %s25, 0
        %s437 = scalar_select %p436, %s25, 0
        %p438 = scmp.lt.s32.totalorder %s26, 0
        %s439 = scalar_select %p438, %s26, 0
        %s440 = sadd.s32 %s439, %s437
        %s441 = sadd.s32 %s440, %s435
        %s442 = smul.addr %s441, 8
        %s443 = scalar_lea.vmem %s3, %s442
      $region52: #{transformer_forward.15} parent=47 // pred_fallthru
        _
    $region48: #{transformer_forward.15} parent=5 // pred_fallthru
      _
  $region6: #{transformer_forward.15} parent=0 // loop_footer
    %s13 = sadd.s32 1, %s9
  $region7: #{transformer_forward.15} parent=0 // loop_footer_branch
    %8 = sbr.rel target = $region3
  $region8: #{transformer_forward.15} parent=0 // loop_exit
    _

// kernel: transformer_forward.21
$region0: #{transformer_forward.21}
  #allocation0 [shape = 'u32[]', space=smem, size = 0x4, offset = 0x4, fixed_abs, tag = 'smem constant byte address 0x4 - core index']
  #allocation1 [shape = 'u32[144,128]{1,0:T(1,128)}', space=vmem, size = 0x12000, scoped, tag = 'internal scratch']
  %s0 = inlined_call_operand.vmem [shape: f32[2,32], index: 0, kind: input, shape index: {}]
  %s1 = inlined_call_operand.vmem [shape: f32[1,32], index: 1, kind: input, shape index: {}]
  %s2 = inlined_call_operand.vmem [shape: bf16[32,64], index: 2, kind: input, shape index: {}]
  %s3 = inlined_call_operand.hbm [shape: f32[2,64], index: 3, kind: output, shape index: {}]
  %s4 = sld [smem:[#allocation0]]
  $region22: #{transformer_forward.21} parent=0
    _
  %s6 = ssub.s32 1, %s4
  %s7 = scalar_select 0, %s6, %s4
  $region1: #{transformer_forward.21} parent=0
    #allocation2 [shape = 'u8[1024]{0}', space=vmem, size = 0x400, scoped, tag = 'output window, operand 0, single buffered']
    #allocation3 [shape = 's32[1]{0}', space=sflag, size = 0x4, scoped, tag = 'scoped memory for transformer_forward.21']
    %8 = vsyncpa [#allocation3], 0
    // Predicated region
    $region2: #{transformer_forward.21} parent=1 // pred_check
      _
    $region3: #{transformer_forward.21} parent=1 // pred_check_branch
      %10 = sbr.rel (0) target = $region5
    $region4: #{transformer_forward.21} parent=1 // pred_region
      _
    $region5: #{transformer_forward.21} parent=1 // pred_fallthru
      _
    // Predicated region
    $region6: #{transformer_forward.21} parent=1 // pred_check
      _
    $region7: #{transformer_forward.21} parent=1 // pred_check_branch
      %12 = sbr.rel (0) target = $region9
    $region8: #{transformer_forward.21} parent=1 // pred_region
      _
    $region9: #{transformer_forward.21} parent=1 // pred_fallthru
      _
    // Predicated region
    $region10: #{transformer_forward.21} parent=1 // pred_check
      _
    $region11: #{transformer_forward.21} parent=1 // pred_check_branch
      %14 = sbr.rel (0) target = $region13
    $region12: #{transformer_forward.21} parent=1 // pred_region
      _
    $region13: #{transformer_forward.21} parent=1 // pred_fallthru
      _
    %v16 = vld [vmem:[%s0] sm:$0x3]
    %v17 = vmul.f32 %v16, %v16
    %vm18 = vcmask 254976
    %v19 = vsel %vm18, %v17, 0.0
    %20 = vadd.xlane.f32.xlu0 %v19
    %v21 = vpop.xlane.xlu0 %20
    %v22 = vrcp.pop 32.0
    %v23 = vmul.f32 %v21, %v22
    %v24 = vadd.f32 %v23, 1e-05
    %v25 = vrsqrt.pop %v24
    %v26 = vmul.f32 %v16, %v25
    %v27 = vld [vmem:[%s1] sm:$0x1]
    %v29 = vlaneseq
    %v30 = vshrl.u32 %v29, 7
    %v31 = vsub.s32 0, %v30
    %v32 = vrot.slane %v27, %v31
    %v34 = vmul.f32 %v26, %v32
    %v35 = vpack.c.bf16 %v34, %v34
    %v36 = vld [vmem:[%s2] sm:$0xf]
    %v37 = vld [vmem:[%s2 + $0x4] sm:$0xf]
    %v38 = vld [vmem:[%s2 + $0x8] sm:$0xf]
    %v39 = vld [vmem:[%s2 + $0xc] sm:$0xf]
    %v44 = vunpack.c.l.b16 %v36
    %v45 = vunpack.c.l.b16 %v37
    %v46 = vunpack.c.l.b16 %v38
    %v47 = vunpack.c.l.b16 %v39
    %v48 = vpack.c.b16 %v45, %v44
    %v49 = vpack.c.b16 %v47, %v46
    %vm52 = vcmask 261120
    %v54 = vsel %vm52, %v35, 0
    %56 = vmatprep.subr.bf16.mxu0 0
    %57 = vmatpush1.bf16.msra.mxu0 %v48
    %58 = vmatprep.subr.bf16.mxu0 0
    %59 = vmatpush1.bf16.msra.mxu0 %v49
    %60 = vmatprep.subr.bf16.mxu0 0
    %61 = vmatpush1.bf16.msra.mxu0 0
    %62 = vmatprep.subr.bf16.mxu0 0
    %63 = vmatpush1.bf16.msra.mxu0 0
    %64 = vmatprep.subr.bf16.mxu0 0
    %65 = vmatpush1.bf16.msra.mxu0 0
    %66 = vmatprep.subr.bf16.mxu0 0
    %67 = vmatpush1.bf16.msra.mxu0 0
    %68 = vmatprep.subr.bf16.mxu0 0
    %69 = vmatpush1.bf16.msra.mxu0 0
    %70 = vmatprep.subr.bf16.mxu0 0
    %71 = vmatpush1.bf16.msra.mxu0 0
    %72 = vmatprep.subr.bf16.mxu0 0
    %73 = vmatpush1.bf16.msra.mxu0 0
    %74 = vmatprep.subr.bf16.mxu0 0
    %75 = vmatpush1.bf16.msra.mxu0 0
    %76 = vmatprep.subr.bf16.mxu0 0
    %77 = vmatpush1.bf16.msra.mxu0 0
    %78 = vmatprep.subr.bf16.mxu0 0
    %79 = vmatpush1.bf16.msra.mxu0 0
    %80 = vmatprep.subr.bf16.mxu0 0
    %81 = vmatpush1.bf16.msra.mxu0 0
    %82 = vmatprep.subr.bf16.mxu0 0
    %83 = vmatpush1.bf16.msra.mxu0 0
    %84 = vmatprep.subr.bf16.mxu0 0
    %85 = vmatpush1.bf16.msra.mxu0 0
    %86 = vmatprep.subr.bf16.mxu0 0
    %87 = vmatpush1.bf16.msra.mxu0 0
    %88 = vmatprep.mubr.bf16.mxu0 0
    %89 = vmatmul.mubr.bf16.gmra.mrb[0].mxu0 %v54
    %v90 = vpop.f32.mrb[0].mxu0
    %v91 = vadd.f32 0.0, %v90
    %v92 = vpop.f32.mrb[0].mxu0
    %v93 = vpop.f32.mrb[0].mxu0
    %v94 = vpop.f32.mrb[0].mxu0
    %95 = vdwg.mxu0
    %vm96 = vcmask 517120
    %97 = vst.msk [vmem:[#allocation2] sm:$0x3] %vm96, %v91
    // Predicated region
    $region14: #{transformer_forward.21} parent=1 // pred_check
      _
    $region15: #{transformer_forward.21} parent=1 // pred_check_branch
      %99 = sbr.rel (0) target = $region17
    $region16: #{transformer_forward.21} parent=1 // pred_region
      %s101 = ssub.s32 32, 32
      %102 = vsyncadd [#allocation3], %s101
      %s104 = sshll.u32 [#allocation2], 4
      %s105 = int_to_ptr.vmem [resolvable:$true] %s104
      %107 = dma.vmem_to_hbm [thread:$0]  %s105, 32, %s3, [#allocation3]
    $region17: #{transformer_forward.21} parent=1 // pred_fallthru
      _
    // Predicated region
    $region18: #{transformer_forward.21} parent=1 // pred_check
      _
    $region19: #{transformer_forward.21} parent=1 // pred_check_branch
      %109 = sbr.rel (0) target = $region21
    $region20: #{transformer_forward.21} parent=1 // pred_region
      %110 = dma.done [#allocation3], 32
    $region21: #{transformer_forward.21} parent=1 // pred_fallthru
      _
    %111 = vsyncpa [#allocation3], 1

</llo_original>
